<compile_context>
chip_gen: v5e
topology: v5e:2x2
jax: 0.10.0
libtpu: 0.0.40
codegen_flags: <defaults>
</compile_context>

<pallas_src>
import functools

import jax
import jax.numpy as jnp
from jax.experimental import pallas as pl
from jax.experimental.pallas import tpu as pltpu


def _conv_bn_relu_kernel(x_ref, w_ref, shift_ref, o_ref, col_ref, *,
                         kh, kw, stride, cin, hs, wo, tm_rows):
    """One (image, row-band, cout-tile) step of Conv + BN + ReLU.

    x_ref    : (s*s*hs, ws, cin)   bf16  padded, space-to-depth input (whole image)
    w_ref    : (kh*kw*cin, tn)     bf16  BN-scale-folded weight tile
    shift_ref: (1, tn)             f32   BN shift (beta - mean*scale)
    o_ref    : (tm, tn)            bf16  output tile, tm = tm_rows*wo
    col_ref  : (tm, kh*kw*cin)     bf16  persistent im2col scratch (per row band)
    """
    s = stride
    tm = tm_rows * wo
    m = pl.program_id(1)
    row0 = pl.multiple_of(m * tm_rows, tm_rows)   # first output row of this band

    # Build the im2col slab once per (image, row band); reuse for every cout tile.
    @pl.when(pl.program_id(2) == 0)
    def _build_im2col():
        for i in range(kh):                       # static unroll over the taps
            for j in range(kw):
                phase = (i % s) * s + (j % s)     # space-to-depth sub-image
                r_off = phase * hs + (i // s)     # static row offset in stacked x
                c_off = j // s                    # static col offset (unit stride)
                tap = i * kw + j
                xs = x_ref[pl.ds(row0 + r_off, tm_rows), pl.ds(c_off, wo), :]
                col_ref[:, tap * cin:(tap + 1) * cin] = xs.reshape(tm, cin)

    # One MXU matmul per cout tile: K = kh*kw*cin, f32 accumulation.
    acc = jnp.dot(col_ref[...], w_ref[...], preferred_element_type=jnp.float32)
    y = acc + shift_ref[...]                      # fused BN shift (scale is in w)
    o_ref[...] = jnp.maximum(y, 0.0).astype(o_ref.dtype)   # ReLU + bf16 store


def _round_up(x, m):
    return ((x + m - 1) // m) * m


def _pick_tm_rows(ho, wo, max_rows=256):
    """Largest divisor d of ho with d*wo <= max_rows and (d*wo) % 8 == 0."""
    best = 0
    for d in range(1, ho + 1):
        if ho % d == 0 and d * wo <= max_rows and (d * wo) % 8 == 0:
            best = d
    return best if best > 0 else ho   # fall back to one band per image


@functools.partial(jax.jit, static_argnames=("stride", "pad", "eps"))
def basic_conv2d(x_nchw, weight_ocHW, gamma, beta, run_mean, run_var,
                 *, stride=1, pad=1, eps=1e-3):
    """Conv2d(bias=False) + BatchNorm2d(eps, eval mode) + ReLU.  x is NCHW."""
    n, cin, h, w = x_nchw.shape
    cout, _, kh, kw = weight_ocHW.shape
    s = stride
    ho = (h + 2 * pad - kh) // s + 1
    wo = (w + 2 * pad - kw) // s + 1
    hp, wp = h + 2 * pad, w + 2 * pad
    hs, ws = -(-hp // s), -(-wp // s)             # phase sub-image extents

    # ---- glue (plain JAX, XLA-fused): layout, padding, space-to-depth, BN fold
    x_nhwc = jnp.transpose(x_nchw, (0, 2, 3, 1))
    x_pad = jnp.pad(x_nhwc, ((0, 0), (pad, hs * s - h - pad),
                             (pad, ws * s - w - pad), (0, 0)))
    # x_s2d[b, (pi*s+pj)*hs + a, bc, ch] = x_pad[b, a*s+pi, bc*s+pj, ch]
    x_s2d = (x_pad.reshape(n, hs, s, ws, s, cin)
                  .transpose(0, 2, 4, 1, 3, 5)
                  .reshape(n, s * s * hs, ws, cin))
    x_bf16 = x_s2d.astype(jnp.bfloat16)

    scale = gamma / jnp.sqrt(run_var + eps)                   # (O,)
    shift = (beta - run_mean * scale).astype(jnp.float32)     # (O,)

    # cout tile: 128 lanes for small cout / v5e MXU; 256 fills v6e/v7x MXU width.
    tn = 256 if cout > 128 else 128
    cout_pad = _round_up(cout, tn)
    kk = kh * kw * cin                                        # matmul K

    # (O,C,KH,KW) -> (KH,KW,C,O); fold BN scale; pad O; flatten K; bf16.
    w_t = jnp.transpose(weight_ocHW, (2, 3, 1, 0)) * scale
    w_t = jnp.pad(w_t, ((0, 0), (0, 0), (0, 0), (0, cout_pad - cout)))
    w_mat = w_t.reshape(kk, cout_pad).astype(jnp.bfloat16)
    shift_pad = jnp.pad(shift, (0, cout_pad - cout)).reshape(1, cout_pad)

    tm_rows = _pick_tm_rows(ho, wo)               # bound the M (spatial) tile
    tm = tm_rows * wo
    n_m = ho // tm_rows

    kernel = functools.partial(_conv_bn_relu_kernel, kh=kh, kw=kw, stride=s,
                               cin=cin, hs=hs, wo=wo, tm_rows=tm_rows)

    # VMEM budget (double-buffered blocks + persistent scratch), clamped to v7x's
    # 64 MiB physical VMEM; also lifts v5e/v6e's small default scoped limit.
    x_blk = s * s * hs * _round_up(ws, 8) * _round_up(cin, 128) * 2
    w_blk = _round_up(kk, 16) * tn * 2
    o_blk = _round_up(tm, 16) * tn * 2
    col_b = _round_up(tm, 16) * _round_up(kk, 128) * 2
    need = 2 * (x_blk + w_blk + o_blk + 8 * 128 * 4) + col_b
    vmem_limit = int(min(max(2 * need + (4 << 20), 32 << 20), 64 << 20))

    cost = pl.CostEstimate(
        flops=2 * n * ho * wo * cout_pad * kk,
        transcendentals=0,
        bytes_accessed=(x_bf16.size * 2 + w_mat.size * 2 + shift_pad.size * 4
                        + n * ho * wo * cout_pad * 2))

    # ---- hot path: im2col-scratch conv + BN + ReLU in Pallas -----------------
    out_flat = pl.pallas_call(
        kernel,
        out_shape=jax.ShapeDtypeStruct((n, ho * wo, cout_pad), jnp.bfloat16),
        grid_spec=pltpu.PrefetchScalarGridSpec(
            num_scalar_prefetch=0,
            grid=(n, n_m, cout_pad // tn),
            in_specs=[
                pl.BlockSpec((None, s * s * hs, ws, cin),
                             lambda b, m, c: (b, 0, 0, 0)),
                pl.BlockSpec((kk, tn), lambda b, m, c: (0, c)),
                pl.BlockSpec((1, tn), lambda b, m, c: (0, c)),
            ],
            out_specs=pl.BlockSpec((None, tm, tn), lambda b, m, c: (b, m, c)),
            scratch_shapes=[pltpu.VMEM((tm, kk), jnp.bfloat16)],
        ),
        compiler_params=pltpu.CompilerParams(
            dimension_semantics=("parallel", "parallel", "arbitrary"),
            vmem_limit_bytes=vmem_limit),
        cost_estimate=cost,
    )(x_bf16, w_mat, shift_pad)

    # ---- glue: drop padded channels, back to NCHW (module contract) ----------
    out = out_flat[:, :, :cout].reshape(n, ho, wo, cout)
    return jnp.transpose(out, (0, 3, 1, 2)).astype(x_nchw.dtype)


if __name__ == "__main__":
    # Shapes consistent with BasicConv2d(in_channels=4, out_channels=8,
    # kernel_size=3, padding=1).
    N, C_IN, C_OUT, H, W = 2, 4, 8, 16, 16
    KH = KW = 3

    key = jax.random.PRNGKey(0)
    kx, kw_, kg, kb, km, kv = jax.random.split(key, 6)

    x = jax.random.normal(kx, (N, C_IN, H, W), dtype=jnp.float32)
    weight = jax.random.normal(kw_, (C_OUT, C_IN, KH, KW), dtype=jnp.float32) * 0.1
    gamma = 1.0 + 0.1 * jax.random.normal(kg, (C_OUT,), dtype=jnp.float32)
    beta = 0.1 * jax.random.normal(kb, (C_OUT,), dtype=jnp.float32)
    run_mean = 0.1 * jax.random.normal(km, (C_OUT,), dtype=jnp.float32)
    run_var = jnp.abs(jax.random.normal(kv, (C_OUT,), dtype=jnp.float32)) + 0.5

    def reference(x_in, stride, pad):
        # Same bf16 quantization of activations / scale-folded weights as the
        # kernel; conv in f32, shift + ReLU, then round through bf16 (the
        # kernel stores bf16).
        scale = gamma / jnp.sqrt(run_var + 1e-3)
        shift = beta - run_mean * scale
        x_q = x_in.astype(jnp.bfloat16).astype(jnp.float32)
        w_q = (weight * scale[:, None, None, None]).astype(jnp.bfloat16)
        w_q = w_q.astype(jnp.float32)
        conv = jax.lax.conv_general_dilated(
            x_q, w_q, window_strides=(stride, stride),
            padding=((pad, pad), (pad, pad)),
            dimension_numbers=("NCHW", "OIHW", "NCHW"),
            precision=jax.lax.Precision.HIGHEST)
        y = jnp.maximum(conv + shift.reshape(1, C_OUT, 1, 1), 0.0)
        return y.astype(jnp.bfloat16).astype(jnp.float32)

    # stride=1, padding=1 (the canonical Inception BasicConv2d 3x3).
    out1 = jax.block_until_ready(
        basic_conv2d(x, weight, gamma, beta, run_mean, run_var,
                     stride=1, pad=1, eps=1e-3))
    assert out1.shape == (N, C_OUT, H, W), out1.shape
    ref1 = reference(x, 1, 1)
    err1 = float(jnp.max(jnp.abs(out1 - ref1)))
    assert jnp.allclose(out1, ref1, atol=2e-2, rtol=2e-2), f"stride-1 max err {err1}"

    # stride=2 exercises the space-to-depth (reduction-block) path.
    out2 = jax.block_until_ready(
        basic_conv2d(x, weight, gamma, beta, run_mean, run_var,
                     stride=2, pad=1, eps=1e-3))
    assert out2.shape == (N, C_OUT, 8, 8), out2.shape
    ref2 = reference(x, 2, 1)
    err2 = float(jnp.max(jnp.abs(out2 - ref2)))
    assert jnp.allclose(out2, ref2, atol=2e-2, rtol=2e-2), f"stride-2 max err {err2}"

    print("KERNEL_OK")
</pallas_src>

<mosaic_0001>
module attributes {stable_mosaic.version = 11 : i64} {
  func.func @_conv_bn_relu_kernel(%arg0: i32, %arg1: i32, %arg2: i32, %arg3: memref<1x18x18x4xbf16, #tpu.memory_space<vmem>>, %arg4: memref<36x128xbf16, #tpu.memory_space<vmem>>, %arg5: memref<1x128xf32, #tpu.memory_space<vmem>>, %arg6: memref<1x256x128xbf16, #tpu.memory_space<vmem>>, %arg7: memref<256x36xbf16, #tpu.memory_space<vmem>>) attributes {dimension_semantics = [#tpu.dimension_semantics<parallel>, #tpu.dimension_semantics<parallel>, #tpu.dimension_semantics<arbitrary>], iteration_bounds = array<i64: 2, 1, 1>, scalar_prefetch = 0 : i64, scratch_operands = 1 : i64, tpu.core_type = #tpu.core_type<tc>, window_params = [{transform_indices = @transform_0, window_bounds = array<i64: 1, 18, 18, 4>}, {transform_indices = @transform_1, window_bounds = array<i64: 36, 128>}, {transform_indices = @transform_2, window_bounds = array<i64: 1, 128>}, {transform_indices = @transform_3, window_bounds = array<i64: 1, 256, 128>}]} {
    %c16_i32 = arith.constant 16 : i32
    %0 = arith.muli %arg1, %c16_i32 : i32
    %1 = tpu.assume_multiple %0, 16 : i32
    %c0_i32 = arith.constant 0 : i32
    %2 = arith.cmpi eq, %arg2, %c0_i32 : i32
    %3 = arith.extui %2 : i1 to i32
    %c0_i32_0 = arith.constant 0 : i32
    %4 = arith.cmpi ne, %3, %c0_i32_0 : i32
    scf.if %4 {
      %c0_i32_10 = arith.constant 0 : i32
      %17 = arith.addi %1, %c0_i32_10 : i32
      %c0_11 = arith.constant 0 : index
      %18 = arith.index_cast %17 : i32 to index
      %c0_12 = arith.constant 0 : index
      %c0_13 = arith.constant 0 : index
      %19 = vector.load %arg3[%c0_11, %18, %c0_12, %c0_13] : memref<1x18x18x4xbf16, #tpu.memory_space<vmem>>, vector<1x16x16x4xbf16>
      %20 = vector.shape_cast %19 : vector<1x16x16x4xbf16> to vector<16x16x4xbf16>
      %21 = vector.shape_cast %20 : vector<16x16x4xbf16> to vector<256x4xbf16>
      %c0_14 = arith.constant 0 : index
      %c0_15 = arith.constant 0 : index
      %22 = vector.load %arg7[%c0_14, %c0_15] : memref<256x36xbf16, #tpu.memory_space<vmem>>, vector<256x4xbf16>
      tpu.vector_store %arg7[%c0_14, %c0_15], %21 {strides = array<i32>} : memref<256x36xbf16, #tpu.memory_space<vmem>>, vector<256x4xbf16>,
      %c0_i32_16 = arith.constant 0 : i32
      %23 = arith.addi %1, %c0_i32_16 : i32
      %c0_17 = arith.constant 0 : index
      %24 = arith.index_cast %23 : i32 to index
      %c1 = arith.constant 1 : index
      %c0_18 = arith.constant 0 : index
      %25 = vector.load %arg3[%c0_17, %24, %c1, %c0_18] : memref<1x18x18x4xbf16, #tpu.memory_space<vmem>>, vector<1x16x16x4xbf16>
      %26 = vector.shape_cast %25 : vector<1x16x16x4xbf16> to vector<16x16x4xbf16>
      %27 = vector.shape_cast %26 : vector<16x16x4xbf16> to vector<256x4xbf16>
      %c0_19 = arith.constant 0 : index
      %c4 = arith.constant 4 : index
      %28 = vector.load %arg7[%c0_19, %c4] : memref<256x36xbf16, #tpu.memory_space<vmem>>, vector<256x4xbf16>
      tpu.vector_store %arg7[%c0_19, %c4], %27 {strides = array<i32>} : memref<256x36xbf16, #tpu.memory_space<vmem>>, vector<256x4xbf16>,
      %c0_i32_20 = arith.constant 0 : i32
      %29 = arith.addi %1, %c0_i32_20 : i32
      %c0_21 = arith.constant 0 : index
      %30 = arith.index_cast %29 : i32 to index
      %c2 = arith.constant 2 : index
      %c0_22 = arith.constant 0 : index
      %31 = vector.load %arg3[%c0_21, %30, %c2, %c0_22] : memref<1x18x18x4xbf16, #tpu.memory_space<vmem>>, vector<1x16x16x4xbf16>
      %32 = vector.shape_cast %31 : vector<1x16x16x4xbf16> to vector<16x16x4xbf16>
      %33 = vector.shape_cast %32 : vector<16x16x4xbf16> to vector<256x4xbf16>
      %c0_23 = arith.constant 0 : index
      %c8 = arith.constant 8 : index
      %34 = vector.load %arg7[%c0_23, %c8] : memref<256x36xbf16, #tpu.memory_space<vmem>>, vector<256x4xbf16>
      tpu.vector_store %arg7[%c0_23, %c8], %33 {strides = array<i32>} : memref<256x36xbf16, #tpu.memory_space<vmem>>, vector<256x4xbf16>,
      %c1_i32 = arith.constant 1 : i32
      %35 = arith.addi %1, %c1_i32 : i32
      %c0_24 = arith.constant 0 : index
      %36 = arith.index_cast %35 : i32 to index
      %c0_25 = arith.constant 0 : index
      %c0_26 = arith.constant 0 : index
      %37 = vector.load %arg3[%c0_24, %36, %c0_25, %c0_26] : memref<1x18x18x4xbf16, #tpu.memory_space<vmem>>, vector<1x16x16x4xbf16>
      %38 = vector.shape_cast %37 : vector<1x16x16x4xbf16> to vector<16x16x4xbf16>
      %39 = vector.shape_cast %38 : vector<16x16x4xbf16> to vector<256x4xbf16>
      %c0_27 = arith.constant 0 : index
      %c12 = arith.constant 12 : index
      %40 = vector.load %arg7[%c0_27, %c12] : memref<256x36xbf16, #tpu.memory_space<vmem>>, vector<256x4xbf16>
      tpu.vector_store %arg7[%c0_27, %c12], %39 {strides = array<i32>} : memref<256x36xbf16, #tpu.memory_space<vmem>>, vector<256x4xbf16>,
      %c1_i32_28 = arith.constant 1 : i32
      %41 = arith.addi %1, %c1_i32_28 : i32
      %c0_29 = arith.constant 0 : index
      %42 = arith.index_cast %41 : i32 to index
      %c1_30 = arith.constant 1 : index
      %c0_31 = arith.constant 0 : index
      %43 = vector.load %arg3[%c0_29, %42, %c1_30, %c0_31] : memref<1x18x18x4xbf16, #tpu.memory_space<vmem>>, vector<1x16x16x4xbf16>
      %44 = vector.shape_cast %43 : vector<1x16x16x4xbf16> to vector<16x16x4xbf16>
      %45 = vector.shape_cast %44 : vector<16x16x4xbf16> to vector<256x4xbf16>
      %c0_32 = arith.constant 0 : index
      %c16 = arith.constant 16 : index
      %46 = vector.load %arg7[%c0_32, %c16] : memref<256x36xbf16, #tpu.memory_space<vmem>>, vector<256x4xbf16>
      tpu.vector_store %arg7[%c0_32, %c16], %45 {strides = array<i32>} : memref<256x36xbf16, #tpu.memory_space<vmem>>, vector<256x4xbf16>,
      %c1_i32_33 = arith.constant 1 : i32
      %47 = arith.addi %1, %c1_i32_33 : i32
      %c0_34 = arith.constant 0 : index
      %48 = arith.index_cast %47 : i32 to index
      %c2_35 = arith.constant 2 : index
      %c0_36 = arith.constant 0 : index
      %49 = vector.load %arg3[%c0_34, %48, %c2_35, %c0_36] : memref<1x18x18x4xbf16, #tpu.memory_space<vmem>>, vector<1x16x16x4xbf16>
      %50 = vector.shape_cast %49 : vector<1x16x16x4xbf16> to vector<16x16x4xbf16>
      %51 = vector.shape_cast %50 : vector<16x16x4xbf16> to vector<256x4xbf16>
      %c0_37 = arith.constant 0 : index
      %c20 = arith.constant 20 : index
      %52 = vector.load %arg7[%c0_37, %c20] : memref<256x36xbf16, #tpu.memory_space<vmem>>, vector<256x4xbf16>
      tpu.vector_store %arg7[%c0_37, %c20], %51 {strides = array<i32>} : memref<256x36xbf16, #tpu.memory_space<vmem>>, vector<256x4xbf16>,
      %c2_i32 = arith.constant 2 : i32
      %53 = arith.addi %1, %c2_i32 : i32
      %c0_38 = arith.constant 0 : index
      %54 = arith.index_cast %53 : i32 to index
      %c0_39 = arith.constant 0 : index
      %c0_40 = arith.constant 0 : index
      %55 = vector.load %arg3[%c0_38, %54, %c0_39, %c0_40] : memref<1x18x18x4xbf16, #tpu.memory_space<vmem>>, vector<1x16x16x4xbf16>
      %56 = vector.shape_cast %55 : vector<1x16x16x4xbf16> to vector<16x16x4xbf16>
      %57 = vector.shape_cast %56 : vector<16x16x4xbf16> to vector<256x4xbf16>
      %c0_41 = arith.constant 0 : index
      %c24 = arith.constant 24 : index
      %58 = vector.load %arg7[%c0_41, %c24] : memref<256x36xbf16, #tpu.memory_space<vmem>>, vector<256x4xbf16>
      tpu.vector_store %arg7[%c0_41, %c24], %57 {strides = array<i32>} : memref<256x36xbf16, #tpu.memory_space<vmem>>, vector<256x4xbf16>,
      %c2_i32_42 = arith.constant 2 : i32
      %59 = arith.addi %1, %c2_i32_42 : i32
      %c0_43 = arith.constant 0 : index
      %60 = arith.index_cast %59 : i32 to index
      %c1_44 = arith.constant 1 : index
      %c0_45 = arith.constant 0 : index
      %61 = vector.load %arg3[%c0_43, %60, %c1_44, %c0_45] : memref<1x18x18x4xbf16, #tpu.memory_space<vmem>>, vector<1x16x16x4xbf16>
      %62 = vector.shape_cast %61 : vector<1x16x16x4xbf16> to vector<16x16x4xbf16>
      %63 = vector.shape_cast %62 : vector<16x16x4xbf16> to vector<256x4xbf16>
      %c0_46 = arith.constant 0 : index
      %c28 = arith.constant 28 : index
      %64 = vector.load %arg7[%c0_46, %c28] : memref<256x36xbf16, #tpu.memory_space<vmem>>, vector<256x4xbf16>
      tpu.vector_store %arg7[%c0_46, %c28], %63 {strides = array<i32>} : memref<256x36xbf16, #tpu.memory_space<vmem>>, vector<256x4xbf16>,
      %c2_i32_47 = arith.constant 2 : i32
      %65 = arith.addi %1, %c2_i32_47 : i32
      %c0_48 = arith.constant 0 : index
      %66 = arith.index_cast %65 : i32 to index
      %c2_49 = arith.constant 2 : index
      %c0_50 = arith.constant 0 : index
      %67 = vector.load %arg3[%c0_48, %66, %c2_49, %c0_50] : memref<1x18x18x4xbf16, #tpu.memory_space<vmem>>, vector<1x16x16x4xbf16>
      %68 = vector.shape_cast %67 : vector<1x16x16x4xbf16> to vector<16x16x4xbf16>
      %69 = vector.shape_cast %68 : vector<16x16x4xbf16> to vector<256x4xbf16>
      %c0_51 = arith.constant 0 : index
      %c32 = arith.constant 32 : index
      %70 = vector.load %arg7[%c0_51, %c32] : memref<256x36xbf16, #tpu.memory_space<vmem>>, vector<256x4xbf16>
      tpu.vector_store %arg7[%c0_51, %c32], %69 {strides = array<i32>} : memref<256x36xbf16, #tpu.memory_space<vmem>>, vector<256x4xbf16>,
    } else {
    }
    %c0 = arith.constant 0 : index
    %c0_1 = arith.constant 0 : index
    %5 = vector.load %arg7[%c0, %c0_1] : memref<256x36xbf16, #tpu.memory_space<vmem>>, vector<256x36xbf16>
    %c0_2 = arith.constant 0 : index
    %c0_3 = arith.constant 0 : index
    %6 = vector.load %arg4[%c0_2, %c0_3] : memref<36x128xbf16, #tpu.memory_space<vmem>>, vector<36x128xbf16>
    %cst = arith.constant dense<0.000000e+00> : vector<256x128xf32>
    %7 = tpu.matmul %5, %6, %cst {dimension_numbers = #tpu.dot_dimension_numbers<[1], [0], [0], [1], [0, 0, 1, 1], [], []>} : vector<256x36xbf16>, vector<36x128xbf16>, vector<256x128xf32> -> vector<256x128xf32>
    %c0_4 = arith.constant 0 : index
    %c0_5 = arith.constant 0 : index
    %8 = vector.load %arg5[%c0_4, %c0_5] : memref<1x128xf32, #tpu.memory_space<vmem>>, vector<1x128xf32>
    %9 = vector.broadcast %8 : vector<1x128xf32> to vector<256x128xf32>
    %10 = arith.addf %7, %9 : vector<256x128xf32>
    %cst_6 = arith.constant 0.000000e+00 : f32
    %11 = vector.broadcast %cst_6 : f32 to vector<256x128xf32>
    %12 = arith.maximumf %10, %11 : vector<256x128xf32>
    %13 = arith.truncf %12 : vector<256x128xf32> to vector<256x128xbf16>
    %c0_7 = arith.constant 0 : index
    %c0_8 = arith.constant 0 : index
    %c0_9 = arith.constant 0 : index
    %14 = vector.load %arg6[%c0_7, %c0_8, %c0_9] : memref<1x256x128xbf16, #tpu.memory_space<vmem>>, vector<1x256x128xbf16>
    %15 = vector.shape_cast %14 : vector<1x256x128xbf16> to vector<256x128xbf16>
    %16 = vector.shape_cast %13 : vector<256x128xbf16> to vector<1x256x128xbf16>
    tpu.vector_store %arg6[%c0_7, %c0_8, %c0_9], %16 {strides = array<i32>} : memref<1x256x128xbf16, #tpu.memory_space<vmem>>, vector<1x256x128xbf16>,
    return
  }
  func.func @transform_0(%arg0: i32, %arg1: i32, %arg2: i32) -> (i32, i32, i32, i32) {
    %c0_i32 = arith.constant 0 : i32
    %c0_i32_0 = arith.constant 0 : i32
    %c0_i32_1 = arith.constant 0 : i32
    %c0_i32_2 = arith.constant 0 : i32
    return %arg0, %c0_i32, %c0_i32_0, %c0_i32_1 : i32, i32, i32, i32
  }
  func.func @transform_1(%arg0: i32, %arg1: i32, %arg2: i32) -> (i32, i32) {
    %c0_i32 = arith.constant 0 : i32
    %c0_i32_0 = arith.constant 0 : i32
    return %c0_i32, %arg2 : i32, i32
  }
  func.func @transform_2(%arg0: i32, %arg1: i32, %arg2: i32) -> (i32, i32) {
    %c0_i32 = arith.constant 0 : i32
    %c0_i32_0 = arith.constant 0 : i32
    return %c0_i32, %arg2 : i32, i32
  }
  func.func @transform_3(%arg0: i32, %arg1: i32, %arg2: i32) -> (i32, i32, i32) {
    %c0_i32 = arith.constant 0 : i32
    return %arg0, %arg1, %arg2 : i32, i32, i32
  }
}

</mosaic_0001>

<llo_original>
// kernel: basic_conv2d.1
$region0: #{basic_conv2d.1}
  #allocation0 [shape = 'u32[]', space=smem, size = 0x4, offset = 0x4, fixed_abs, tag = 'smem constant byte address 0x4 - core index']
  #allocation1 [shape = 'u32[72,128]{1,0:T(1,128)}', space=vmem, size = 0x9000, scoped, tag = 'internal scratch']
  #allocation2 [shape = 'bf16[256,36]{1,0:T(8,128)(2,1)}', space=vmem, size = 0x10000, scoped, tag = 'scratch operand']
  %s0 = inlined_call_operand.vmem [shape: bf16[2,18,18,4], index: 0, kind: input, shape index: {}]
  %s1 = inlined_call_operand.vmem [shape: bf16[36,128], index: 1, kind: input, shape index: {}]
  %s2 = inlined_call_operand.vmem [shape: f32[1,128], index: 2, kind: input, shape index: {}]
  %s3 = inlined_call_operand.vmem [shape: bf16[2,256,128], index: 3, kind: output, shape index: {}]
  %s4 = sld [smem:[#allocation0]]
  $region49: #{basic_conv2d.1} parent=0
    _
  %s6 = ssub.s32 1, %s4
  %s7 = scalar_select 0, %s6, %s4
  loop: start=0, step=1, limit=4
  $region2: #{basic_conv2d.1} parent=0 // loop_pre_header
    _
  $region3: #{basic_conv2d.1} parent=0 // loop_header
    %s9 = sphi 0, %s13
    %p10 = scmp.ge.s32.totalorder %s9, 4
    %s16 = sphi 0, %s35
    %s17 = sphi 0, %s31
    %s18 = sphi 0, %s27
    %s19 = sphi 0, %s16
    %s20 = sphi 0, %s17
    %s21 = sphi 0, %s18
    %s22 = sphi 0, %s19
    %s23 = sphi 0, %s20
    %s24 = sphi 0, %s21
    %s38 = sphi 0, %s40
    %s41 = sphi 0, %s38
    %s42 = sphi 0, %s41
    %s58 = sphi 0, %s42
    %s64 = sphi 0, %s66
    %s67 = sphi 0, %s64
    %s68 = sphi 0, %s67
    %s84 = sphi 0, %s68
    %s90 = sphi 0, %s92
    %s93 = sphi 0, %s90
    %s94 = sphi 0, %s93
    %s110 = sphi 0, %s94
    %s120 = sphi 0, %s122
    %s123 = sphi 0, %s120
    %s124 = sphi 0, %s123
    %s140 = sphi 0, %s124
  $region4: #{basic_conv2d.1} parent=0 // loop_header_branch
    %12 = sbr.rel (%p10) target = $region8
  $region5: #{basic_conv2d.1} parent=0 // loop_body
    %s14 = ssub.s32 %s9, 1
    %s15 = ssub.s32 %s9, 2
    %s25 = sadd.s32 1, %s18
    %p26 = scmp.ge.s32.totalorder %s25, 1
    %s27 = scalar_select %p26, 0, %s25
    %s28 = sadd.s32 1, %s17
    %s29 = scalar_select %p26, %s28, %s17
    %p30 = scmp.ge.s32.totalorder %s29, 1
    %s31 = scalar_select %p30, 0, %s29
    %s32 = sadd.s32 1, %s16
    %s33 = scalar_select %p30, %s32, %s16
    %p34 = scmp.ge.s32.totalorder %s33, 2
    %s35 = scalar_select %p34, 0, %s33
    %s36 = ssub.s32 %s16, %s35
    %p37 = scmp.eq.s32.totalorder %s36, 0
    %s39 = sadd.s32 %s38, 1
    %s40 = scalar_select %p37, %s38, %s39
    %p43 = pneg %p37
    %p44 = scmp.eq.s32.totalorder %s9, 1
    %p45 = por %p43, %p44
    %p46 = scmp.ne.s32.totalorder %s38, %s41
    %p47 = scmp.eq.s32.totalorder %s9, 0
    %p48 = por %p46, %p47
    %p49 = scmp.ne.s32.totalorder %s38, %s41
    %p50 = scmp.eq.s32.totalorder %s14, 1
    %p51 = por %p49, %p50
    %p52 = scmp.ne.s32.totalorder %s41, %s42
    %p53 = scmp.eq.s32.totalorder %s14, 0
    %p54 = por %p52, %p53
    %p55 = scmp.ne.s32.totalorder %s41, %s42
    %p56 = scmp.eq.s32.totalorder %s15, 1
    %p57 = por %p55, %p56
    %p59 = scmp.ne.s32.totalorder %s42, %s58
    %p60 = scmp.eq.s32.totalorder %s15, 0
    %p61 = por %p59, %p60
    %s62 = ssub.s32 %s18, %s27
    %p63 = scmp.eq.s32.totalorder %s62, 0
    %s65 = sadd.s32 %s64, 1
    %s66 = scalar_select %p63, %s64, %s65
    %p69 = pneg %p63
    %p70 = scmp.eq.s32.totalorder %s9, 1
    %p71 = por %p69, %p70
    %p72 = scmp.ne.s32.totalorder %s64, %s67
    %p73 = scmp.eq.s32.totalorder %s9, 0
    %p74 = por %p72, %p73
    %p75 = scmp.ne.s32.totalorder %s64, %s67
    %p76 = scmp.eq.s32.totalorder %s14, 1
    %p77 = por %p75, %p76
    %p78 = scmp.ne.s32.totalorder %s67, %s68
    %p79 = scmp.eq.s32.totalorder %s14, 0
    %p80 = por %p78, %p79
    %p81 = scmp.ne.s32.totalorder %s67, %s68
    %p82 = scmp.eq.s32.totalorder %s15, 1
    %p83 = por %p81, %p82
    %p85 = scmp.ne.s32.totalorder %s68, %s84
    %p86 = scmp.eq.s32.totalorder %s15, 0
    %p87 = por %p85, %p86
    %s88 = ssub.s32 %s18, %s27
    %p89 = scmp.eq.s32.totalorder %s88, 0
    %s91 = sadd.s32 %s90, 1
    %s92 = scalar_select %p89, %s90, %s91
    %p95 = pneg %p89
    %p96 = scmp.eq.s32.totalorder %s9, 1
    %p97 = por %p95, %p96
    %p98 = scmp.ne.s32.totalorder %s90, %s93
    %p99 = scmp.eq.s32.totalorder %s9, 0
    %p100 = por %p98, %p99
    %p101 = scmp.ne.s32.totalorder %s90, %s93
    %p102 = scmp.eq.s32.totalorder %s14, 1
    %p103 = por %p101, %p102
    %p104 = scmp.ne.s32.totalorder %s93, %s94
    %p105 = scmp.eq.s32.totalorder %s14, 0
    %p106 = por %p104, %p105
    %p107 = scmp.ne.s32.totalorder %s93, %s94
    %p108 = scmp.eq.s32.totalorder %s15, 1
    %p109 = por %p107, %p108
    %p111 = scmp.ne.s32.totalorder %s94, %s110
    %p112 = scmp.eq.s32.totalorder %s15, 0
    %p113 = por %p111, %p112
    %s114 = ssub.s32 %s16, %s35
    %s115 = ssub.s32 %s17, %s31
    %s116 = sor.u32 %s114, %s115
    %s117 = ssub.s32 %s18, %s27
    %s118 = sor.u32 %s116, %s117
    %p119 = scmp.eq.s32.totalorder %s118, 0
    %s121 = sadd.s32 %s120, 1
    %s122 = scalar_select %p119, %s120, %s121
    %p125 = pneg %p119
    %p126 = scmp.eq.s32.totalorder %s9, 1
    %p127 = por %p125, %p126
    %p128 = scmp.ne.s32.totalorder %s120, %s123
    %p129 = scmp.eq.s32.totalorder %s9, 0
    %p130 = por %p128, %p129
    %p131 = scmp.ne.s32.totalorder %s120, %s123
    %p132 = scmp.eq.s32.totalorder %s14, 1
    %p133 = por %p131, %p132
    %p134 = scmp.ne.s32.totalorder %s123, %s124
    %p135 = scmp.eq.s32.totalorder %s14, 0
    %p136 = por %p134, %p135
    %p137 = scmp.ne.s32.totalorder %s123, %s124
    %p138 = scmp.eq.s32.totalorder %s15, 1
    %p139 = por %p137, %p138
    %p141 = scmp.ne.s32.totalorder %s124, %s140
    %p142 = scmp.eq.s32.totalorder %s15, 0
    %p143 = por %p141, %p142
    %p144 = scmp.le.s32.totalorder 1, %s9
    %p145 = scmp.lt.s32.totalorder %s9, 3
    %p146 = pnand %p144, %p145
    %p147 = pneg %p146
    // Predicated region
    $region9: #{basic_conv2d.1} parent=5 // pred_check
      _
    $region10: #{basic_conv2d.1} parent=5 // pred_check_branch
      %149 = sbr.rel (%p146) target = $region12
    $region11: #{basic_conv2d.1} parent=5 // pred_region
      %s150 = ssub.s32 %s9, 1
      // Predicated region
      $region13: #{basic_conv2d.1} parent=11 // pred_check
        %p151 = pneg %p80
      $region14: #{basic_conv2d.1} parent=11 // pred_check_branch
        %153 = sbr.rel (%p151) target = $region16
      $region15: #{basic_conv2d.1} parent=11 // pred_region
        %p154 = scmp.lt.s32.totalorder %s21, 0
        %s155 = scalar_select %p154, %s21, 0
        %s156 = smul.addr %s155, 4
        %s157 = scalar_lea.vmem %s1, %s156
      $region16: #{basic_conv2d.1} parent=11 // pred_fallthru
        _
      // Predicated region
      $region17: #{basic_conv2d.1} parent=11 // pred_check
        %p158 = pneg %p106
      $region18: #{basic_conv2d.1} parent=11 // pred_check_branch
        %160 = sbr.rel (%p158) target = $region20
      $region19: #{basic_conv2d.1} parent=11 // pred_region
        %p161 = scmp.lt.s32.totalorder %s21, 0
        %s162 = scalar_select %p161, %s21, 0
        %s163 = scalar_lea.vmem %s2, %s162
      $region20: #{basic_conv2d.1} parent=11 // pred_fallthru
        _
    $region12: #{basic_conv2d.1} parent=5 // pred_fallthru
      _
    %p164 = scmp.lt.s32.totalorder %s9, 2
    // Predicated region
    $region21: #{basic_conv2d.1} parent=5 // pred_check
      %p165 = pneg %p164
    $region22: #{basic_conv2d.1} parent=5 // pred_check_branch
      %167 = sbr.rel (%p165) target = $region24
    $region23: #{basic_conv2d.1} parent=5 // pred_region
      // Predicated region
      $region25: #{basic_conv2d.1} parent=23 // pred_check
        %p168 = pneg %p48
      $region26: #{basic_conv2d.1} parent=23 // pred_check_branch
        %170 = sbr.rel (%p168) target = $region28
      $region27: #{basic_conv2d.1} parent=23 // pred_region
        %p171 = scmp.lt.s32.totalorder %s16, 1
        %s172 = scalar_select %p171, %s16, 1
        %s173 = smul.addr %s172, 54
        %s174 = smul.addr %s173, 4
        %s175 = scalar_lea.vmem %s0, %s174
      $region28: #{basic_conv2d.1} parent=23 // pred_fallthru
        _
    $region24: #{basic_conv2d.1} parent=5 // pred_fallthru
      _
    %p176 = scmp.le.s32.totalorder 1, %s9
    %p177 = scmp.lt.s32.totalorder %s9, 3
    %p178 = pnand %p176, %p177
    %p179 = pneg %p178
    // Predicated region
    $region29: #{basic_conv2d.1} parent=5 // pred_check
      _
    $region30: #{basic_conv2d.1} parent=5 // pred_check_branch
      %181 = sbr.rel (%p178) target = $region32
    $region31: #{basic_conv2d.1} parent=5 // pred_region
      %s182 = ssub.s32 %s9, 1
      %p183 = scmp.lt.s32.totalorder %s19, 1
      %s184 = scalar_select %p183, %s19, 1
      %s185 = smul.addr %s184, 54
      %s186 = smul.addr %s185, 4
      %s187 = scalar_lea.vmem %s0, %s186
      %p188 = pneg %p54
      %p189 = pneg %p51
      %p190 = scmp.lt.s32.totalorder %s21, 0
      %s191 = scalar_select %p190, %s21, 0
      %s192 = smul.addr %s191, 4
      %s193 = scalar_lea.vmem %s1, %s192
      %p194 = pneg %p80
      %p195 = pneg %p77
      %p196 = scmp.lt.s32.totalorder %s21, 0
      %s197 = scalar_select %p196, %s21, 0
      %s198 = scalar_lea.vmem %s2, %s197
      %p199 = pneg %p106
      %p200 = pneg %p103
      %p201 = pneg %p136
      %p202 = pneg %p133
      %s203 = smul.u32 32, %s20
      %p204 = scmp.lt.s32.totalorder %s19, 1
      %s205 = scalar_select %p204, %s19, 1
      %p206 = scmp.lt.s32.totalorder %s203, 31
      %s207 = scalar_select %p206, %s203, 31
      %p208 = scmp.lt.s32.totalorder %s21, 0
      %s209 = scalar_select %p208, %s21, 0
      %s210 = sadd.s32 %s209, %s207
      %s211 = smul.addr %s205, 32
      %s212 = sadd.s32 %s210, %s211
      %s213 = smul.addr %s212, 4
      %s214 = scalar_lea.vmem %s3, %s213
      %p215 = scmp.lt.s32.totalorder %s19, 1
      %s216 = scalar_select %p215, %s19, 1
      %s217 = smul.addr %s216, 54
      %s218 = smul.addr %s217, 4
      %s219 = scalar_lea.vmem %s0, %s218
      %p220 = scmp.lt.s32.totalorder %s21, 0
      %s221 = scalar_select %p220, %s21, 0
      %s222 = smul.addr %s221, 4
      %s223 = scalar_lea.vmem %s1, %s222
      %p224 = scmp.lt.s32.totalorder %s21, 0
      %s225 = scalar_select %p224, %s21, 0
      %s226 = scalar_lea.vmem %s2, %s225
      %s227 = smul.u32 32, %s20
      %p228 = scmp.lt.s32.totalorder %s19, 1
      %s229 = scalar_select %p228, %s19, 1
      %p230 = scmp.lt.s32.totalorder %s227, 31
      %s231 = scalar_select %p230, %s227, 31
      %p232 = scmp.lt.s32.totalorder %s21, 0
      %s233 = scalar_select %p232, %s21, 0
      %s234 = sadd.s32 %s233, %s231
      %s235 = smul.addr %s229, 32
      %s236 = sadd.s32 %s234, %s235
      %s237 = smul.addr %s236, 4
      %s238 = scalar_lea.vmem %s3, %s237
      %s239 = smul.u32 32, %s20
      %s241 = smul.u32 %s20, 16
      %p242 = scmp.eq.s32.totalorder %s21, 0
      // Predicated region
      $region33: #{basic_conv2d.1} parent=31 // pred_check
        %p243 = pneg %p242
      $region34: #{basic_conv2d.1} parent=31 // pred_check_branch
        %245 = sbr.rel (%p243) target = $region36
      $region35: #{basic_conv2d.1} parent=31 // pred_region
        %s246 = smul.u32 %s241, 3
        %s247 = smul.addr %s246, 4
        %s248 = scalar_lea.vmem %s219, %s247
        %v249 = vld [vmem:[%s248] sm:$0xf]
        %v250 = vld [vmem:[%s248 + $0x4] sm:$0xf]
        %v251 = vld [vmem:[%s248 + $0xc] sm:$0xf]
        %v252 = vld [vmem:[%s248 + $0x10] sm:$0xf]
        %v253 = vld [vmem:[%s248 + $0x18] sm:$0xf]
        %v254 = vld [vmem:[%s248 + $0x1c] sm:$0xf]
        %v255 = vld [vmem:[%s248 + $0x24] sm:$0xf]
        %v256 = vld [vmem:[%s248 + $0x28] sm:$0xf]
        %v257 = vld [vmem:[%s248 + $0x30] sm:$0xf]
        %v258 = vld [vmem:[%s248 + $0x34] sm:$0xf]
        %v259 = vld [vmem:[%s248 + $0x3c] sm:$0xf]
        %v260 = vld [vmem:[%s248 + $0x40] sm:$0xf]
        %v261 = vld [vmem:[%s248 + $0x48] sm:$0xf]
        %v262 = vld [vmem:[%s248 + $0x4c] sm:$0xf]
        %v263 = vld [vmem:[%s248 + $0x54] sm:$0xf]
        %v264 = vld [vmem:[%s248 + $0x58] sm:$0xf]
        %v265 = vld [vmem:[%s248 + $0x60] sm:$0xf]
        %v266 = vld [vmem:[%s248 + $0x64] sm:$0xf]
        %v267 = vld [vmem:[%s248 + $0x6c] sm:$0xf]
        %v268 = vld [vmem:[%s248 + $0x70] sm:$0xf]
        %v269 = vld [vmem:[%s248 + $0x78] sm:$0xf]
        %v270 = vld [vmem:[%s248 + $0x7c] sm:$0xf]
        %v271 = vld [vmem:[%s248 + $0x84] sm:$0xf]
        %v272 = vld [vmem:[%s248 + $0x88] sm:$0xf]
        %v273 = vld [vmem:[%s248 + $0x90] sm:$0xf]
        %v274 = vld [vmem:[%s248 + $0x94] sm:$0xf]
        %v275 = vld [vmem:[%s248 + $0x9c] sm:$0xf]
        %v276 = vld [vmem:[%s248 + $0xa0] sm:$0xf]
        %v277 = vld [vmem:[%s248 + $0xa8] sm:$0xf]
        %v278 = vld [vmem:[%s248 + $0xac] sm:$0xf]
        %v279 = vld [vmem:[%s248 + $0xb4] sm:$0xf]
        %v280 = vld [vmem:[%s248 + $0xb8] sm:$0xf]
        %vm281 = vcmask 27648
        %282 = vst.msk [vmem:[#allocation2] sm:$0xf] %vm281, %v249
        %283 = vst.msk [vmem:[#allocation2 + $0x4] sm:$0xf] %vm281, %v250
        %284 = vst.msk [vmem:[#allocation2 + $0x8] sm:$0xf] %vm281, %v251
        %285 = vst.msk [vmem:[#allocation2 + $0xc] sm:$0xf] %vm281, %v252
        %286 = vst.msk [vmem:[#allocation2 + $0x10] sm:$0xf] %vm281, %v253
        %287 = vst.msk [vmem:[#allocation2 + $0x14] sm:$0xf] %vm281, %v254
        %288 = vst.msk [vmem:[#allocation2 + $0x18] sm:$0xf] %vm281, %v255
        %289 = vst.msk [vmem:[#allocation2 + $0x1c] sm:$0xf] %vm281, %v256
        %290 = vst.msk [vmem:[#allocation2 + $0x20] sm:$0xf] %vm281, %v257
        %291 = vst.msk [vmem:[#allocation2 + $0x24] sm:$0xf] %vm281, %v258
        %292 = vst.msk [vmem:[#allocation2 + $0x28] sm:$0xf] %vm281, %v259
        %293 = vst.msk [vmem:[#allocation2 + $0x2c] sm:$0xf] %vm281, %v260
        %294 = vst.msk [vmem:[#allocation2 + $0x30] sm:$0xf] %vm281, %v261
        %295 = vst.msk [vmem:[#allocation2 + $0x34] sm:$0xf] %vm281, %v262
        %296 = vst.msk [vmem:[#allocation2 + $0x38] sm:$0xf] %vm281, %v263
        %297 = vst.msk [vmem:[#allocation2 + $0x3c] sm:$0xf] %vm281, %v264
        %298 = vst.msk [vmem:[#allocation2 + $0x40] sm:$0xf] %vm281, %v265
        %299 = vst.msk [vmem:[#allocation2 + $0x44] sm:$0xf] %vm281, %v266
        %300 = vst.msk [vmem:[#allocation2 + $0x48] sm:$0xf] %vm281, %v267
        %301 = vst.msk [vmem:[#allocation2 + $0x4c] sm:$0xf] %vm281, %v268
        %302 = vst.msk [vmem:[#allocation2 + $0x50] sm:$0xf] %vm281, %v269
        %303 = vst.msk [vmem:[#allocation2 + $0x54] sm:$0xf] %vm281, %v270
        %304 = vst.msk [vmem:[#allocation2 + $0x58] sm:$0xf] %vm281, %v271
        %305 = vst.msk [vmem:[#allocation2 + $0x5c] sm:$0xf] %vm281, %v272
        %306 = vst.msk [vmem:[#allocation2 + $0x60] sm:$0xf] %vm281, %v273
        %307 = vst.msk [vmem:[#allocation2 + $0x64] sm:$0xf] %vm281, %v274
        %308 = vst.msk [vmem:[#allocation2 + $0x68] sm:$0xf] %vm281, %v275
        %309 = vst.msk [vmem:[#allocation2 + $0x6c] sm:$0xf] %vm281, %v276
        %310 = vst.msk [vmem:[#allocation2 + $0x70] sm:$0xf] %vm281, %v277
        %311 = vst.msk [vmem:[#allocation2 + $0x74] sm:$0xf] %vm281, %v278
        %312 = vst.msk [vmem:[#allocation2 + $0x78] sm:$0xf] %vm281, %v279
        %313 = vst.msk [vmem:[#allocation2 + $0x7c] sm:$0xf] %vm281, %v280
        %v314 = vld [vmem:[%s248] sm:$0xf]
        %v315 = vld [vmem:[%s248 + $0x4] sm:$0xf]
        %v316 = vld [vmem:[%s248 + $0x8] sm:$0x1]
        %v317 = vld [vmem:[%s248 + $0xc] sm:$0xf]
        %v318 = vld [vmem:[%s248 + $0x10] sm:$0xf]
        %v319 = vld [vmem:[%s248 + $0x14] sm:$0x1]
        %v320 = vld [vmem:[%s248 + $0x18] sm:$0xf]
        %v321 = vld [vmem:[%s248 + $0x1c] sm:$0xf]
        %v322 = vld [vmem:[%s248 + $0x20] sm:$0x1]
        %v323 = vld [vmem:[%s248 + $0x24] sm:$0xf]
        %v324 = vld [vmem:[%s248 + $0x28] sm:$0xf]
        %v325 = vld [vmem:[%s248 + $0x2c] sm:$0x1]
        %v326 = vld [vmem:[%s248 + $0x30] sm:$0xf]
        %v327 = vld [vmem:[%s248 + $0x34] sm:$0xf]
        %v328 = vld [vmem:[%s248 + $0x38] sm:$0x1]
        %v329 = vld [vmem:[%s248 + $0x3c] sm:$0xf]
        %v330 = vld [vmem:[%s248 + $0x40] sm:$0xf]
        %v331 = vld [vmem:[%s248 + $0x44] sm:$0x1]
        %v332 = vld [vmem:[%s248 + $0x48] sm:$0xf]
        %v333 = vld [vmem:[%s248 + $0x4c] sm:$0xf]
        %v334 = vld [vmem:[%s248 + $0x50] sm:$0x1]
        %v335 = vld [vmem:[%s248 + $0x54] sm:$0xf]
        %v336 = vld [vmem:[%s248 + $0x58] sm:$0xf]
        %v337 = vld [vmem:[%s248 + $0x5c] sm:$0x1]
        %v338 = vld [vmem:[%s248 + $0x60] sm:$0xf]
        %v339 = vld [vmem:[%s248 + $0x64] sm:$0xf]
        %v340 = vld [vmem:[%s248 + $0x68] sm:$0x1]
        %v341 = vld [vmem:[%s248 + $0x6c] sm:$0xf]
        %v342 = vld [vmem:[%s248 + $0x70] sm:$0xf]
        %v343 = vld [vmem:[%s248 + $0x74] sm:$0x1]
        %v344 = vld [vmem:[%s248 + $0x78] sm:$0xf]
        %v345 = vld [vmem:[%s248 + $0x7c] sm:$0xf]
        %v346 = vld [vmem:[%s248 + $0x80] sm:$0x1]
        %v347 = vld [vmem:[%s248 + $0x84] sm:$0xf]
        %v348 = vld [vmem:[%s248 + $0x88] sm:$0xf]
        %v349 = vld [vmem:[%s248 + $0x8c] sm:$0x1]
        %v350 = vld [vmem:[%s248 + $0x90] sm:$0xf]
        %v351 = vld [vmem:[%s248 + $0x94] sm:$0xf]
        %v352 = vld [vmem:[%s248 + $0x98] sm:$0x1]
        %v353 = vld [vmem:[%s248 + $0x9c] sm:$0xf]
        %v354 = vld [vmem:[%s248 + $0xa0] sm:$0xf]
        %v355 = vld [vmem:[%s248 + $0xa4] sm:$0x1]
        %v356 = vld [vmem:[%s248 + $0xa8] sm:$0xf]
        %v357 = vld [vmem:[%s248 + $0xac] sm:$0xf]
        %v358 = vld [vmem:[%s248 + $0xb0] sm:$0x1]
        %v359 = vld [vmem:[%s248 + $0xb4] sm:$0xf]
        %v360 = vld [vmem:[%s248 + $0xb8] sm:$0xf]
        %v361 = vld [vmem:[%s248 + $0xbc] sm:$0x1]
        %vm362 = vsmask.f32 3328
        %vm363 = vsmask.f32 7440
        %vm364 = vmor %vm362, %vm363
        %v366 = vshrl.u32 %v314, 16
        %v368 = vrot.slane %v366, 4
        %v369 = vshll.u32 %v314, 16
        %v371 = vrot.slane %v369, 5
        %v372 = vor.u32 %v368, %v371
        %v373 = vrot.slane %v372, 4
        %v375 = vshll.u32 %v315, 16
        %v377 = vrot.slane %v375, 5
        %v378 = vsel %vm364, %v373, %v377
        %v379 = vshrl.u32 %v315, 16
        %v381 = vrot.slane %v379, 4
        %v382 = vor.u32 %v381, %v377
        %v383 = vrot.slane %v382, 4
        %v385 = vshll.u32 %v316, 16
        %v387 = vrot.slane %v385, 5
        %v388 = vsel %vm364, %v383, %v387
        %v390 = vshrl.u32 %v317, 16
        %v392 = vrot.slane %v390, 4
        %v393 = vshll.u32 %v317, 16
        %v395 = vrot.slane %v393, 5
        %v396 = vor.u32 %v392, %v395
        %v397 = vrot.slane %v396, 4
        %v399 = vshll.u32 %v318, 16
        %v401 = vrot.slane %v399, 5
        %v402 = vsel %vm364, %v397, %v401
        %v403 = vshrl.u32 %v318, 16
        %v405 = vrot.slane %v403, 4
        %v406 = vor.u32 %v405, %v401
        %v407 = vrot.slane %v406, 4
        %v409 = vshll.u32 %v319, 16
        %v411 = vrot.slane %v409, 5
        %v412 = vsel %vm364, %v407, %v411
        %v414 = vshrl.u32 %v320, 16
        %v416 = vrot.slane %v414, 4
        %v417 = vshll.u32 %v320, 16
        %v419 = vrot.slane %v417, 5
        %v420 = vor.u32 %v416, %v419
        %v421 = vrot.slane %v420, 4
        %v423 = vshll.u32 %v321, 16
        %v425 = vrot.slane %v423, 5
        %v426 = vsel %vm364, %v421, %v425
        %v427 = vshrl.u32 %v321, 16
        %v429 = vrot.slane %v427, 4
        %v430 = vor.u32 %v429, %v425
        %v431 = vrot.slane %v430, 4
        %v433 = vshll.u32 %v322, 16
        %v435 = vrot.slane %v433, 5
        %v436 = vsel %vm364, %v431, %v435
        %v438 = vshrl.u32 %v323, 16
        %v440 = vrot.slane %v438, 4
        %v441 = vshll.u32 %v323, 16
        %v443 = vrot.slane %v441, 5
        %v444 = vor.u32 %v440, %v443
        %v445 = vrot.slane %v444, 4
        %v447 = vshll.u32 %v324, 16
        %v449 = vrot.slane %v447, 5
        %v450 = vsel %vm364, %v445, %v449
        %v451 = vshrl.u32 %v324, 16
        %v453 = vrot.slane %v451, 4
        %v454 = vor.u32 %v453, %v449
        %v455 = vrot.slane %v454, 4
        %v457 = vshll.u32 %v325, 16
        %v459 = vrot.slane %v457, 5
        %v460 = vsel %vm364, %v455, %v459
        %v462 = vshrl.u32 %v326, 16
        %v464 = vrot.slane %v462, 4
        %v465 = vshll.u32 %v326, 16
        %v467 = vrot.slane %v465, 5
        %v468 = vor.u32 %v464, %v467
        %v469 = vrot.slane %v468, 4
        %v471 = vshll.u32 %v327, 16
        %v473 = vrot.slane %v471, 5
        %v474 = vsel %vm364, %v469, %v473
        %v475 = vshrl.u32 %v327, 16
        %v477 = vrot.slane %v475, 4
        %v478 = vor.u32 %v477, %v473
        %v479 = vrot.slane %v478, 4
        %v481 = vshll.u32 %v328, 16
        %v483 = vrot.slane %v481, 5
        %v484 = vsel %vm364, %v479, %v483
        %v486 = vshrl.u32 %v329, 16
        %v488 = vrot.slane %v486, 4
        %v489 = vshll.u32 %v329, 16
        %v491 = vrot.slane %v489, 5
        %v492 = vor.u32 %v488, %v491
        %v493 = vrot.slane %v492, 4
        %v495 = vshll.u32 %v330, 16
        %v497 = vrot.slane %v495, 5
        %v498 = vsel %vm364, %v493, %v497
        %v499 = vshrl.u32 %v330, 16
        %v501 = vrot.slane %v499, 4
        %v502 = vor.u32 %v501, %v497
        %v503 = vrot.slane %v502, 4
        %v505 = vshll.u32 %v331, 16
        %v507 = vrot.slane %v505, 5
        %v508 = vsel %vm364, %v503, %v507
        %v510 = vshrl.u32 %v332, 16
        %v512 = vrot.slane %v510, 4
        %v513 = vshll.u32 %v332, 16
        %v515 = vrot.slane %v513, 5
        %v516 = vor.u32 %v512, %v515
        %v517 = vrot.slane %v516, 4
        %v519 = vshll.u32 %v333, 16
        %v521 = vrot.slane %v519, 5
        %v522 = vsel %vm364, %v517, %v521
        %v523 = vshrl.u32 %v333, 16
        %v525 = vrot.slane %v523, 4
        %v526 = vor.u32 %v525, %v521
        %v527 = vrot.slane %v526, 4
        %v529 = vshll.u32 %v334, 16
        %v531 = vrot.slane %v529, 5
        %v532 = vsel %vm364, %v527, %v531
        %v534 = vshrl.u32 %v335, 16
        %v536 = vrot.slane %v534, 4
        %v537 = vshll.u32 %v335, 16
        %v539 = vrot.slane %v537, 5
        %v540 = vor.u32 %v536, %v539
        %v541 = vrot.slane %v540, 4
        %v543 = vshll.u32 %v336, 16
        %v545 = vrot.slane %v543, 5
        %v546 = vsel %vm364, %v541, %v545
        %v547 = vshrl.u32 %v336, 16
        %v549 = vrot.slane %v547, 4
        %v550 = vor.u32 %v549, %v545
        %v551 = vrot.slane %v550, 4
        %v553 = vshll.u32 %v337, 16
        %v555 = vrot.slane %v553, 5
        %v556 = vsel %vm364, %v551, %v555
        %v558 = vshrl.u32 %v338, 16
        %v560 = vrot.slane %v558, 4
        %v561 = vshll.u32 %v338, 16
        %v563 = vrot.slane %v561, 5
        %v564 = vor.u32 %v560, %v563
        %v565 = vrot.slane %v564, 4
        %v567 = vshll.u32 %v339, 16
        %v569 = vrot.slane %v567, 5
        %v570 = vsel %vm364, %v565, %v569
        %v571 = vshrl.u32 %v339, 16
        %v573 = vrot.slane %v571, 4
        %v574 = vor.u32 %v573, %v569
        %v575 = vrot.slane %v574, 4
        %v577 = vshll.u32 %v340, 16
        %v579 = vrot.slane %v577, 5
        %v580 = vsel %vm364, %v575, %v579
        %v582 = vshrl.u32 %v341, 16
        %v584 = vrot.slane %v582, 4
        %v585 = vshll.u32 %v341, 16
        %v587 = vrot.slane %v585, 5
        %v588 = vor.u32 %v584, %v587
        %v589 = vrot.slane %v588, 4
        %v591 = vshll.u32 %v342, 16
        %v593 = vrot.slane %v591, 5
        %v594 = vsel %vm364, %v589, %v593
        %v595 = vshrl.u32 %v342, 16
        %v597 = vrot.slane %v595, 4
        %v598 = vor.u32 %v597, %v593
        %v599 = vrot.slane %v598, 4
        %v601 = vshll.u32 %v343, 16
        %v603 = vrot.slane %v601, 5
        %v604 = vsel %vm364, %v599, %v603
        %v606 = vshrl.u32 %v344, 16
        %v608 = vrot.slane %v606, 4
        %v609 = vshll.u32 %v344, 16
        %v611 = vrot.slane %v609, 5
        %v612 = vor.u32 %v608, %v611
        %v613 = vrot.slane %v612, 4
        %v615 = vshll.u32 %v345, 16
        %v617 = vrot.slane %v615, 5
        %v618 = vsel %vm364, %v613, %v617
        %v619 = vshrl.u32 %v345, 16
        %v621 = vrot.slane %v619, 4
        %v622 = vor.u32 %v621, %v617
        %v623 = vrot.slane %v622, 4
        %v625 = vshll.u32 %v346, 16
        %v627 = vrot.slane %v625, 5
        %v628 = vsel %vm364, %v623, %v627
        %v630 = vshrl.u32 %v347, 16
        %v632 = vrot.slane %v630, 4
        %v633 = vshll.u32 %v347, 16
        %v635 = vrot.slane %v633, 5
        %v636 = vor.u32 %v632, %v635
        %v637 = vrot.slane %v636, 4
        %v639 = vshll.u32 %v348, 16
        %v641 = vrot.slane %v639, 5
        %v642 = vsel %vm364, %v637, %v641
        %v643 = vshrl.u32 %v348, 16
        %v645 = vrot.slane %v643, 4
        %v646 = vor.u32 %v645, %v641
        %v647 = vrot.slane %v646, 4
        %v649 = vshll.u32 %v349, 16
        %v651 = vrot.slane %v649, 5
        %v652 = vsel %vm364, %v647, %v651
        %v654 = vshrl.u32 %v350, 16
        %v656 = vrot.slane %v654, 4
        %v657 = vshll.u32 %v350, 16
        %v659 = vrot.slane %v657, 5
        %v660 = vor.u32 %v656, %v659
        %v661 = vrot.slane %v660, 4
        %v663 = vshll.u32 %v351, 16
        %v665 = vrot.slane %v663, 5
        %v666 = vsel %vm364, %v661, %v665
        %v667 = vshrl.u32 %v351, 16
        %v669 = vrot.slane %v667, 4
        %v670 = vor.u32 %v669, %v665
        %v671 = vrot.slane %v670, 4
        %v673 = vshll.u32 %v352, 16
        %v675 = vrot.slane %v673, 5
        %v676 = vsel %vm364, %v671, %v675
        %v678 = vshrl.u32 %v353, 16
        %v680 = vrot.slane %v678, 4
        %v681 = vshll.u32 %v353, 16
        %v683 = vrot.slane %v681, 5
        %v684 = vor.u32 %v680, %v683
        %v685 = vrot.slane %v684, 4
        %v687 = vshll.u32 %v354, 16
        %v689 = vrot.slane %v687, 5
        %v690 = vsel %vm364, %v685, %v689
        %v691 = vshrl.u32 %v354, 16
        %v693 = vrot.slane %v691, 4
        %v694 = vor.u32 %v693, %v689
        %v695 = vrot.slane %v694, 4
        %v697 = vshll.u32 %v355, 16
        %v699 = vrot.slane %v697, 5
        %v700 = vsel %vm364, %v695, %v699
        %v702 = vshrl.u32 %v356, 16
        %v704 = vrot.slane %v702, 4
        %v705 = vshll.u32 %v356, 16
        %v707 = vrot.slane %v705, 5
        %v708 = vor.u32 %v704, %v707
        %v709 = vrot.slane %v708, 4
        %v711 = vshll.u32 %v357, 16
        %v713 = vrot.slane %v711, 5
        %v714 = vsel %vm364, %v709, %v713
        %v715 = vshrl.u32 %v357, 16
        %v717 = vrot.slane %v715, 4
        %v718 = vor.u32 %v717, %v713
        %v719 = vrot.slane %v718, 4
        %v721 = vshll.u32 %v358, 16
        %v723 = vrot.slane %v721, 5
        %v724 = vsel %vm364, %v719, %v723
        %v726 = vshrl.u32 %v359, 16
        %v728 = vrot.slane %v726, 4
        %v729 = vshll.u32 %v359, 16
        %v731 = vrot.slane %v729, 5
        %v732 = vor.u32 %v728, %v731
        %v733 = vrot.slane %v732, 4
        %v735 = vshll.u32 %v360, 16
        %v737 = vrot.slane %v735, 5
        %v738 = vsel %vm364, %v733, %v737
        %v739 = vshrl.u32 %v360, 16
        %v741 = vrot.slane %v739, 4
        %v742 = vor.u32 %v741, %v737
        %v743 = vrot.slane %v742, 4
        %v745 = vshll.u32 %v361, 16
        %v747 = vrot.slane %v745, 5
        %v748 = vsel %vm364, %v743, %v747
        %749 = vrot.lane.b32.xlu0 %v378, 4
        %v750 = vpop.permute.xlu0 %749
        %751 = vrot.lane.b32.xlu0 %v388, 4
        %v752 = vpop.permute.xlu0 %751
        %753 = vrot.lane.b32.xlu0 %v402, 4
        %v754 = vpop.permute.xlu0 %753
        %755 = vrot.lane.b32.xlu0 %v412, 4
        %v756 = vpop.permute.xlu0 %755
        %757 = vrot.lane.b32.xlu0 %v426, 4
        %v758 = vpop.permute.xlu0 %757
        %759 = vrot.lane.b32.xlu0 %v436, 4
        %v760 = vpop.permute.xlu0 %759
        %761 = vrot.lane.b32.xlu0 %v450, 4
        %v762 = vpop.permute.xlu0 %761
        %763 = vrot.lane.b32.xlu0 %v460, 4
        %v764 = vpop.permute.xlu0 %763
        %765 = vrot.lane.b32.xlu0 %v474, 4
        %v766 = vpop.permute.xlu0 %765
        %767 = vrot.lane.b32.xlu0 %v484, 4
        %v768 = vpop.permute.xlu0 %767
        %769 = vrot.lane.b32.xlu0 %v498, 4
        %v770 = vpop.permute.xlu0 %769
        %771 = vrot.lane.b32.xlu0 %v508, 4
        %v772 = vpop.permute.xlu0 %771
        %773 = vrot.lane.b32.xlu0 %v522, 4
        %v774 = vpop.permute.xlu0 %773
        %775 = vrot.lane.b32.xlu0 %v532, 4
        %v776 = vpop.permute.xlu0 %775
        %777 = vrot.lane.b32.xlu0 %v546, 4
        %v778 = vpop.permute.xlu0 %777
        %779 = vrot.lane.b32.xlu0 %v556, 4
        %v780 = vpop.permute.xlu0 %779
        %781 = vrot.lane.b32.xlu0 %v570, 4
        %v782 = vpop.permute.xlu0 %781
        %783 = vrot.lane.b32.xlu0 %v580, 4
        %v784 = vpop.permute.xlu0 %783
        %785 = vrot.lane.b32.xlu0 %v594, 4
        %v786 = vpop.permute.xlu0 %785
        %787 = vrot.lane.b32.xlu0 %v604, 4
        %v788 = vpop.permute.xlu0 %787
        %789 = vrot.lane.b32.xlu0 %v618, 4
        %v790 = vpop.permute.xlu0 %789
        %791 = vrot.lane.b32.xlu0 %v628, 4
        %v792 = vpop.permute.xlu0 %791
        %793 = vrot.lane.b32.xlu0 %v642, 4
        %v794 = vpop.permute.xlu0 %793
        %795 = vrot.lane.b32.xlu0 %v652, 4
        %v796 = vpop.permute.xlu0 %795
        %797 = vrot.lane.b32.xlu0 %v666, 4
        %v798 = vpop.permute.xlu0 %797
        %799 = vrot.lane.b32.xlu0 %v676, 4
        %v800 = vpop.permute.xlu0 %799
        %801 = vrot.lane.b32.xlu0 %v690, 4
        %v802 = vpop.permute.xlu0 %801
        %803 = vrot.lane.b32.xlu0 %v700, 4
        %v804 = vpop.permute.xlu0 %803
        %805 = vrot.lane.b32.xlu0 %v714, 4
        %v806 = vpop.permute.xlu0 %805
        %807 = vrot.lane.b32.xlu0 %v724, 4
        %v808 = vpop.permute.xlu0 %807
        %809 = vrot.lane.b32.xlu0 %v738, 4
        %v810 = vpop.permute.xlu0 %809
        %811 = vrot.lane.b32.xlu0 %v748, 4
        %v812 = vpop.permute.xlu0 %811
        %vm845 = vcmask 60448
        %846 = vst.msk [vmem:[#allocation2] sm:$0xf] %vm845, %v750
        %847 = vst.msk [vmem:[#allocation2 + $0x4] sm:$0xf] %vm845, %v752
        %848 = vst.msk [vmem:[#allocation2 + $0x8] sm:$0xf] %vm845, %v754
        %849 = vst.msk [vmem:[#allocation2 + $0xc] sm:$0xf] %vm845, %v756
        %850 = vst.msk [vmem:[#allocation2 + $0x10] sm:$0xf] %vm845, %v758
        %851 = vst.msk [vmem:[#allocation2 + $0x14] sm:$0xf] %vm845, %v760
        %852 = vst.msk [vmem:[#allocation2 + $0x18] sm:$0xf] %vm845, %v762
        %853 = vst.msk [vmem:[#allocation2 + $0x1c] sm:$0xf] %vm845, %v764
        %854 = vst.msk [vmem:[#allocation2 + $0x20] sm:$0xf] %vm845, %v766
        %855 = vst.msk [vmem:[#allocation2 + $0x24] sm:$0xf] %vm845, %v768
        %856 = vst.msk [vmem:[#allocation2 + $0x28] sm:$0xf] %vm845, %v770
        %857 = vst.msk [vmem:[#allocation2 + $0x2c] sm:$0xf] %vm845, %v772
        %858 = vst.msk [vmem:[#allocation2 + $0x30] sm:$0xf] %vm845, %v774
        %859 = vst.msk [vmem:[#allocation2 + $0x34] sm:$0xf] %vm845, %v776
        %860 = vst.msk [vmem:[#allocation2 + $0x38] sm:$0xf] %vm845, %v778
        %861 = vst.msk [vmem:[#allocation2 + $0x3c] sm:$0xf] %vm845, %v780
        %862 = vst.msk [vmem:[#allocation2 + $0x40] sm:$0xf] %vm845, %v782
        %863 = vst.msk [vmem:[#allocation2 + $0x44] sm:$0xf] %vm845, %v784
        %864 = vst.msk [vmem:[#allocation2 + $0x48] sm:$0xf] %vm845, %v786
        %865 = vst.msk [vmem:[#allocation2 + $0x4c] sm:$0xf] %vm845, %v788
        %866 = vst.msk [vmem:[#allocation2 + $0x50] sm:$0xf] %vm845, %v790
        %867 = vst.msk [vmem:[#allocation2 + $0x54] sm:$0xf] %vm845, %v792
        %868 = vst.msk [vmem:[#allocation2 + $0x58] sm:$0xf] %vm845, %v794
        %869 = vst.msk [vmem:[#allocation2 + $0x5c] sm:$0xf] %vm845, %v796
        %870 = vst.msk [vmem:[#allocation2 + $0x60] sm:$0xf] %vm845, %v798
        %871 = vst.msk [vmem:[#allocation2 + $0x64] sm:$0xf] %vm845, %v800
        %872 = vst.msk [vmem:[#allocation2 + $0x68] sm:$0xf] %vm845, %v802
        %873 = vst.msk [vmem:[#allocation2 + $0x6c] sm:$0xf] %vm845, %v804
        %874 = vst.msk [vmem:[#allocation2 + $0x70] sm:$0xf] %vm845, %v806
        %875 = vst.msk [vmem:[#allocation2 + $0x74] sm:$0xf] %vm845, %v808
        %876 = vst.msk [vmem:[#allocation2 + $0x78] sm:$0xf] %vm845, %v810
        %877 = vst.msk [vmem:[#allocation2 + $0x7c] sm:$0xf] %vm845, %v812
        %v878 = vld [vmem:[%s248] sm:$0xe]
        %v879 = vld [vmem:[%s248 + $0x4] sm:$0xf]
        %v880 = vld [vmem:[%s248 + $0x8] sm:$0x1]
        %v881 = vld [vmem:[%s248 + $0xc] sm:$0xe]
        %v882 = vld [vmem:[%s248 + $0x10] sm:$0xf]
        %v883 = vld [vmem:[%s248 + $0x14] sm:$0x1]
        %v884 = vld [vmem:[%s248 + $0x18] sm:$0xe]
        %v885 = vld [vmem:[%s248 + $0x1c] sm:$0xf]
        %v886 = vld [vmem:[%s248 + $0x20] sm:$0x1]
        %v887 = vld [vmem:[%s248 + $0x24] sm:$0xe]
        %v888 = vld [vmem:[%s248 + $0x28] sm:$0xf]
        %v889 = vld [vmem:[%s248 + $0x2c] sm:$0x1]
        %v890 = vld [vmem:[%s248 + $0x30] sm:$0xe]
        %v891 = vld [vmem:[%s248 + $0x34] sm:$0xf]
        %v892 = vld [vmem:[%s248 + $0x38] sm:$0x1]
        %v893 = vld [vmem:[%s248 + $0x3c] sm:$0xe]
        %v894 = vld [vmem:[%s248 + $0x40] sm:$0xf]
        %v895 = vld [vmem:[%s248 + $0x44] sm:$0x1]
        %v896 = vld [vmem:[%s248 + $0x48] sm:$0xe]
        %v897 = vld [vmem:[%s248 + $0x4c] sm:$0xf]
        %v898 = vld [vmem:[%s248 + $0x50] sm:$0x1]
        %v899 = vld [vmem:[%s248 + $0x54] sm:$0xe]
        %v900 = vld [vmem:[%s248 + $0x58] sm:$0xf]
        %v901 = vld [vmem:[%s248 + $0x5c] sm:$0x1]
        %v902 = vld [vmem:[%s248 + $0x60] sm:$0xe]
        %v903 = vld [vmem:[%s248 + $0x64] sm:$0xf]
        %v904 = vld [vmem:[%s248 + $0x68] sm:$0x1]
        %v905 = vld [vmem:[%s248 + $0x6c] sm:$0xe]
        %v906 = vld [vmem:[%s248 + $0x70] sm:$0xf]
        %v907 = vld [vmem:[%s248 + $0x74] sm:$0x1]
        %v908 = vld [vmem:[%s248 + $0x78] sm:$0xe]
        %v909 = vld [vmem:[%s248 + $0x7c] sm:$0xf]
        %v910 = vld [vmem:[%s248 + $0x80] sm:$0x1]
        %v911 = vld [vmem:[%s248 + $0x84] sm:$0xe]
        %v912 = vld [vmem:[%s248 + $0x88] sm:$0xf]
        %v913 = vld [vmem:[%s248 + $0x8c] sm:$0x1]
        %v914 = vld [vmem:[%s248 + $0x90] sm:$0xe]
        %v915 = vld [vmem:[%s248 + $0x94] sm:$0xf]
        %v916 = vld [vmem:[%s248 + $0x98] sm:$0x1]
        %v917 = vld [vmem:[%s248 + $0x9c] sm:$0xe]
        %v918 = vld [vmem:[%s248 + $0xa0] sm:$0xf]
        %v919 = vld [vmem:[%s248 + $0xa4] sm:$0x1]
        %v920 = vld [vmem:[%s248 + $0xa8] sm:$0xe]
        %v921 = vld [vmem:[%s248 + $0xac] sm:$0xf]
        %v922 = vld [vmem:[%s248 + $0xb0] sm:$0x1]
        %v923 = vld [vmem:[%s248 + $0xb4] sm:$0xe]
        %v924 = vld [vmem:[%s248 + $0xb8] sm:$0xf]
        %v925 = vld [vmem:[%s248 + $0xbc] sm:$0x1]
        %vm974 = vcmask 1042432
        %vm975 = vcmask 1046532
        %vm976 = vmor %vm974, %vm975
        %v977 = vrot.slane %v878, 5
        %v978 = vrot.slane %v977, 4
        %v979 = vrot.slane %v879, 5
        %v980 = vsel %vm976, %v978, %v979
        %v981 = vrot.slane %v979, 4
        %v982 = vrot.slane %v880, 5
        %v983 = vsel %vm976, %v981, %v982
        %v984 = vrot.slane %v881, 5
        %v985 = vrot.slane %v984, 4
        %v986 = vrot.slane %v882, 5
        %v987 = vsel %vm976, %v985, %v986
        %v988 = vrot.slane %v986, 4
        %v989 = vrot.slane %v883, 5
        %v990 = vsel %vm976, %v988, %v989
        %v991 = vrot.slane %v884, 5
        %v992 = vrot.slane %v991, 4
        %v993 = vrot.slane %v885, 5
        %v994 = vsel %vm976, %v992, %v993
        %v995 = vrot.slane %v993, 4
        %v996 = vrot.slane %v886, 5
        %v997 = vsel %vm976, %v995, %v996
        %v998 = vrot.slane %v887, 5
        %v999 = vrot.slane %v998, 4
        %v1000 = vrot.slane %v888, 5
        %v1001 = vsel %vm976, %v999, %v1000
        %v1002 = vrot.slane %v1000, 4
        %v1003 = vrot.slane %v889, 5
        %v1004 = vsel %vm976, %v1002, %v1003
        %v1005 = vrot.slane %v890, 5
        %v1006 = vrot.slane %v1005, 4
        %v1007 = vrot.slane %v891, 5
        %v1008 = vsel %vm976, %v1006, %v1007
        %v1009 = vrot.slane %v1007, 4
        %v1010 = vrot.slane %v892, 5
        %v1011 = vsel %vm976, %v1009, %v1010
        %v1012 = vrot.slane %v893, 5
        %v1013 = vrot.slane %v1012, 4
        %v1014 = vrot.slane %v894, 5
        %v1015 = vsel %vm976, %v1013, %v1014
        %v1016 = vrot.slane %v1014, 4
        %v1017 = vrot.slane %v895, 5
        %v1018 = vsel %vm976, %v1016, %v1017
        %v1019 = vrot.slane %v896, 5
        %v1020 = vrot.slane %v1019, 4
        %v1021 = vrot.slane %v897, 5
        %v1022 = vsel %vm976, %v1020, %v1021
        %v1023 = vrot.slane %v1021, 4
        %v1024 = vrot.slane %v898, 5
        %v1025 = vsel %vm976, %v1023, %v1024
        %v1026 = vrot.slane %v899, 5
        %v1027 = vrot.slane %v1026, 4
        %v1028 = vrot.slane %v900, 5
        %v1029 = vsel %vm976, %v1027, %v1028
        %v1030 = vrot.slane %v1028, 4
        %v1031 = vrot.slane %v901, 5
        %v1032 = vsel %vm976, %v1030, %v1031
        %v1033 = vrot.slane %v902, 5
        %v1034 = vrot.slane %v1033, 4
        %v1035 = vrot.slane %v903, 5
        %v1036 = vsel %vm976, %v1034, %v1035
        %v1037 = vrot.slane %v1035, 4
        %v1038 = vrot.slane %v904, 5
        %v1039 = vsel %vm976, %v1037, %v1038
        %v1040 = vrot.slane %v905, 5
        %v1041 = vrot.slane %v1040, 4
        %v1042 = vrot.slane %v906, 5
        %v1043 = vsel %vm976, %v1041, %v1042
        %v1044 = vrot.slane %v1042, 4
        %v1045 = vrot.slane %v907, 5
        %v1046 = vsel %vm976, %v1044, %v1045
        %v1047 = vrot.slane %v908, 5
        %v1048 = vrot.slane %v1047, 4
        %v1049 = vrot.slane %v909, 5
        %v1050 = vsel %vm976, %v1048, %v1049
        %v1051 = vrot.slane %v1049, 4
        %v1052 = vrot.slane %v910, 5
        %v1053 = vsel %vm976, %v1051, %v1052
        %v1054 = vrot.slane %v911, 5
        %v1055 = vrot.slane %v1054, 4
        %v1056 = vrot.slane %v912, 5
        %v1057 = vsel %vm976, %v1055, %v1056
        %v1058 = vrot.slane %v1056, 4
        %v1059 = vrot.slane %v913, 5
        %v1060 = vsel %vm976, %v1058, %v1059
        %v1061 = vrot.slane %v914, 5
        %v1062 = vrot.slane %v1061, 4
        %v1063 = vrot.slane %v915, 5
        %v1064 = vsel %vm976, %v1062, %v1063
        %v1065 = vrot.slane %v1063, 4
        %v1066 = vrot.slane %v916, 5
        %v1067 = vsel %vm976, %v1065, %v1066
        %v1068 = vrot.slane %v917, 5
        %v1069 = vrot.slane %v1068, 4
        %v1070 = vrot.slane %v918, 5
        %v1071 = vsel %vm976, %v1069, %v1070
        %v1072 = vrot.slane %v1070, 4
        %v1073 = vrot.slane %v919, 5
        %v1074 = vsel %vm976, %v1072, %v1073
        %v1075 = vrot.slane %v920, 5
        %v1076 = vrot.slane %v1075, 4
        %v1077 = vrot.slane %v921, 5
        %v1078 = vsel %vm976, %v1076, %v1077
        %v1079 = vrot.slane %v1077, 4
        %v1080 = vrot.slane %v922, 5
        %v1081 = vsel %vm976, %v1079, %v1080
        %v1082 = vrot.slane %v923, 5
        %v1083 = vrot.slane %v1082, 4
        %v1084 = vrot.slane %v924, 5
        %v1085 = vsel %vm976, %v1083, %v1084
        %v1086 = vrot.slane %v1084, 4
        %v1087 = vrot.slane %v925, 5
        %v1088 = vsel %vm976, %v1086, %v1087
        %1089 = vrot.lane.b32.xlu0 %v980, 8
        %v1090 = vpop.permute.xlu0 %1089
        %1091 = vrot.lane.b32.xlu0 %v983, 8
        %v1092 = vpop.permute.xlu0 %1091
        %1093 = vrot.lane.b32.xlu0 %v987, 8
        %v1094 = vpop.permute.xlu0 %1093
        %1095 = vrot.lane.b32.xlu0 %v990, 8
        %v1096 = vpop.permute.xlu0 %1095
        %1097 = vrot.lane.b32.xlu0 %v994, 8
        %v1098 = vpop.permute.xlu0 %1097
        %1099 = vrot.lane.b32.xlu0 %v997, 8
        %v1100 = vpop.permute.xlu0 %1099
        %1101 = vrot.lane.b32.xlu0 %v1001, 8
        %v1102 = vpop.permute.xlu0 %1101
        %1103 = vrot.lane.b32.xlu0 %v1004, 8
        %v1104 = vpop.permute.xlu0 %1103
        %1105 = vrot.lane.b32.xlu0 %v1008, 8
        %v1106 = vpop.permute.xlu0 %1105
        %1107 = vrot.lane.b32.xlu0 %v1011, 8
        %v1108 = vpop.permute.xlu0 %1107
        %1109 = vrot.lane.b32.xlu0 %v1015, 8
        %v1110 = vpop.permute.xlu0 %1109
        %1111 = vrot.lane.b32.xlu0 %v1018, 8
        %v1112 = vpop.permute.xlu0 %1111
        %1113 = vrot.lane.b32.xlu0 %v1022, 8
        %v1114 = vpop.permute.xlu0 %1113
        %1115 = vrot.lane.b32.xlu0 %v1025, 8
        %v1116 = vpop.permute.xlu0 %1115
        %1117 = vrot.lane.b32.xlu0 %v1029, 8
        %v1118 = vpop.permute.xlu0 %1117
        %1119 = vrot.lane.b32.xlu0 %v1032, 8
        %v1120 = vpop.permute.xlu0 %1119
        %1121 = vrot.lane.b32.xlu0 %v1036, 8
        %v1122 = vpop.permute.xlu0 %1121
        %1123 = vrot.lane.b32.xlu0 %v1039, 8
        %v1124 = vpop.permute.xlu0 %1123
        %1125 = vrot.lane.b32.xlu0 %v1043, 8
        %v1126 = vpop.permute.xlu0 %1125
        %1127 = vrot.lane.b32.xlu0 %v1046, 8
        %v1128 = vpop.permute.xlu0 %1127
        %1129 = vrot.lane.b32.xlu0 %v1050, 8
        %v1130 = vpop.permute.xlu0 %1129
        %1131 = vrot.lane.b32.xlu0 %v1053, 8
        %v1132 = vpop.permute.xlu0 %1131
        %1133 = vrot.lane.b32.xlu0 %v1057, 8
        %v1134 = vpop.permute.xlu0 %1133
        %1135 = vrot.lane.b32.xlu0 %v1060, 8
        %v1136 = vpop.permute.xlu0 %1135
        %1137 = vrot.lane.b32.xlu0 %v1064, 8
        %v1138 = vpop.permute.xlu0 %1137
        %1139 = vrot.lane.b32.xlu0 %v1067, 8
        %v1140 = vpop.permute.xlu0 %1139
        %1141 = vrot.lane.b32.xlu0 %v1071, 8
        %v1142 = vpop.permute.xlu0 %1141
        %1143 = vrot.lane.b32.xlu0 %v1074, 8
        %v1144 = vpop.permute.xlu0 %1143
        %1145 = vrot.lane.b32.xlu0 %v1078, 8
        %v1146 = vpop.permute.xlu0 %1145
        %1147 = vrot.lane.b32.xlu0 %v1081, 8
        %v1148 = vpop.permute.xlu0 %1147
        %1149 = vrot.lane.b32.xlu0 %v1085, 8
        %v1150 = vpop.permute.xlu0 %1149
        %1151 = vrot.lane.b32.xlu0 %v1088, 8
        %v1152 = vpop.permute.xlu0 %1151
        %vm1185 = vcmask 93248
        %1186 = vst.msk [vmem:[#allocation2] sm:$0xf] %vm1185, %v1090
        %1187 = vst.msk [vmem:[#allocation2 + $0x4] sm:$0xf] %vm1185, %v1092
        %1188 = vst.msk [vmem:[#allocation2 + $0x8] sm:$0xf] %vm1185, %v1094
        %1189 = vst.msk [vmem:[#allocation2 + $0xc] sm:$0xf] %vm1185, %v1096
        %1190 = vst.msk [vmem:[#allocation2 + $0x10] sm:$0xf] %vm1185, %v1098
        %1191 = vst.msk [vmem:[#allocation2 + $0x14] sm:$0xf] %vm1185, %v1100
        %1192 = vst.msk [vmem:[#allocation2 + $0x18] sm:$0xf] %vm1185, %v1102
        %1193 = vst.msk [vmem:[#allocation2 + $0x1c] sm:$0xf] %vm1185, %v1104
        %1194 = vst.msk [vmem:[#allocation2 + $0x20] sm:$0xf] %vm1185, %v1106
        %1195 = vst.msk [vmem:[#allocation2 + $0x24] sm:$0xf] %vm1185, %v1108
        %1196 = vst.msk [vmem:[#allocation2 + $0x28] sm:$0xf] %vm1185, %v1110
        %1197 = vst.msk [vmem:[#allocation2 + $0x2c] sm:$0xf] %vm1185, %v1112
        %1198 = vst.msk [vmem:[#allocation2 + $0x30] sm:$0xf] %vm1185, %v1114
        %1199 = vst.msk [vmem:[#allocation2 + $0x34] sm:$0xf] %vm1185, %v1116
        %1200 = vst.msk [vmem:[#allocation2 + $0x38] sm:$0xf] %vm1185, %v1118
        %1201 = vst.msk [vmem:[#allocation2 + $0x3c] sm:$0xf] %vm1185, %v1120
        %1202 = vst.msk [vmem:[#allocation2 + $0x40] sm:$0xf] %vm1185, %v1122
        %1203 = vst.msk [vmem:[#allocation2 + $0x44] sm:$0xf] %vm1185, %v1124
        %1204 = vst.msk [vmem:[#allocation2 + $0x48] sm:$0xf] %vm1185, %v1126
        %1205 = vst.msk [vmem:[#allocation2 + $0x4c] sm:$0xf] %vm1185, %v1128
        %1206 = vst.msk [vmem:[#allocation2 + $0x50] sm:$0xf] %vm1185, %v1130
        %1207 = vst.msk [vmem:[#allocation2 + $0x54] sm:$0xf] %vm1185, %v1132
        %1208 = vst.msk [vmem:[#allocation2 + $0x58] sm:$0xf] %vm1185, %v1134
        %1209 = vst.msk [vmem:[#allocation2 + $0x5c] sm:$0xf] %vm1185, %v1136
        %1210 = vst.msk [vmem:[#allocation2 + $0x60] sm:$0xf] %vm1185, %v1138
        %1211 = vst.msk [vmem:[#allocation2 + $0x64] sm:$0xf] %vm1185, %v1140
        %1212 = vst.msk [vmem:[#allocation2 + $0x68] sm:$0xf] %vm1185, %v1142
        %1213 = vst.msk [vmem:[#allocation2 + $0x6c] sm:$0xf] %vm1185, %v1144
        %1214 = vst.msk [vmem:[#allocation2 + $0x70] sm:$0xf] %vm1185, %v1146
        %1215 = vst.msk [vmem:[#allocation2 + $0x74] sm:$0xf] %vm1185, %v1148
        %1216 = vst.msk [vmem:[#allocation2 + $0x78] sm:$0xf] %vm1185, %v1150
        %1217 = vst.msk [vmem:[#allocation2 + $0x7c] sm:$0xf] %vm1185, %v1152
        %s1218 = sadd.s32 %s241, 1
        %s1219 = smul.u32 %s1218, 3
        %s1220 = smul.addr %s1219, 4
        %s1221 = scalar_lea.vmem %s219, %s1220
        %v1222 = vld [vmem:[%s1221] sm:$0xf]
        %v1223 = vld [vmem:[%s1221 + $0x4] sm:$0xf]
        %v1224 = vld [vmem:[%s1221 + $0xc] sm:$0xf]
        %v1225 = vld [vmem:[%s1221 + $0x10] sm:$0xf]
        %v1226 = vld [vmem:[%s1221 + $0x18] sm:$0xf]
        %v1227 = vld [vmem:[%s1221 + $0x1c] sm:$0xf]
        %v1228 = vld [vmem:[%s1221 + $0x24] sm:$0xf]
        %v1229 = vld [vmem:[%s1221 + $0x28] sm:$0xf]
        %v1230 = vld [vmem:[%s1221 + $0x30] sm:$0xf]
        %v1231 = vld [vmem:[%s1221 + $0x34] sm:$0xf]
        %v1232 = vld [vmem:[%s1221 + $0x3c] sm:$0xf]
        %v1233 = vld [vmem:[%s1221 + $0x40] sm:$0xf]
        %v1234 = vld [vmem:[%s1221 + $0x48] sm:$0xf]
        %v1235 = vld [vmem:[%s1221 + $0x4c] sm:$0xf]
        %v1236 = vld [vmem:[%s1221 + $0x54] sm:$0xf]
        %v1237 = vld [vmem:[%s1221 + $0x58] sm:$0xf]
        %v1238 = vld [vmem:[%s1221 + $0x60] sm:$0xf]
        %v1239 = vld [vmem:[%s1221 + $0x64] sm:$0xf]
        %v1240 = vld [vmem:[%s1221 + $0x6c] sm:$0xf]
        %v1241 = vld [vmem:[%s1221 + $0x70] sm:$0xf]
        %v1242 = vld [vmem:[%s1221 + $0x78] sm:$0xf]
        %v1243 = vld [vmem:[%s1221 + $0x7c] sm:$0xf]
        %v1244 = vld [vmem:[%s1221 + $0x84] sm:$0xf]
        %v1245 = vld [vmem:[%s1221 + $0x88] sm:$0xf]
        %v1246 = vld [vmem:[%s1221 + $0x90] sm:$0xf]
        %v1247 = vld [vmem:[%s1221 + $0x94] sm:$0xf]
        %v1248 = vld [vmem:[%s1221 + $0x9c] sm:$0xf]
        %v1249 = vld [vmem:[%s1221 + $0xa0] sm:$0xf]
        %v1250 = vld [vmem:[%s1221 + $0xa8] sm:$0xf]
        %v1251 = vld [vmem:[%s1221 + $0xac] sm:$0xf]
        %v1252 = vld [vmem:[%s1221 + $0xb4] sm:$0xf]
        %v1253 = vld [vmem:[%s1221 + $0xb8] sm:$0xf]
        %1286 = vrot.lane.b32.xlu0 %v1222, 12
        %v1287 = vpop.permute.xlu0 %1286
        %1288 = vrot.lane.b32.xlu0 %v1223, 12
        %v1289 = vpop.permute.xlu0 %1288
        %1290 = vrot.lane.b32.xlu0 %v1224, 12
        %v1291 = vpop.permute.xlu0 %1290
        %1292 = vrot.lane.b32.xlu0 %v1225, 12
        %v1293 = vpop.permute.xlu0 %1292
        %1294 = vrot.lane.b32.xlu0 %v1226, 12
        %v1295 = vpop.permute.xlu0 %1294
        %1296 = vrot.lane.b32.xlu0 %v1227, 12
        %v1297 = vpop.permute.xlu0 %1296
        %1298 = vrot.lane.b32.xlu0 %v1228, 12
        %v1299 = vpop.permute.xlu0 %1298
        %1300 = vrot.lane.b32.xlu0 %v1229, 12
        %v1301 = vpop.permute.xlu0 %1300
        %1302 = vrot.lane.b32.xlu0 %v1230, 12
        %v1303 = vpop.permute.xlu0 %1302
        %1304 = vrot.lane.b32.xlu0 %v1231, 12
        %v1305 = vpop.permute.xlu0 %1304
        %1306 = vrot.lane.b32.xlu0 %v1232, 12
        %v1307 = vpop.permute.xlu0 %1306
        %1308 = vrot.lane.b32.xlu0 %v1233, 12
        %v1309 = vpop.permute.xlu0 %1308
        %1310 = vrot.lane.b32.xlu0 %v1234, 12
        %v1311 = vpop.permute.xlu0 %1310
        %1312 = vrot.lane.b32.xlu0 %v1235, 12
        %v1313 = vpop.permute.xlu0 %1312
        %1314 = vrot.lane.b32.xlu0 %v1236, 12
        %v1315 = vpop.permute.xlu0 %1314
        %1316 = vrot.lane.b32.xlu0 %v1237, 12
        %v1317 = vpop.permute.xlu0 %1316
        %1318 = vrot.lane.b32.xlu0 %v1238, 12
        %v1319 = vpop.permute.xlu0 %1318
        %1320 = vrot.lane.b32.xlu0 %v1239, 12
        %v1321 = vpop.permute.xlu0 %1320
        %1322 = vrot.lane.b32.xlu0 %v1240, 12
        %v1323 = vpop.permute.xlu0 %1322
        %1324 = vrot.lane.b32.xlu0 %v1241, 12
        %v1325 = vpop.permute.xlu0 %1324
        %1326 = vrot.lane.b32.xlu0 %v1242, 12
        %v1327 = vpop.permute.xlu0 %1326
        %1328 = vrot.lane.b32.xlu0 %v1243, 12
        %v1329 = vpop.permute.xlu0 %1328
        %1330 = vrot.lane.b32.xlu0 %v1244, 12
        %v1331 = vpop.permute.xlu0 %1330
        %1332 = vrot.lane.b32.xlu0 %v1245, 12
        %v1333 = vpop.permute.xlu0 %1332
        %1334 = vrot.lane.b32.xlu0 %v1246, 12
        %v1335 = vpop.permute.xlu0 %1334
        %1336 = vrot.lane.b32.xlu0 %v1247, 12
        %v1337 = vpop.permute.xlu0 %1336
        %1338 = vrot.lane.b32.xlu0 %v1248, 12
        %v1339 = vpop.permute.xlu0 %1338
        %1340 = vrot.lane.b32.xlu0 %v1249, 12
        %v1341 = vpop.permute.xlu0 %1340
        %1342 = vrot.lane.b32.xlu0 %v1250, 12
        %v1343 = vpop.permute.xlu0 %1342
        %1344 = vrot.lane.b32.xlu0 %v1251, 12
        %v1345 = vpop.permute.xlu0 %1344
        %1346 = vrot.lane.b32.xlu0 %v1252, 12
        %v1347 = vpop.permute.xlu0 %1346
        %1348 = vrot.lane.b32.xlu0 %v1253, 12
        %v1349 = vpop.permute.xlu0 %1348
        %vm1382 = vcmask 126048
        %1383 = vst.msk [vmem:[#allocation2] sm:$0xf] %vm1382, %v1287
        %1384 = vst.msk [vmem:[#allocation2 + $0x4] sm:$0xf] %vm1382, %v1289
        %1385 = vst.msk [vmem:[#allocation2 + $0x8] sm:$0xf] %vm1382, %v1291
        %1386 = vst.msk [vmem:[#allocation2 + $0xc] sm:$0xf] %vm1382, %v1293
        %1387 = vst.msk [vmem:[#allocation2 + $0x10] sm:$0xf] %vm1382, %v1295
        %1388 = vst.msk [vmem:[#allocation2 + $0x14] sm:$0xf] %vm1382, %v1297
        %1389 = vst.msk [vmem:[#allocation2 + $0x18] sm:$0xf] %vm1382, %v1299
        %1390 = vst.msk [vmem:[#allocation2 + $0x1c] sm:$0xf] %vm1382, %v1301
        %1391 = vst.msk [vmem:[#allocation2 + $0x20] sm:$0xf] %vm1382, %v1303
        %1392 = vst.msk [vmem:[#allocation2 + $0x24] sm:$0xf] %vm1382, %v1305
        %1393 = vst.msk [vmem:[#allocation2 + $0x28] sm:$0xf] %vm1382, %v1307
        %1394 = vst.msk [vmem:[#allocation2 + $0x2c] sm:$0xf] %vm1382, %v1309
        %1395 = vst.msk [vmem:[#allocation2 + $0x30] sm:$0xf] %vm1382, %v1311
        %1396 = vst.msk [vmem:[#allocation2 + $0x34] sm:$0xf] %vm1382, %v1313
        %1397 = vst.msk [vmem:[#allocation2 + $0x38] sm:$0xf] %vm1382, %v1315
        %1398 = vst.msk [vmem:[#allocation2 + $0x3c] sm:$0xf] %vm1382, %v1317
        %1399 = vst.msk [vmem:[#allocation2 + $0x40] sm:$0xf] %vm1382, %v1319
        %1400 = vst.msk [vmem:[#allocation2 + $0x44] sm:$0xf] %vm1382, %v1321
        %1401 = vst.msk [vmem:[#allocation2 + $0x48] sm:$0xf] %vm1382, %v1323
        %1402 = vst.msk [vmem:[#allocation2 + $0x4c] sm:$0xf] %vm1382, %v1325
        %1403 = vst.msk [vmem:[#allocation2 + $0x50] sm:$0xf] %vm1382, %v1327
        %1404 = vst.msk [vmem:[#allocation2 + $0x54] sm:$0xf] %vm1382, %v1329
        %1405 = vst.msk [vmem:[#allocation2 + $0x58] sm:$0xf] %vm1382, %v1331
        %1406 = vst.msk [vmem:[#allocation2 + $0x5c] sm:$0xf] %vm1382, %v1333
        %1407 = vst.msk [vmem:[#allocation2 + $0x60] sm:$0xf] %vm1382, %v1335
        %1408 = vst.msk [vmem:[#allocation2 + $0x64] sm:$0xf] %vm1382, %v1337
        %1409 = vst.msk [vmem:[#allocation2 + $0x68] sm:$0xf] %vm1382, %v1339
        %1410 = vst.msk [vmem:[#allocation2 + $0x6c] sm:$0xf] %vm1382, %v1341
        %1411 = vst.msk [vmem:[#allocation2 + $0x70] sm:$0xf] %vm1382, %v1343
        %1412 = vst.msk [vmem:[#allocation2 + $0x74] sm:$0xf] %vm1382, %v1345
        %1413 = vst.msk [vmem:[#allocation2 + $0x78] sm:$0xf] %vm1382, %v1347
        %1414 = vst.msk [vmem:[#allocation2 + $0x7c] sm:$0xf] %vm1382, %v1349
        %v1415 = vld [vmem:[%s1221] sm:$0xf]
        %v1416 = vld [vmem:[%s1221 + $0x4] sm:$0xf]
        %v1417 = vld [vmem:[%s1221 + $0x8] sm:$0x1]
        %v1418 = vld [vmem:[%s1221 + $0xc] sm:$0xf]
        %v1419 = vld [vmem:[%s1221 + $0x10] sm:$0xf]
        %v1420 = vld [vmem:[%s1221 + $0x14] sm:$0x1]
        %v1421 = vld [vmem:[%s1221 + $0x18] sm:$0xf]
        %v1422 = vld [vmem:[%s1221 + $0x1c] sm:$0xf]
        %v1423 = vld [vmem:[%s1221 + $0x20] sm:$0x1]
        %v1424 = vld [vmem:[%s1221 + $0x24] sm:$0xf]
        %v1425 = vld [vmem:[%s1221 + $0x28] sm:$0xf]
        %v1426 = vld [vmem:[%s1221 + $0x2c] sm:$0x1]
        %v1427 = vld [vmem:[%s1221 + $0x30] sm:$0xf]
        %v1428 = vld [vmem:[%s1221 + $0x34] sm:$0xf]
        %v1429 = vld [vmem:[%s1221 + $0x38] sm:$0x1]
        %v1430 = vld [vmem:[%s1221 + $0x3c] sm:$0xf]
        %v1431 = vld [vmem:[%s1221 + $0x40] sm:$0xf]
        %v1432 = vld [vmem:[%s1221 + $0x44] sm:$0x1]
        %v1433 = vld [vmem:[%s1221 + $0x48] sm:$0xf]
        %v1434 = vld [vmem:[%s1221 + $0x4c] sm:$0xf]
        %v1435 = vld [vmem:[%s1221 + $0x50] sm:$0x1]
        %v1436 = vld [vmem:[%s1221 + $0x54] sm:$0xf]
        %v1437 = vld [vmem:[%s1221 + $0x58] sm:$0xf]
        %v1438 = vld [vmem:[%s1221 + $0x5c] sm:$0x1]
        %v1439 = vld [vmem:[%s1221 + $0x60] sm:$0xf]
        %v1440 = vld [vmem:[%s1221 + $0x64] sm:$0xf]
        %v1441 = vld [vmem:[%s1221 + $0x68] sm:$0x1]
        %v1442 = vld [vmem:[%s1221 + $0x6c] sm:$0xf]
        %v1443 = vld [vmem:[%s1221 + $0x70] sm:$0xf]
        %v1444 = vld [vmem:[%s1221 + $0x74] sm:$0x1]
        %v1445 = vld [vmem:[%s1221 + $0x78] sm:$0xf]
        %v1446 = vld [vmem:[%s1221 + $0x7c] sm:$0xf]
        %v1447 = vld [vmem:[%s1221 + $0x80] sm:$0x1]
        %v1448 = vld [vmem:[%s1221 + $0x84] sm:$0xf]
        %v1449 = vld [vmem:[%s1221 + $0x88] sm:$0xf]
        %v1450 = vld [vmem:[%s1221 + $0x8c] sm:$0x1]
        %v1451 = vld [vmem:[%s1221 + $0x90] sm:$0xf]
        %v1452 = vld [vmem:[%s1221 + $0x94] sm:$0xf]
        %v1453 = vld [vmem:[%s1221 + $0x98] sm:$0x1]
        %v1454 = vld [vmem:[%s1221 + $0x9c] sm:$0xf]
        %v1455 = vld [vmem:[%s1221 + $0xa0] sm:$0xf]
        %v1456 = vld [vmem:[%s1221 + $0xa4] sm:$0x1]
        %v1457 = vld [vmem:[%s1221 + $0xa8] sm:$0xf]
        %v1458 = vld [vmem:[%s1221 + $0xac] sm:$0xf]
        %v1459 = vld [vmem:[%s1221 + $0xb0] sm:$0x1]
        %v1460 = vld [vmem:[%s1221 + $0xb4] sm:$0xf]
        %v1461 = vld [vmem:[%s1221 + $0xb8] sm:$0xf]
        %v1462 = vld [vmem:[%s1221 + $0xbc] sm:$0x1]
        %v1464 = vshrl.u32 %v1415, 16
        %v1466 = vrot.slane %v1464, 4
        %v1467 = vshll.u32 %v1415, 16
        %v1469 = vrot.slane %v1467, 5
        %v1470 = vor.u32 %v1466, %v1469
        %v1471 = vrot.slane %v1470, 4
        %v1473 = vshll.u32 %v1416, 16
        %v1475 = vrot.slane %v1473, 5
        %v1476 = vsel %vm364, %v1471, %v1475
        %v1477 = vshrl.u32 %v1416, 16
        %v1479 = vrot.slane %v1477, 4
        %v1480 = vor.u32 %v1479, %v1475
        %v1481 = vrot.slane %v1480, 4
        %v1483 = vshll.u32 %v1417, 16
        %v1485 = vrot.slane %v1483, 5
        %v1486 = vsel %vm364, %v1481, %v1485
        %v1488 = vshrl.u32 %v1418, 16
        %v1490 = vrot.slane %v1488, 4
        %v1491 = vshll.u32 %v1418, 16
        %v1493 = vrot.slane %v1491, 5
        %v1494 = vor.u32 %v1490, %v1493
        %v1495 = vrot.slane %v1494, 4
        %v1497 = vshll.u32 %v1419, 16
        %v1499 = vrot.slane %v1497, 5
        %v1500 = vsel %vm364, %v1495, %v1499
        %v1501 = vshrl.u32 %v1419, 16
        %v1503 = vrot.slane %v1501, 4
        %v1504 = vor.u32 %v1503, %v1499
        %v1505 = vrot.slane %v1504, 4
        %v1507 = vshll.u32 %v1420, 16
        %v1509 = vrot.slane %v1507, 5
        %v1510 = vsel %vm364, %v1505, %v1509
        %v1512 = vshrl.u32 %v1421, 16
        %v1514 = vrot.slane %v1512, 4
        %v1515 = vshll.u32 %v1421, 16
        %v1517 = vrot.slane %v1515, 5
        %v1518 = vor.u32 %v1514, %v1517
        %v1519 = vrot.slane %v1518, 4
        %v1521 = vshll.u32 %v1422, 16
        %v1523 = vrot.slane %v1521, 5
        %v1524 = vsel %vm364, %v1519, %v1523
        %v1525 = vshrl.u32 %v1422, 16
        %v1527 = vrot.slane %v1525, 4
        %v1528 = vor.u32 %v1527, %v1523
        %v1529 = vrot.slane %v1528, 4
        %v1531 = vshll.u32 %v1423, 16
        %v1533 = vrot.slane %v1531, 5
        %v1534 = vsel %vm364, %v1529, %v1533
        %v1536 = vshrl.u32 %v1424, 16
        %v1538 = vrot.slane %v1536, 4
        %v1539 = vshll.u32 %v1424, 16
        %v1541 = vrot.slane %v1539, 5
        %v1542 = vor.u32 %v1538, %v1541
        %v1543 = vrot.slane %v1542, 4
        %v1545 = vshll.u32 %v1425, 16
        %v1547 = vrot.slane %v1545, 5
        %v1548 = vsel %vm364, %v1543, %v1547
        %v1549 = vshrl.u32 %v1425, 16
        %v1551 = vrot.slane %v1549, 4
        %v1552 = vor.u32 %v1551, %v1547
        %v1553 = vrot.slane %v1552, 4
        %v1555 = vshll.u32 %v1426, 16
        %v1557 = vrot.slane %v1555, 5
        %v1558 = vsel %vm364, %v1553, %v1557
        %v1560 = vshrl.u32 %v1427, 16
        %v1562 = vrot.slane %v1560, 4
        %v1563 = vshll.u32 %v1427, 16
        %v1565 = vrot.slane %v1563, 5
        %v1566 = vor.u32 %v1562, %v1565
        %v1567 = vrot.slane %v1566, 4
        %v1569 = vshll.u32 %v1428, 16
        %v1571 = vrot.slane %v1569, 5
        %v1572 = vsel %vm364, %v1567, %v1571
        %v1573 = vshrl.u32 %v1428, 16
        %v1575 = vrot.slane %v1573, 4
        %v1576 = vor.u32 %v1575, %v1571
        %v1577 = vrot.slane %v1576, 4
        %v1579 = vshll.u32 %v1429, 16
        %v1581 = vrot.slane %v1579, 5
        %v1582 = vsel %vm364, %v1577, %v1581
        %v1584 = vshrl.u32 %v1430, 16
        %v1586 = vrot.slane %v1584, 4
        %v1587 = vshll.u32 %v1430, 16
        %v1589 = vrot.slane %v1587, 5
        %v1590 = vor.u32 %v1586, %v1589
        %v1591 = vrot.slane %v1590, 4
        %v1593 = vshll.u32 %v1431, 16
        %v1595 = vrot.slane %v1593, 5
        %v1596 = vsel %vm364, %v1591, %v1595
        %v1597 = vshrl.u32 %v1431, 16
        %v1599 = vrot.slane %v1597, 4
        %v1600 = vor.u32 %v1599, %v1595
        %v1601 = vrot.slane %v1600, 4
        %v1603 = vshll.u32 %v1432, 16
        %v1605 = vrot.slane %v1603, 5
        %v1606 = vsel %vm364, %v1601, %v1605
        %v1608 = vshrl.u32 %v1433, 16
        %v1610 = vrot.slane %v1608, 4
        %v1611 = vshll.u32 %v1433, 16
        %v1613 = vrot.slane %v1611, 5
        %v1614 = vor.u32 %v1610, %v1613
        %v1615 = vrot.slane %v1614, 4
        %v1617 = vshll.u32 %v1434, 16
        %v1619 = vrot.slane %v1617, 5
        %v1620 = vsel %vm364, %v1615, %v1619
        %v1621 = vshrl.u32 %v1434, 16
        %v1623 = vrot.slane %v1621, 4
        %v1624 = vor.u32 %v1623, %v1619
        %v1625 = vrot.slane %v1624, 4
        %v1627 = vshll.u32 %v1435, 16
        %v1629 = vrot.slane %v1627, 5
        %v1630 = vsel %vm364, %v1625, %v1629
        %v1632 = vshrl.u32 %v1436, 16
        %v1634 = vrot.slane %v1632, 4
        %v1635 = vshll.u32 %v1436, 16
        %v1637 = vrot.slane %v1635, 5
        %v1638 = vor.u32 %v1634, %v1637
        %v1639 = vrot.slane %v1638, 4
        %v1641 = vshll.u32 %v1437, 16
        %v1643 = vrot.slane %v1641, 5
        %v1644 = vsel %vm364, %v1639, %v1643
        %v1645 = vshrl.u32 %v1437, 16
        %v1647 = vrot.slane %v1645, 4
        %v1648 = vor.u32 %v1647, %v1643
        %v1649 = vrot.slane %v1648, 4
        %v1651 = vshll.u32 %v1438, 16
        %v1653 = vrot.slane %v1651, 5
        %v1654 = vsel %vm364, %v1649, %v1653
        %v1656 = vshrl.u32 %v1439, 16
        %v1658 = vrot.slane %v1656, 4
        %v1659 = vshll.u32 %v1439, 16
        %v1661 = vrot.slane %v1659, 5
        %v1662 = vor.u32 %v1658, %v1661
        %v1663 = vrot.slane %v1662, 4
        %v1665 = vshll.u32 %v1440, 16
        %v1667 = vrot.slane %v1665, 5
        %v1668 = vsel %vm364, %v1663, %v1667
        %v1669 = vshrl.u32 %v1440, 16
        %v1671 = vrot.slane %v1669, 4
        %v1672 = vor.u32 %v1671, %v1667
        %v1673 = vrot.slane %v1672, 4
        %v1675 = vshll.u32 %v1441, 16
        %v1677 = vrot.slane %v1675, 5
        %v1678 = vsel %vm364, %v1673, %v1677
        %v1680 = vshrl.u32 %v1442, 16
        %v1682 = vrot.slane %v1680, 4
        %v1683 = vshll.u32 %v1442, 16
        %v1685 = vrot.slane %v1683, 5
        %v1686 = vor.u32 %v1682, %v1685
        %v1687 = vrot.slane %v1686, 4
        %v1689 = vshll.u32 %v1443, 16
        %v1691 = vrot.slane %v1689, 5
        %v1692 = vsel %vm364, %v1687, %v1691
        %v1693 = vshrl.u32 %v1443, 16
        %v1695 = vrot.slane %v1693, 4
        %v1696 = vor.u32 %v1695, %v1691
        %v1697 = vrot.slane %v1696, 4
        %v1699 = vshll.u32 %v1444, 16
        %v1701 = vrot.slane %v1699, 5
        %v1702 = vsel %vm364, %v1697, %v1701
        %v1704 = vshrl.u32 %v1445, 16
        %v1706 = vrot.slane %v1704, 4
        %v1707 = vshll.u32 %v1445, 16
        %v1709 = vrot.slane %v1707, 5
        %v1710 = vor.u32 %v1706, %v1709
        %v1711 = vrot.slane %v1710, 4
        %v1713 = vshll.u32 %v1446, 16
        %v1715 = vrot.slane %v1713, 5
        %v1716 = vsel %vm364, %v1711, %v1715
        %v1717 = vshrl.u32 %v1446, 16
        %v1719 = vrot.slane %v1717, 4
        %v1720 = vor.u32 %v1719, %v1715
        %v1721 = vrot.slane %v1720, 4
        %v1723 = vshll.u32 %v1447, 16
        %v1725 = vrot.slane %v1723, 5
        %v1726 = vsel %vm364, %v1721, %v1725
        %v1728 = vshrl.u32 %v1448, 16
        %v1730 = vrot.slane %v1728, 4
        %v1731 = vshll.u32 %v1448, 16
        %v1733 = vrot.slane %v1731, 5
        %v1734 = vor.u32 %v1730, %v1733
        %v1735 = vrot.slane %v1734, 4
        %v1737 = vshll.u32 %v1449, 16
        %v1739 = vrot.slane %v1737, 5
        %v1740 = vsel %vm364, %v1735, %v1739
        %v1741 = vshrl.u32 %v1449, 16
        %v1743 = vrot.slane %v1741, 4
        %v1744 = vor.u32 %v1743, %v1739
        %v1745 = vrot.slane %v1744, 4
        %v1747 = vshll.u32 %v1450, 16
        %v1749 = vrot.slane %v1747, 5
        %v1750 = vsel %vm364, %v1745, %v1749
        %v1752 = vshrl.u32 %v1451, 16
        %v1754 = vrot.slane %v1752, 4
        %v1755 = vshll.u32 %v1451, 16
        %v1757 = vrot.slane %v1755, 5
        %v1758 = vor.u32 %v1754, %v1757
        %v1759 = vrot.slane %v1758, 4
        %v1761 = vshll.u32 %v1452, 16
        %v1763 = vrot.slane %v1761, 5
        %v1764 = vsel %vm364, %v1759, %v1763
        %v1765 = vshrl.u32 %v1452, 16
        %v1767 = vrot.slane %v1765, 4
        %v1768 = vor.u32 %v1767, %v1763
        %v1769 = vrot.slane %v1768, 4
        %v1771 = vshll.u32 %v1453, 16
        %v1773 = vrot.slane %v1771, 5
        %v1774 = vsel %vm364, %v1769, %v1773
        %v1776 = vshrl.u32 %v1454, 16
        %v1778 = vrot.slane %v1776, 4
        %v1779 = vshll.u32 %v1454, 16
        %v1781 = vrot.slane %v1779, 5
        %v1782 = vor.u32 %v1778, %v1781
        %v1783 = vrot.slane %v1782, 4
        %v1785 = vshll.u32 %v1455, 16
        %v1787 = vrot.slane %v1785, 5
        %v1788 = vsel %vm364, %v1783, %v1787
        %v1789 = vshrl.u32 %v1455, 16
        %v1791 = vrot.slane %v1789, 4
        %v1792 = vor.u32 %v1791, %v1787
        %v1793 = vrot.slane %v1792, 4
        %v1795 = vshll.u32 %v1456, 16
        %v1797 = vrot.slane %v1795, 5
        %v1798 = vsel %vm364, %v1793, %v1797
        %v1800 = vshrl.u32 %v1457, 16
        %v1802 = vrot.slane %v1800, 4
        %v1803 = vshll.u32 %v1457, 16
        %v1805 = vrot.slane %v1803, 5
        %v1806 = vor.u32 %v1802, %v1805
        %v1807 = vrot.slane %v1806, 4
        %v1809 = vshll.u32 %v1458, 16
        %v1811 = vrot.slane %v1809, 5
        %v1812 = vsel %vm364, %v1807, %v1811
        %v1813 = vshrl.u32 %v1458, 16
        %v1815 = vrot.slane %v1813, 4
        %v1816 = vor.u32 %v1815, %v1811
        %v1817 = vrot.slane %v1816, 4
        %v1819 = vshll.u32 %v1459, 16
        %v1821 = vrot.slane %v1819, 5
        %v1822 = vsel %vm364, %v1817, %v1821
        %v1824 = vshrl.u32 %v1460, 16
        %v1826 = vrot.slane %v1824, 4
        %v1827 = vshll.u32 %v1460, 16
        %v1829 = vrot.slane %v1827, 5
        %v1830 = vor.u32 %v1826, %v1829
        %v1831 = vrot.slane %v1830, 4
        %v1833 = vshll.u32 %v1461, 16
        %v1835 = vrot.slane %v1833, 5
        %v1836 = vsel %vm364, %v1831, %v1835
        %v1837 = vshrl.u32 %v1461, 16
        %v1839 = vrot.slane %v1837, 4
        %v1840 = vor.u32 %v1839, %v1835
        %v1841 = vrot.slane %v1840, 4
        %v1843 = vshll.u32 %v1462, 16
        %v1845 = vrot.slane %v1843, 5
        %v1846 = vsel %vm364, %v1841, %v1845
        %1847 = vrot.lane.b32.xlu0 %v1476, 16
        %v1848 = vpop.permute.xlu0 %1847
        %1849 = vrot.lane.b32.xlu0 %v1486, 16
        %v1850 = vpop.permute.xlu0 %1849
        %1851 = vrot.lane.b32.xlu0 %v1500, 16
        %v1852 = vpop.permute.xlu0 %1851
        %1853 = vrot.lane.b32.xlu0 %v1510, 16
        %v1854 = vpop.permute.xlu0 %1853
        %1855 = vrot.lane.b32.xlu0 %v1524, 16
        %v1856 = vpop.permute.xlu0 %1855
        %1857 = vrot.lane.b32.xlu0 %v1534, 16
        %v1858 = vpop.permute.xlu0 %1857
        %1859 = vrot.lane.b32.xlu0 %v1548, 16
        %v1860 = vpop.permute.xlu0 %1859
        %1861 = vrot.lane.b32.xlu0 %v1558, 16
        %v1862 = vpop.permute.xlu0 %1861
        %1863 = vrot.lane.b32.xlu0 %v1572, 16
        %v1864 = vpop.permute.xlu0 %1863
        %1865 = vrot.lane.b32.xlu0 %v1582, 16
        %v1866 = vpop.permute.xlu0 %1865
        %1867 = vrot.lane.b32.xlu0 %v1596, 16
        %v1868 = vpop.permute.xlu0 %1867
        %1869 = vrot.lane.b32.xlu0 %v1606, 16
        %v1870 = vpop.permute.xlu0 %1869
        %1871 = vrot.lane.b32.xlu0 %v1620, 16
        %v1872 = vpop.permute.xlu0 %1871
        %1873 = vrot.lane.b32.xlu0 %v1630, 16
        %v1874 = vpop.permute.xlu0 %1873
        %1875 = vrot.lane.b32.xlu0 %v1644, 16
        %v1876 = vpop.permute.xlu0 %1875
        %1877 = vrot.lane.b32.xlu0 %v1654, 16
        %v1878 = vpop.permute.xlu0 %1877
        %1879 = vrot.lane.b32.xlu0 %v1668, 16
        %v1880 = vpop.permute.xlu0 %1879
        %1881 = vrot.lane.b32.xlu0 %v1678, 16
        %v1882 = vpop.permute.xlu0 %1881
        %1883 = vrot.lane.b32.xlu0 %v1692, 16
        %v1884 = vpop.permute.xlu0 %1883
        %1885 = vrot.lane.b32.xlu0 %v1702, 16
        %v1886 = vpop.permute.xlu0 %1885
        %1887 = vrot.lane.b32.xlu0 %v1716, 16
        %v1888 = vpop.permute.xlu0 %1887
        %1889 = vrot.lane.b32.xlu0 %v1726, 16
        %v1890 = vpop.permute.xlu0 %1889
        %1891 = vrot.lane.b32.xlu0 %v1740, 16
        %v1892 = vpop.permute.xlu0 %1891
        %1893 = vrot.lane.b32.xlu0 %v1750, 16
        %v1894 = vpop.permute.xlu0 %1893
        %1895 = vrot.lane.b32.xlu0 %v1764, 16
        %v1896 = vpop.permute.xlu0 %1895
        %1897 = vrot.lane.b32.xlu0 %v1774, 16
        %v1898 = vpop.permute.xlu0 %1897
        %1899 = vrot.lane.b32.xlu0 %v1788, 16
        %v1900 = vpop.permute.xlu0 %1899
        %1901 = vrot.lane.b32.xlu0 %v1798, 16
        %v1902 = vpop.permute.xlu0 %1901
        %1903 = vrot.lane.b32.xlu0 %v1812, 16
        %v1904 = vpop.permute.xlu0 %1903
        %1905 = vrot.lane.b32.xlu0 %v1822, 16
        %v1906 = vpop.permute.xlu0 %1905
        %1907 = vrot.lane.b32.xlu0 %v1836, 16
        %v1908 = vpop.permute.xlu0 %1907
        %1909 = vrot.lane.b32.xlu0 %v1846, 16
        %v1910 = vpop.permute.xlu0 %1909
        %vm1943 = vcmask 158848
        %1944 = vst.msk [vmem:[#allocation2] sm:$0xf] %vm1943, %v1848
        %1945 = vst.msk [vmem:[#allocation2 + $0x4] sm:$0xf] %vm1943, %v1850
        %1946 = vst.msk [vmem:[#allocation2 + $0x8] sm:$0xf] %vm1943, %v1852
        %1947 = vst.msk [vmem:[#allocation2 + $0xc] sm:$0xf] %vm1943, %v1854
        %1948 = vst.msk [vmem:[#allocation2 + $0x10] sm:$0xf] %vm1943, %v1856
        %1949 = vst.msk [vmem:[#allocation2 + $0x14] sm:$0xf] %vm1943, %v1858
        %1950 = vst.msk [vmem:[#allocation2 + $0x18] sm:$0xf] %vm1943, %v1860
        %1951 = vst.msk [vmem:[#allocation2 + $0x1c] sm:$0xf] %vm1943, %v1862
        %1952 = vst.msk [vmem:[#allocation2 + $0x20] sm:$0xf] %vm1943, %v1864
        %1953 = vst.msk [vmem:[#allocation2 + $0x24] sm:$0xf] %vm1943, %v1866
        %1954 = vst.msk [vmem:[#allocation2 + $0x28] sm:$0xf] %vm1943, %v1868
        %1955 = vst.msk [vmem:[#allocation2 + $0x2c] sm:$0xf] %vm1943, %v1870
        %1956 = vst.msk [vmem:[#allocation2 + $0x30] sm:$0xf] %vm1943, %v1872
        %1957 = vst.msk [vmem:[#allocation2 + $0x34] sm:$0xf] %vm1943, %v1874
        %1958 = vst.msk [vmem:[#allocation2 + $0x38] sm:$0xf] %vm1943, %v1876
        %1959 = vst.msk [vmem:[#allocation2 + $0x3c] sm:$0xf] %vm1943, %v1878
        %1960 = vst.msk [vmem:[#allocation2 + $0x40] sm:$0xf] %vm1943, %v1880
        %1961 = vst.msk [vmem:[#allocation2 + $0x44] sm:$0xf] %vm1943, %v1882
        %1962 = vst.msk [vmem:[#allocation2 + $0x48] sm:$0xf] %vm1943, %v1884
        %1963 = vst.msk [vmem:[#allocation2 + $0x4c] sm:$0xf] %vm1943, %v1886
        %1964 = vst.msk [vmem:[#allocation2 + $0x50] sm:$0xf] %vm1943, %v1888
        %1965 = vst.msk [vmem:[#allocation2 + $0x54] sm:$0xf] %vm1943, %v1890
        %1966 = vst.msk [vmem:[#allocation2 + $0x58] sm:$0xf] %vm1943, %v1892
        %1967 = vst.msk [vmem:[#allocation2 + $0x5c] sm:$0xf] %vm1943, %v1894
        %1968 = vst.msk [vmem:[#allocation2 + $0x60] sm:$0xf] %vm1943, %v1896
        %1969 = vst.msk [vmem:[#allocation2 + $0x64] sm:$0xf] %vm1943, %v1898
        %1970 = vst.msk [vmem:[#allocation2 + $0x68] sm:$0xf] %vm1943, %v1900
        %1971 = vst.msk [vmem:[#allocation2 + $0x6c] sm:$0xf] %vm1943, %v1902
        %1972 = vst.msk [vmem:[#allocation2 + $0x70] sm:$0xf] %vm1943, %v1904
        %1973 = vst.msk [vmem:[#allocation2 + $0x74] sm:$0xf] %vm1943, %v1906
        %1974 = vst.msk [vmem:[#allocation2 + $0x78] sm:$0xf] %vm1943, %v1908
        %1975 = vst.msk [vmem:[#allocation2 + $0x7c] sm:$0xf] %vm1943, %v1910
        %v1976 = vld [vmem:[%s1221] sm:$0xe]
        %v1977 = vld [vmem:[%s1221 + $0x4] sm:$0xf]
        %v1978 = vld [vmem:[%s1221 + $0x8] sm:$0x1]
        %v1979 = vld [vmem:[%s1221 + $0xc] sm:$0xe]
        %v1980 = vld [vmem:[%s1221 + $0x10] sm:$0xf]
        %v1981 = vld [vmem:[%s1221 + $0x14] sm:$0x1]
        %v1982 = vld [vmem:[%s1221 + $0x18] sm:$0xe]
        %v1983 = vld [vmem:[%s1221 + $0x1c] sm:$0xf]
        %v1984 = vld [vmem:[%s1221 + $0x20] sm:$0x1]
        %v1985 = vld [vmem:[%s1221 + $0x24] sm:$0xe]
        %v1986 = vld [vmem:[%s1221 + $0x28] sm:$0xf]
        %v1987 = vld [vmem:[%s1221 + $0x2c] sm:$0x1]
        %v1988 = vld [vmem:[%s1221 + $0x30] sm:$0xe]
        %v1989 = vld [vmem:[%s1221 + $0x34] sm:$0xf]
        %v1990 = vld [vmem:[%s1221 + $0x38] sm:$0x1]
        %v1991 = vld [vmem:[%s1221 + $0x3c] sm:$0xe]
        %v1992 = vld [vmem:[%s1221 + $0x40] sm:$0xf]
        %v1993 = vld [vmem:[%s1221 + $0x44] sm:$0x1]
        %v1994 = vld [vmem:[%s1221 + $0x48] sm:$0xe]
        %v1995 = vld [vmem:[%s1221 + $0x4c] sm:$0xf]
        %v1996 = vld [vmem:[%s1221 + $0x50] sm:$0x1]
        %v1997 = vld [vmem:[%s1221 + $0x54] sm:$0xe]
        %v1998 = vld [vmem:[%s1221 + $0x58] sm:$0xf]
        %v1999 = vld [vmem:[%s1221 + $0x5c] sm:$0x1]
        %v2000 = vld [vmem:[%s1221 + $0x60] sm:$0xe]
        %v2001 = vld [vmem:[%s1221 + $0x64] sm:$0xf]
        %v2002 = vld [vmem:[%s1221 + $0x68] sm:$0x1]
        %v2003 = vld [vmem:[%s1221 + $0x6c] sm:$0xe]
        %v2004 = vld [vmem:[%s1221 + $0x70] sm:$0xf]
        %v2005 = vld [vmem:[%s1221 + $0x74] sm:$0x1]
        %v2006 = vld [vmem:[%s1221 + $0x78] sm:$0xe]
        %v2007 = vld [vmem:[%s1221 + $0x7c] sm:$0xf]
        %v2008 = vld [vmem:[%s1221 + $0x80] sm:$0x1]
        %v2009 = vld [vmem:[%s1221 + $0x84] sm:$0xe]
        %v2010 = vld [vmem:[%s1221 + $0x88] sm:$0xf]
        %v2011 = vld [vmem:[%s1221 + $0x8c] sm:$0x1]
        %v2012 = vld [vmem:[%s1221 + $0x90] sm:$0xe]
        %v2013 = vld [vmem:[%s1221 + $0x94] sm:$0xf]
        %v2014 = vld [vmem:[%s1221 + $0x98] sm:$0x1]
        %v2015 = vld [vmem:[%s1221 + $0x9c] sm:$0xe]
        %v2016 = vld [vmem:[%s1221 + $0xa0] sm:$0xf]
        %v2017 = vld [vmem:[%s1221 + $0xa4] sm:$0x1]
        %v2018 = vld [vmem:[%s1221 + $0xa8] sm:$0xe]
        %v2019 = vld [vmem:[%s1221 + $0xac] sm:$0xf]
        %v2020 = vld [vmem:[%s1221 + $0xb0] sm:$0x1]
        %v2021 = vld [vmem:[%s1221 + $0xb4] sm:$0xe]
        %v2022 = vld [vmem:[%s1221 + $0xb8] sm:$0xf]
        %v2023 = vld [vmem:[%s1221 + $0xbc] sm:$0x1]
        %v2072 = vrot.slane %v1976, 5
        %v2073 = vrot.slane %v2072, 4
        %v2074 = vrot.slane %v1977, 5
        %v2075 = vsel %vm976, %v2073, %v2074
        %v2076 = vrot.slane %v2074, 4
        %v2077 = vrot.slane %v1978, 5
        %v2078 = vsel %vm976, %v2076, %v2077
        %v2079 = vrot.slane %v1979, 5
        %v2080 = vrot.slane %v2079, 4
        %v2081 = vrot.slane %v1980, 5
        %v2082 = vsel %vm976, %v2080, %v2081
        %v2083 = vrot.slane %v2081, 4
        %v2084 = vrot.slane %v1981, 5
        %v2085 = vsel %vm976, %v2083, %v2084
        %v2086 = vrot.slane %v1982, 5
        %v2087 = vrot.slane %v2086, 4
        %v2088 = vrot.slane %v1983, 5
        %v2089 = vsel %vm976, %v2087, %v2088
        %v2090 = vrot.slane %v2088, 4
        %v2091 = vrot.slane %v1984, 5
        %v2092 = vsel %vm976, %v2090, %v2091
        %v2093 = vrot.slane %v1985, 5
        %v2094 = vrot.slane %v2093, 4
        %v2095 = vrot.slane %v1986, 5
        %v2096 = vsel %vm976, %v2094, %v2095
        %v2097 = vrot.slane %v2095, 4
        %v2098 = vrot.slane %v1987, 5
        %v2099 = vsel %vm976, %v2097, %v2098
        %v2100 = vrot.slane %v1988, 5
        %v2101 = vrot.slane %v2100, 4
        %v2102 = vrot.slane %v1989, 5
        %v2103 = vsel %vm976, %v2101, %v2102
        %v2104 = vrot.slane %v2102, 4
        %v2105 = vrot.slane %v1990, 5
        %v2106 = vsel %vm976, %v2104, %v2105
        %v2107 = vrot.slane %v1991, 5
        %v2108 = vrot.slane %v2107, 4
        %v2109 = vrot.slane %v1992, 5
        %v2110 = vsel %vm976, %v2108, %v2109
        %v2111 = vrot.slane %v2109, 4
        %v2112 = vrot.slane %v1993, 5
        %v2113 = vsel %vm976, %v2111, %v2112
        %v2114 = vrot.slane %v1994, 5
        %v2115 = vrot.slane %v2114, 4
        %v2116 = vrot.slane %v1995, 5
        %v2117 = vsel %vm976, %v2115, %v2116
        %v2118 = vrot.slane %v2116, 4
        %v2119 = vrot.slane %v1996, 5
        %v2120 = vsel %vm976, %v2118, %v2119
        %v2121 = vrot.slane %v1997, 5
        %v2122 = vrot.slane %v2121, 4
        %v2123 = vrot.slane %v1998, 5
        %v2124 = vsel %vm976, %v2122, %v2123
        %v2125 = vrot.slane %v2123, 4
        %v2126 = vrot.slane %v1999, 5
        %v2127 = vsel %vm976, %v2125, %v2126
        %v2128 = vrot.slane %v2000, 5
        %v2129 = vrot.slane %v2128, 4
        %v2130 = vrot.slane %v2001, 5
        %v2131 = vsel %vm976, %v2129, %v2130
        %v2132 = vrot.slane %v2130, 4
        %v2133 = vrot.slane %v2002, 5
        %v2134 = vsel %vm976, %v2132, %v2133
        %v2135 = vrot.slane %v2003, 5
        %v2136 = vrot.slane %v2135, 4
        %v2137 = vrot.slane %v2004, 5
        %v2138 = vsel %vm976, %v2136, %v2137
        %v2139 = vrot.slane %v2137, 4
        %v2140 = vrot.slane %v2005, 5
        %v2141 = vsel %vm976, %v2139, %v2140
        %v2142 = vrot.slane %v2006, 5
        %v2143 = vrot.slane %v2142, 4
        %v2144 = vrot.slane %v2007, 5
        %v2145 = vsel %vm976, %v2143, %v2144
        %v2146 = vrot.slane %v2144, 4
        %v2147 = vrot.slane %v2008, 5
        %v2148 = vsel %vm976, %v2146, %v2147
        %v2149 = vrot.slane %v2009, 5
        %v2150 = vrot.slane %v2149, 4
        %v2151 = vrot.slane %v2010, 5
        %v2152 = vsel %vm976, %v2150, %v2151
        %v2153 = vrot.slane %v2151, 4
        %v2154 = vrot.slane %v2011, 5
        %v2155 = vsel %vm976, %v2153, %v2154
        %v2156 = vrot.slane %v2012, 5
        %v2157 = vrot.slane %v2156, 4
        %v2158 = vrot.slane %v2013, 5
        %v2159 = vsel %vm976, %v2157, %v2158
        %v2160 = vrot.slane %v2158, 4
        %v2161 = vrot.slane %v2014, 5
        %v2162 = vsel %vm976, %v2160, %v2161
        %v2163 = vrot.slane %v2015, 5
        %v2164 = vrot.slane %v2163, 4
        %v2165 = vrot.slane %v2016, 5
        %v2166 = vsel %vm976, %v2164, %v2165
        %v2167 = vrot.slane %v2165, 4
        %v2168 = vrot.slane %v2017, 5
        %v2169 = vsel %vm976, %v2167, %v2168
        %v2170 = vrot.slane %v2018, 5
        %v2171 = vrot.slane %v2170, 4
        %v2172 = vrot.slane %v2019, 5
        %v2173 = vsel %vm976, %v2171, %v2172
        %v2174 = vrot.slane %v2172, 4
        %v2175 = vrot.slane %v2020, 5
        %v2176 = vsel %vm976, %v2174, %v2175
        %v2177 = vrot.slane %v2021, 5
        %v2178 = vrot.slane %v2177, 4
        %v2179 = vrot.slane %v2022, 5
        %v2180 = vsel %vm976, %v2178, %v2179
        %v2181 = vrot.slane %v2179, 4
        %v2182 = vrot.slane %v2023, 5
        %v2183 = vsel %vm976, %v2181, %v2182
        %2184 = vrot.lane.b32.xlu0 %v2075, 20
        %v2185 = vpop.permute.xlu0 %2184
        %2186 = vrot.lane.b32.xlu0 %v2078, 20
        %v2187 = vpop.permute.xlu0 %2186
        %2188 = vrot.lane.b32.xlu0 %v2082, 20
        %v2189 = vpop.permute.xlu0 %2188
        %2190 = vrot.lane.b32.xlu0 %v2085, 20
        %v2191 = vpop.permute.xlu0 %2190
        %2192 = vrot.lane.b32.xlu0 %v2089, 20
        %v2193 = vpop.permute.xlu0 %2192
        %2194 = vrot.lane.b32.xlu0 %v2092, 20
        %v2195 = vpop.permute.xlu0 %2194
        %2196 = vrot.lane.b32.xlu0 %v2096, 20
        %v2197 = vpop.permute.xlu0 %2196
        %2198 = vrot.lane.b32.xlu0 %v2099, 20
        %v2199 = vpop.permute.xlu0 %2198
        %2200 = vrot.lane.b32.xlu0 %v2103, 20
        %v2201 = vpop.permute.xlu0 %2200
        %2202 = vrot.lane.b32.xlu0 %v2106, 20
        %v2203 = vpop.permute.xlu0 %2202
        %2204 = vrot.lane.b32.xlu0 %v2110, 20
        %v2205 = vpop.permute.xlu0 %2204
        %2206 = vrot.lane.b32.xlu0 %v2113, 20
        %v2207 = vpop.permute.xlu0 %2206
        %2208 = vrot.lane.b32.xlu0 %v2117, 20
        %v2209 = vpop.permute.xlu0 %2208
        %2210 = vrot.lane.b32.xlu0 %v2120, 20
        %v2211 = vpop.permute.xlu0 %2210
        %2212 = vrot.lane.b32.xlu0 %v2124, 20
        %v2213 = vpop.permute.xlu0 %2212
        %2214 = vrot.lane.b32.xlu0 %v2127, 20
        %v2215 = vpop.permute.xlu0 %2214
        %2216 = vrot.lane.b32.xlu0 %v2131, 20
        %v2217 = vpop.permute.xlu0 %2216
        %2218 = vrot.lane.b32.xlu0 %v2134, 20
        %v2219 = vpop.permute.xlu0 %2218
        %2220 = vrot.lane.b32.xlu0 %v2138, 20
        %v2221 = vpop.permute.xlu0 %2220
        %2222 = vrot.lane.b32.xlu0 %v2141, 20
        %v2223 = vpop.permute.xlu0 %2222
        %2224 = vrot.lane.b32.xlu0 %v2145, 20
        %v2225 = vpop.permute.xlu0 %2224
        %2226 = vrot.lane.b32.xlu0 %v2148, 20
        %v2227 = vpop.permute.xlu0 %2226
        %2228 = vrot.lane.b32.xlu0 %v2152, 20
        %v2229 = vpop.permute.xlu0 %2228
        %2230 = vrot.lane.b32.xlu0 %v2155, 20
        %v2231 = vpop.permute.xlu0 %2230
        %2232 = vrot.lane.b32.xlu0 %v2159, 20
        %v2233 = vpop.permute.xlu0 %2232
        %2234 = vrot.lane.b32.xlu0 %v2162, 20
        %v2235 = vpop.permute.xlu0 %2234
        %2236 = vrot.lane.b32.xlu0 %v2166, 20
        %v2237 = vpop.permute.xlu0 %2236
        %2238 = vrot.lane.b32.xlu0 %v2169, 20
        %v2239 = vpop.permute.xlu0 %2238
        %2240 = vrot.lane.b32.xlu0 %v2173, 20
        %v2241 = vpop.permute.xlu0 %2240
        %2242 = vrot.lane.b32.xlu0 %v2176, 20
        %v2243 = vpop.permute.xlu0 %2242
        %2244 = vrot.lane.b32.xlu0 %v2180, 20
        %v2245 = vpop.permute.xlu0 %2244
        %2246 = vrot.lane.b32.xlu0 %v2183, 20
        %v2247 = vpop.permute.xlu0 %2246
        %vm2280 = vcmask 191648
        %2281 = vst.msk [vmem:[#allocation2] sm:$0xf] %vm2280, %v2185
        %2282 = vst.msk [vmem:[#allocation2 + $0x4] sm:$0xf] %vm2280, %v2187
        %2283 = vst.msk [vmem:[#allocation2 + $0x8] sm:$0xf] %vm2280, %v2189
        %2284 = vst.msk [vmem:[#allocation2 + $0xc] sm:$0xf] %vm2280, %v2191
        %2285 = vst.msk [vmem:[#allocation2 + $0x10] sm:$0xf] %vm2280, %v2193
        %2286 = vst.msk [vmem:[#allocation2 + $0x14] sm:$0xf] %vm2280, %v2195
        %2287 = vst.msk [vmem:[#allocation2 + $0x18] sm:$0xf] %vm2280, %v2197
        %2288 = vst.msk [vmem:[#allocation2 + $0x1c] sm:$0xf] %vm2280, %v2199
        %2289 = vst.msk [vmem:[#allocation2 + $0x20] sm:$0xf] %vm2280, %v2201
        %2290 = vst.msk [vmem:[#allocation2 + $0x24] sm:$0xf] %vm2280, %v2203
        %2291 = vst.msk [vmem:[#allocation2 + $0x28] sm:$0xf] %vm2280, %v2205
        %2292 = vst.msk [vmem:[#allocation2 + $0x2c] sm:$0xf] %vm2280, %v2207
        %2293 = vst.msk [vmem:[#allocation2 + $0x30] sm:$0xf] %vm2280, %v2209
        %2294 = vst.msk [vmem:[#allocation2 + $0x34] sm:$0xf] %vm2280, %v2211
        %2295 = vst.msk [vmem:[#allocation2 + $0x38] sm:$0xf] %vm2280, %v2213
        %2296 = vst.msk [vmem:[#allocation2 + $0x3c] sm:$0xf] %vm2280, %v2215
        %2297 = vst.msk [vmem:[#allocation2 + $0x40] sm:$0xf] %vm2280, %v2217
        %2298 = vst.msk [vmem:[#allocation2 + $0x44] sm:$0xf] %vm2280, %v2219
        %2299 = vst.msk [vmem:[#allocation2 + $0x48] sm:$0xf] %vm2280, %v2221
        %2300 = vst.msk [vmem:[#allocation2 + $0x4c] sm:$0xf] %vm2280, %v2223
        %2301 = vst.msk [vmem:[#allocation2 + $0x50] sm:$0xf] %vm2280, %v2225
        %2302 = vst.msk [vmem:[#allocation2 + $0x54] sm:$0xf] %vm2280, %v2227
        %2303 = vst.msk [vmem:[#allocation2 + $0x58] sm:$0xf] %vm2280, %v2229
        %2304 = vst.msk [vmem:[#allocation2 + $0x5c] sm:$0xf] %vm2280, %v2231
        %2305 = vst.msk [vmem:[#allocation2 + $0x60] sm:$0xf] %vm2280, %v2233
        %2306 = vst.msk [vmem:[#allocation2 + $0x64] sm:$0xf] %vm2280, %v2235
        %2307 = vst.msk [vmem:[#allocation2 + $0x68] sm:$0xf] %vm2280, %v2237
        %2308 = vst.msk [vmem:[#allocation2 + $0x6c] sm:$0xf] %vm2280, %v2239
        %2309 = vst.msk [vmem:[#allocation2 + $0x70] sm:$0xf] %vm2280, %v2241
        %2310 = vst.msk [vmem:[#allocation2 + $0x74] sm:$0xf] %vm2280, %v2243
        %2311 = vst.msk [vmem:[#allocation2 + $0x78] sm:$0xf] %vm2280, %v2245
        %2312 = vst.msk [vmem:[#allocation2 + $0x7c] sm:$0xf] %vm2280, %v2247
        %s2313 = sadd.s32 %s241, 2
        %s2314 = smul.u32 %s2313, 3
        %s2315 = smul.addr %s2314, 4
        %s2316 = scalar_lea.vmem %s219, %s2315
        %v2317 = vld [vmem:[%s2316] sm:$0xf]
        %v2318 = vld [vmem:[%s2316 + $0x4] sm:$0xf]
        %v2319 = vld [vmem:[%s2316 + $0xc] sm:$0xf]
        %v2320 = vld [vmem:[%s2316 + $0x10] sm:$0xf]
        %v2321 = vld [vmem:[%s2316 + $0x18] sm:$0xf]
        %v2322 = vld [vmem:[%s2316 + $0x1c] sm:$0xf]
        %v2323 = vld [vmem:[%s2316 + $0x24] sm:$0xf]
        %v2324 = vld [vmem:[%s2316 + $0x28] sm:$0xf]
        %v2325 = vld [vmem:[%s2316 + $0x30] sm:$0xf]
        %v2326 = vld [vmem:[%s2316 + $0x34] sm:$0xf]
        %v2327 = vld [vmem:[%s2316 + $0x3c] sm:$0xf]
        %v2328 = vld [vmem:[%s2316 + $0x40] sm:$0xf]
        %v2329 = vld [vmem:[%s2316 + $0x48] sm:$0xf]
        %v2330 = vld [vmem:[%s2316 + $0x4c] sm:$0xf]
        %v2331 = vld [vmem:[%s2316 + $0x54] sm:$0xf]
        %v2332 = vld [vmem:[%s2316 + $0x58] sm:$0xf]
        %v2333 = vld [vmem:[%s2316 + $0x60] sm:$0xf]
        %v2334 = vld [vmem:[%s2316 + $0x64] sm:$0xf]
        %v2335 = vld [vmem:[%s2316 + $0x6c] sm:$0xf]
        %v2336 = vld [vmem:[%s2316 + $0x70] sm:$0xf]
        %v2337 = vld [vmem:[%s2316 + $0x78] sm:$0xf]
        %v2338 = vld [vmem:[%s2316 + $0x7c] sm:$0xf]
        %v2339 = vld [vmem:[%s2316 + $0x84] sm:$0xf]
        %v2340 = vld [vmem:[%s2316 + $0x88] sm:$0xf]
        %v2341 = vld [vmem:[%s2316 + $0x90] sm:$0xf]
        %v2342 = vld [vmem:[%s2316 + $0x94] sm:$0xf]
        %v2343 = vld [vmem:[%s2316 + $0x9c] sm:$0xf]
        %v2344 = vld [vmem:[%s2316 + $0xa0] sm:$0xf]
        %v2345 = vld [vmem:[%s2316 + $0xa8] sm:$0xf]
        %v2346 = vld [vmem:[%s2316 + $0xac] sm:$0xf]
        %v2347 = vld [vmem:[%s2316 + $0xb4] sm:$0xf]
        %v2348 = vld [vmem:[%s2316 + $0xb8] sm:$0xf]
        %2381 = vrot.lane.b32.xlu0 %v2317, 24
        %v2382 = vpop.permute.xlu0 %2381
        %2383 = vrot.lane.b32.xlu0 %v2318, 24
        %v2384 = vpop.permute.xlu0 %2383
        %2385 = vrot.lane.b32.xlu0 %v2319, 24
        %v2386 = vpop.permute.xlu0 %2385
        %2387 = vrot.lane.b32.xlu0 %v2320, 24
        %v2388 = vpop.permute.xlu0 %2387
        %2389 = vrot.lane.b32.xlu0 %v2321, 24
        %v2390 = vpop.permute.xlu0 %2389
        %2391 = vrot.lane.b32.xlu0 %v2322, 24
        %v2392 = vpop.permute.xlu0 %2391
        %2393 = vrot.lane.b32.xlu0 %v2323, 24
        %v2394 = vpop.permute.xlu0 %2393
        %2395 = vrot.lane.b32.xlu0 %v2324, 24
        %v2396 = vpop.permute.xlu0 %2395
        %2397 = vrot.lane.b32.xlu0 %v2325, 24
        %v2398 = vpop.permute.xlu0 %2397
        %2399 = vrot.lane.b32.xlu0 %v2326, 24
        %v2400 = vpop.permute.xlu0 %2399
        %2401 = vrot.lane.b32.xlu0 %v2327, 24
        %v2402 = vpop.permute.xlu0 %2401
        %2403 = vrot.lane.b32.xlu0 %v2328, 24
        %v2404 = vpop.permute.xlu0 %2403
        %2405 = vrot.lane.b32.xlu0 %v2329, 24
        %v2406 = vpop.permute.xlu0 %2405
        %2407 = vrot.lane.b32.xlu0 %v2330, 24
        %v2408 = vpop.permute.xlu0 %2407
        %2409 = vrot.lane.b32.xlu0 %v2331, 24
        %v2410 = vpop.permute.xlu0 %2409
        %2411 = vrot.lane.b32.xlu0 %v2332, 24
        %v2412 = vpop.permute.xlu0 %2411
        %2413 = vrot.lane.b32.xlu0 %v2333, 24
        %v2414 = vpop.permute.xlu0 %2413
        %2415 = vrot.lane.b32.xlu0 %v2334, 24
        %v2416 = vpop.permute.xlu0 %2415
        %2417 = vrot.lane.b32.xlu0 %v2335, 24
        %v2418 = vpop.permute.xlu0 %2417
        %2419 = vrot.lane.b32.xlu0 %v2336, 24
        %v2420 = vpop.permute.xlu0 %2419
        %2421 = vrot.lane.b32.xlu0 %v2337, 24
        %v2422 = vpop.permute.xlu0 %2421
        %2423 = vrot.lane.b32.xlu0 %v2338, 24
        %v2424 = vpop.permute.xlu0 %2423
        %2425 = vrot.lane.b32.xlu0 %v2339, 24
        %v2426 = vpop.permute.xlu0 %2425
        %2427 = vrot.lane.b32.xlu0 %v2340, 24
        %v2428 = vpop.permute.xlu0 %2427
        %2429 = vrot.lane.b32.xlu0 %v2341, 24
        %v2430 = vpop.permute.xlu0 %2429
        %2431 = vrot.lane.b32.xlu0 %v2342, 24
        %v2432 = vpop.permute.xlu0 %2431
        %2433 = vrot.lane.b32.xlu0 %v2343, 24
        %v2434 = vpop.permute.xlu0 %2433
        %2435 = vrot.lane.b32.xlu0 %v2344, 24
        %v2436 = vpop.permute.xlu0 %2435
        %2437 = vrot.lane.b32.xlu0 %v2345, 24
        %v2438 = vpop.permute.xlu0 %2437
        %2439 = vrot.lane.b32.xlu0 %v2346, 24
        %v2440 = vpop.permute.xlu0 %2439
        %2441 = vrot.lane.b32.xlu0 %v2347, 24
        %v2442 = vpop.permute.xlu0 %2441
        %2443 = vrot.lane.b32.xlu0 %v2348, 24
        %v2444 = vpop.permute.xlu0 %2443
        %vm2477 = vcmask 224448
        %2478 = vst.msk [vmem:[#allocation2] sm:$0xf] %vm2477, %v2382
        %2479 = vst.msk [vmem:[#allocation2 + $0x4] sm:$0xf] %vm2477, %v2384
        %2480 = vst.msk [vmem:[#allocation2 + $0x8] sm:$0xf] %vm2477, %v2386
        %2481 = vst.msk [vmem:[#allocation2 + $0xc] sm:$0xf] %vm2477, %v2388
        %2482 = vst.msk [vmem:[#allocation2 + $0x10] sm:$0xf] %vm2477, %v2390
        %2483 = vst.msk [vmem:[#allocation2 + $0x14] sm:$0xf] %vm2477, %v2392
        %2484 = vst.msk [vmem:[#allocation2 + $0x18] sm:$0xf] %vm2477, %v2394
        %2485 = vst.msk [vmem:[#allocation2 + $0x1c] sm:$0xf] %vm2477, %v2396
        %2486 = vst.msk [vmem:[#allocation2 + $0x20] sm:$0xf] %vm2477, %v2398
        %2487 = vst.msk [vmem:[#allocation2 + $0x24] sm:$0xf] %vm2477, %v2400
        %2488 = vst.msk [vmem:[#allocation2 + $0x28] sm:$0xf] %vm2477, %v2402
        %2489 = vst.msk [vmem:[#allocation2 + $0x2c] sm:$0xf] %vm2477, %v2404
        %2490 = vst.msk [vmem:[#allocation2 + $0x30] sm:$0xf] %vm2477, %v2406
        %2491 = vst.msk [vmem:[#allocation2 + $0x34] sm:$0xf] %vm2477, %v2408
        %2492 = vst.msk [vmem:[#allocation2 + $0x38] sm:$0xf] %vm2477, %v2410
        %2493 = vst.msk [vmem:[#allocation2 + $0x3c] sm:$0xf] %vm2477, %v2412
        %2494 = vst.msk [vmem:[#allocation2 + $0x40] sm:$0xf] %vm2477, %v2414
        %2495 = vst.msk [vmem:[#allocation2 + $0x44] sm:$0xf] %vm2477, %v2416
        %2496 = vst.msk [vmem:[#allocation2 + $0x48] sm:$0xf] %vm2477, %v2418
        %2497 = vst.msk [vmem:[#allocation2 + $0x4c] sm:$0xf] %vm2477, %v2420
        %2498 = vst.msk [vmem:[#allocation2 + $0x50] sm:$0xf] %vm2477, %v2422
        %2499 = vst.msk [vmem:[#allocation2 + $0x54] sm:$0xf] %vm2477, %v2424
        %2500 = vst.msk [vmem:[#allocation2 + $0x58] sm:$0xf] %vm2477, %v2426
        %2501 = vst.msk [vmem:[#allocation2 + $0x5c] sm:$0xf] %vm2477, %v2428
        %2502 = vst.msk [vmem:[#allocation2 + $0x60] sm:$0xf] %vm2477, %v2430
        %2503 = vst.msk [vmem:[#allocation2 + $0x64] sm:$0xf] %vm2477, %v2432
        %2504 = vst.msk [vmem:[#allocation2 + $0x68] sm:$0xf] %vm2477, %v2434
        %2505 = vst.msk [vmem:[#allocation2 + $0x6c] sm:$0xf] %vm2477, %v2436
        %2506 = vst.msk [vmem:[#allocation2 + $0x70] sm:$0xf] %vm2477, %v2438
        %2507 = vst.msk [vmem:[#allocation2 + $0x74] sm:$0xf] %vm2477, %v2440
        %2508 = vst.msk [vmem:[#allocation2 + $0x78] sm:$0xf] %vm2477, %v2442
        %2509 = vst.msk [vmem:[#allocation2 + $0x7c] sm:$0xf] %vm2477, %v2444
        %v2510 = vld [vmem:[%s2316] sm:$0xf]
        %v2511 = vld [vmem:[%s2316 + $0x4] sm:$0xf]
        %v2512 = vld [vmem:[%s2316 + $0x8] sm:$0x1]
        %v2513 = vld [vmem:[%s2316 + $0xc] sm:$0xf]
        %v2514 = vld [vmem:[%s2316 + $0x10] sm:$0xf]
        %v2515 = vld [vmem:[%s2316 + $0x14] sm:$0x1]
        %v2516 = vld [vmem:[%s2316 + $0x18] sm:$0xf]
        %v2517 = vld [vmem:[%s2316 + $0x1c] sm:$0xf]
        %v2518 = vld [vmem:[%s2316 + $0x20] sm:$0x1]
        %v2519 = vld [vmem:[%s2316 + $0x24] sm:$0xf]
        %v2520 = vld [vmem:[%s2316 + $0x28] sm:$0xf]
        %v2521 = vld [vmem:[%s2316 + $0x2c] sm:$0x1]
        %v2522 = vld [vmem:[%s2316 + $0x30] sm:$0xf]
        %v2523 = vld [vmem:[%s2316 + $0x34] sm:$0xf]
        %v2524 = vld [vmem:[%s2316 + $0x38] sm:$0x1]
        %v2525 = vld [vmem:[%s2316 + $0x3c] sm:$0xf]
        %v2526 = vld [vmem:[%s2316 + $0x40] sm:$0xf]
        %v2527 = vld [vmem:[%s2316 + $0x44] sm:$0x1]
        %v2528 = vld [vmem:[%s2316 + $0x48] sm:$0xf]
        %v2529 = vld [vmem:[%s2316 + $0x4c] sm:$0xf]
        %v2530 = vld [vmem:[%s2316 + $0x50] sm:$0x1]
        %v2531 = vld [vmem:[%s2316 + $0x54] sm:$0xf]
        %v2532 = vld [vmem:[%s2316 + $0x58] sm:$0xf]
        %v2533 = vld [vmem:[%s2316 + $0x5c] sm:$0x1]
        %v2534 = vld [vmem:[%s2316 + $0x60] sm:$0xf]
        %v2535 = vld [vmem:[%s2316 + $0x64] sm:$0xf]
        %v2536 = vld [vmem:[%s2316 + $0x68] sm:$0x1]
        %v2537 = vld [vmem:[%s2316 + $0x6c] sm:$0xf]
        %v2538 = vld [vmem:[%s2316 + $0x70] sm:$0xf]
        %v2539 = vld [vmem:[%s2316 + $0x74] sm:$0x1]
        %v2540 = vld [vmem:[%s2316 + $0x78] sm:$0xf]
        %v2541 = vld [vmem:[%s2316 + $0x7c] sm:$0xf]
        %v2542 = vld [vmem:[%s2316 + $0x80] sm:$0x1]
        %v2543 = vld [vmem:[%s2316 + $0x84] sm:$0xf]
        %v2544 = vld [vmem:[%s2316 + $0x88] sm:$0xf]
        %v2545 = vld [vmem:[%s2316 + $0x8c] sm:$0x1]
        %v2546 = vld [vmem:[%s2316 + $0x90] sm:$0xf]
        %v2547 = vld [vmem:[%s2316 + $0x94] sm:$0xf]
        %v2548 = vld [vmem:[%s2316 + $0x98] sm:$0x1]
        %v2549 = vld [vmem:[%s2316 + $0x9c] sm:$0xf]
        %v2550 = vld [vmem:[%s2316 + $0xa0] sm:$0xf]
        %v2551 = vld [vmem:[%s2316 + $0xa4] sm:$0x1]
        %v2552 = vld [vmem:[%s2316 + $0xa8] sm:$0xf]
        %v2553 = vld [vmem:[%s2316 + $0xac] sm:$0xf]
        %v2554 = vld [vmem:[%s2316 + $0xb0] sm:$0x1]
        %v2555 = vld [vmem:[%s2316 + $0xb4] sm:$0xf]
        %v2556 = vld [vmem:[%s2316 + $0xb8] sm:$0xf]
        %v2557 = vld [vmem:[%s2316 + $0xbc] sm:$0x1]
        %v2559 = vshrl.u32 %v2510, 16
        %v2561 = vrot.slane %v2559, 4
        %v2562 = vshll.u32 %v2510, 16
        %v2564 = vrot.slane %v2562, 5
        %v2565 = vor.u32 %v2561, %v2564
        %v2566 = vrot.slane %v2565, 4
        %v2568 = vshll.u32 %v2511, 16
        %v2570 = vrot.slane %v2568, 5
        %v2571 = vsel %vm364, %v2566, %v2570
        %v2572 = vshrl.u32 %v2511, 16
        %v2574 = vrot.slane %v2572, 4
        %v2575 = vor.u32 %v2574, %v2570
        %v2576 = vrot.slane %v2575, 4
        %v2578 = vshll.u32 %v2512, 16
        %v2580 = vrot.slane %v2578, 5
        %v2581 = vsel %vm364, %v2576, %v2580
        %v2583 = vshrl.u32 %v2513, 16
        %v2585 = vrot.slane %v2583, 4
        %v2586 = vshll.u32 %v2513, 16
        %v2588 = vrot.slane %v2586, 5
        %v2589 = vor.u32 %v2585, %v2588
        %v2590 = vrot.slane %v2589, 4
        %v2592 = vshll.u32 %v2514, 16
        %v2594 = vrot.slane %v2592, 5
        %v2595 = vsel %vm364, %v2590, %v2594
        %v2596 = vshrl.u32 %v2514, 16
        %v2598 = vrot.slane %v2596, 4
        %v2599 = vor.u32 %v2598, %v2594
        %v2600 = vrot.slane %v2599, 4
        %v2602 = vshll.u32 %v2515, 16
        %v2604 = vrot.slane %v2602, 5
        %v2605 = vsel %vm364, %v2600, %v2604
        %v2607 = vshrl.u32 %v2516, 16
        %v2609 = vrot.slane %v2607, 4
        %v2610 = vshll.u32 %v2516, 16
        %v2612 = vrot.slane %v2610, 5
        %v2613 = vor.u32 %v2609, %v2612
        %v2614 = vrot.slane %v2613, 4
        %v2616 = vshll.u32 %v2517, 16
        %v2618 = vrot.slane %v2616, 5
        %v2619 = vsel %vm364, %v2614, %v2618
        %v2620 = vshrl.u32 %v2517, 16
        %v2622 = vrot.slane %v2620, 4
        %v2623 = vor.u32 %v2622, %v2618
        %v2624 = vrot.slane %v2623, 4
        %v2626 = vshll.u32 %v2518, 16
        %v2628 = vrot.slane %v2626, 5
        %v2629 = vsel %vm364, %v2624, %v2628
        %v2631 = vshrl.u32 %v2519, 16
        %v2633 = vrot.slane %v2631, 4
        %v2634 = vshll.u32 %v2519, 16
        %v2636 = vrot.slane %v2634, 5
        %v2637 = vor.u32 %v2633, %v2636
        %v2638 = vrot.slane %v2637, 4
        %v2640 = vshll.u32 %v2520, 16
        %v2642 = vrot.slane %v2640, 5
        %v2643 = vsel %vm364, %v2638, %v2642
        %v2644 = vshrl.u32 %v2520, 16
        %v2646 = vrot.slane %v2644, 4
        %v2647 = vor.u32 %v2646, %v2642
        %v2648 = vrot.slane %v2647, 4
        %v2650 = vshll.u32 %v2521, 16
        %v2652 = vrot.slane %v2650, 5
        %v2653 = vsel %vm364, %v2648, %v2652
        %v2655 = vshrl.u32 %v2522, 16
        %v2657 = vrot.slane %v2655, 4
        %v2658 = vshll.u32 %v2522, 16
        %v2660 = vrot.slane %v2658, 5
        %v2661 = vor.u32 %v2657, %v2660
        %v2662 = vrot.slane %v2661, 4
        %v2664 = vshll.u32 %v2523, 16
        %v2666 = vrot.slane %v2664, 5
        %v2667 = vsel %vm364, %v2662, %v2666
        %v2668 = vshrl.u32 %v2523, 16
        %v2670 = vrot.slane %v2668, 4
        %v2671 = vor.u32 %v2670, %v2666
        %v2672 = vrot.slane %v2671, 4
        %v2674 = vshll.u32 %v2524, 16
        %v2676 = vrot.slane %v2674, 5
        %v2677 = vsel %vm364, %v2672, %v2676
        %v2679 = vshrl.u32 %v2525, 16
        %v2681 = vrot.slane %v2679, 4
        %v2682 = vshll.u32 %v2525, 16
        %v2684 = vrot.slane %v2682, 5
        %v2685 = vor.u32 %v2681, %v2684
        %v2686 = vrot.slane %v2685, 4
        %v2688 = vshll.u32 %v2526, 16
        %v2690 = vrot.slane %v2688, 5
        %v2691 = vsel %vm364, %v2686, %v2690
        %v2692 = vshrl.u32 %v2526, 16
        %v2694 = vrot.slane %v2692, 4
        %v2695 = vor.u32 %v2694, %v2690
        %v2696 = vrot.slane %v2695, 4
        %v2698 = vshll.u32 %v2527, 16
        %v2700 = vrot.slane %v2698, 5
        %v2701 = vsel %vm364, %v2696, %v2700
        %v2703 = vshrl.u32 %v2528, 16
        %v2705 = vrot.slane %v2703, 4
        %v2706 = vshll.u32 %v2528, 16
        %v2708 = vrot.slane %v2706, 5
        %v2709 = vor.u32 %v2705, %v2708
        %v2710 = vrot.slane %v2709, 4
        %v2712 = vshll.u32 %v2529, 16
        %v2714 = vrot.slane %v2712, 5
        %v2715 = vsel %vm364, %v2710, %v2714
        %v2716 = vshrl.u32 %v2529, 16
        %v2718 = vrot.slane %v2716, 4
        %v2719 = vor.u32 %v2718, %v2714
        %v2720 = vrot.slane %v2719, 4
        %v2722 = vshll.u32 %v2530, 16
        %v2724 = vrot.slane %v2722, 5
        %v2725 = vsel %vm364, %v2720, %v2724
        %v2727 = vshrl.u32 %v2531, 16
        %v2729 = vrot.slane %v2727, 4
        %v2730 = vshll.u32 %v2531, 16
        %v2732 = vrot.slane %v2730, 5
        %v2733 = vor.u32 %v2729, %v2732
        %v2734 = vrot.slane %v2733, 4
        %v2736 = vshll.u32 %v2532, 16
        %v2738 = vrot.slane %v2736, 5
        %v2739 = vsel %vm364, %v2734, %v2738
        %v2740 = vshrl.u32 %v2532, 16
        %v2742 = vrot.slane %v2740, 4
        %v2743 = vor.u32 %v2742, %v2738
        %v2744 = vrot.slane %v2743, 4
        %v2746 = vshll.u32 %v2533, 16
        %v2748 = vrot.slane %v2746, 5
        %v2749 = vsel %vm364, %v2744, %v2748
        %v2751 = vshrl.u32 %v2534, 16
        %v2753 = vrot.slane %v2751, 4
        %v2754 = vshll.u32 %v2534, 16
        %v2756 = vrot.slane %v2754, 5
        %v2757 = vor.u32 %v2753, %v2756
        %v2758 = vrot.slane %v2757, 4
        %v2760 = vshll.u32 %v2535, 16
        %v2762 = vrot.slane %v2760, 5
        %v2763 = vsel %vm364, %v2758, %v2762
        %v2764 = vshrl.u32 %v2535, 16
        %v2766 = vrot.slane %v2764, 4
        %v2767 = vor.u32 %v2766, %v2762
        %v2768 = vrot.slane %v2767, 4
        %v2770 = vshll.u32 %v2536, 16
        %v2772 = vrot.slane %v2770, 5
        %v2773 = vsel %vm364, %v2768, %v2772
        %v2775 = vshrl.u32 %v2537, 16
        %v2777 = vrot.slane %v2775, 4
        %v2778 = vshll.u32 %v2537, 16
        %v2780 = vrot.slane %v2778, 5
        %v2781 = vor.u32 %v2777, %v2780
        %v2782 = vrot.slane %v2781, 4
        %v2784 = vshll.u32 %v2538, 16
        %v2786 = vrot.slane %v2784, 5
        %v2787 = vsel %vm364, %v2782, %v2786
        %v2788 = vshrl.u32 %v2538, 16
        %v2790 = vrot.slane %v2788, 4
        %v2791 = vor.u32 %v2790, %v2786
        %v2792 = vrot.slane %v2791, 4
        %v2794 = vshll.u32 %v2539, 16
        %v2796 = vrot.slane %v2794, 5
        %v2797 = vsel %vm364, %v2792, %v2796
        %v2799 = vshrl.u32 %v2540, 16
        %v2801 = vrot.slane %v2799, 4
        %v2802 = vshll.u32 %v2540, 16
        %v2804 = vrot.slane %v2802, 5
        %v2805 = vor.u32 %v2801, %v2804
        %v2806 = vrot.slane %v2805, 4
        %v2808 = vshll.u32 %v2541, 16
        %v2810 = vrot.slane %v2808, 5
        %v2811 = vsel %vm364, %v2806, %v2810
        %v2812 = vshrl.u32 %v2541, 16
        %v2814 = vrot.slane %v2812, 4
        %v2815 = vor.u32 %v2814, %v2810
        %v2816 = vrot.slane %v2815, 4
        %v2818 = vshll.u32 %v2542, 16
        %v2820 = vrot.slane %v2818, 5
        %v2821 = vsel %vm364, %v2816, %v2820
        %v2823 = vshrl.u32 %v2543, 16
        %v2825 = vrot.slane %v2823, 4
        %v2826 = vshll.u32 %v2543, 16
        %v2828 = vrot.slane %v2826, 5
        %v2829 = vor.u32 %v2825, %v2828
        %v2830 = vrot.slane %v2829, 4
        %v2832 = vshll.u32 %v2544, 16
        %v2834 = vrot.slane %v2832, 5
        %v2835 = vsel %vm364, %v2830, %v2834
        %v2836 = vshrl.u32 %v2544, 16
        %v2838 = vrot.slane %v2836, 4
        %v2839 = vor.u32 %v2838, %v2834
        %v2840 = vrot.slane %v2839, 4
        %v2842 = vshll.u32 %v2545, 16
        %v2844 = vrot.slane %v2842, 5
        %v2845 = vsel %vm364, %v2840, %v2844
        %v2847 = vshrl.u32 %v2546, 16
        %v2849 = vrot.slane %v2847, 4
        %v2850 = vshll.u32 %v2546, 16
        %v2852 = vrot.slane %v2850, 5
        %v2853 = vor.u32 %v2849, %v2852
        %v2854 = vrot.slane %v2853, 4
        %v2856 = vshll.u32 %v2547, 16
        %v2858 = vrot.slane %v2856, 5
        %v2859 = vsel %vm364, %v2854, %v2858
        %v2860 = vshrl.u32 %v2547, 16
        %v2862 = vrot.slane %v2860, 4
        %v2863 = vor.u32 %v2862, %v2858
        %v2864 = vrot.slane %v2863, 4
        %v2866 = vshll.u32 %v2548, 16
        %v2868 = vrot.slane %v2866, 5
        %v2869 = vsel %vm364, %v2864, %v2868
        %v2871 = vshrl.u32 %v2549, 16
        %v2873 = vrot.slane %v2871, 4
        %v2874 = vshll.u32 %v2549, 16
        %v2876 = vrot.slane %v2874, 5
        %v2877 = vor.u32 %v2873, %v2876
        %v2878 = vrot.slane %v2877, 4
        %v2880 = vshll.u32 %v2550, 16
        %v2882 = vrot.slane %v2880, 5
        %v2883 = vsel %vm364, %v2878, %v2882
        %v2884 = vshrl.u32 %v2550, 16
        %v2886 = vrot.slane %v2884, 4
        %v2887 = vor.u32 %v2886, %v2882
        %v2888 = vrot.slane %v2887, 4
        %v2890 = vshll.u32 %v2551, 16
        %v2892 = vrot.slane %v2890, 5
        %v2893 = vsel %vm364, %v2888, %v2892
        %v2895 = vshrl.u32 %v2552, 16
        %v2897 = vrot.slane %v2895, 4
        %v2898 = vshll.u32 %v2552, 16
        %v2900 = vrot.slane %v2898, 5
        %v2901 = vor.u32 %v2897, %v2900
        %v2902 = vrot.slane %v2901, 4
        %v2904 = vshll.u32 %v2553, 16
        %v2906 = vrot.slane %v2904, 5
        %v2907 = vsel %vm364, %v2902, %v2906
        %v2908 = vshrl.u32 %v2553, 16
        %v2910 = vrot.slane %v2908, 4
        %v2911 = vor.u32 %v2910, %v2906
        %v2912 = vrot.slane %v2911, 4
        %v2914 = vshll.u32 %v2554, 16
        %v2916 = vrot.slane %v2914, 5
        %v2917 = vsel %vm364, %v2912, %v2916
        %v2919 = vshrl.u32 %v2555, 16
        %v2921 = vrot.slane %v2919, 4
        %v2922 = vshll.u32 %v2555, 16
        %v2924 = vrot.slane %v2922, 5
        %v2925 = vor.u32 %v2921, %v2924
        %v2926 = vrot.slane %v2925, 4
        %v2928 = vshll.u32 %v2556, 16
        %v2930 = vrot.slane %v2928, 5
        %v2931 = vsel %vm364, %v2926, %v2930
        %v2932 = vshrl.u32 %v2556, 16
        %v2934 = vrot.slane %v2932, 4
        %v2935 = vor.u32 %v2934, %v2930
        %v2936 = vrot.slane %v2935, 4
        %v2938 = vshll.u32 %v2557, 16
        %v2940 = vrot.slane %v2938, 5
        %v2941 = vsel %vm364, %v2936, %v2940
        %2942 = vrot.lane.b32.xlu0 %v2571, 28
        %v2943 = vpop.permute.xlu0 %2942
        %2944 = vrot.lane.b32.xlu0 %v2581, 28
        %v2945 = vpop.permute.xlu0 %2944
        %2946 = vrot.lane.b32.xlu0 %v2595, 28
        %v2947 = vpop.permute.xlu0 %2946
        %2948 = vrot.lane.b32.xlu0 %v2605, 28
        %v2949 = vpop.permute.xlu0 %2948
        %2950 = vrot.lane.b32.xlu0 %v2619, 28
        %v2951 = vpop.permute.xlu0 %2950
        %2952 = vrot.lane.b32.xlu0 %v2629, 28
        %v2953 = vpop.permute.xlu0 %2952
        %2954 = vrot.lane.b32.xlu0 %v2643, 28
        %v2955 = vpop.permute.xlu0 %2954
        %2956 = vrot.lane.b32.xlu0 %v2653, 28
        %v2957 = vpop.permute.xlu0 %2956
        %2958 = vrot.lane.b32.xlu0 %v2667, 28
        %v2959 = vpop.permute.xlu0 %2958
        %2960 = vrot.lane.b32.xlu0 %v2677, 28
        %v2961 = vpop.permute.xlu0 %2960
        %2962 = vrot.lane.b32.xlu0 %v2691, 28
        %v2963 = vpop.permute.xlu0 %2962
        %2964 = vrot.lane.b32.xlu0 %v2701, 28
        %v2965 = vpop.permute.xlu0 %2964
        %2966 = vrot.lane.b32.xlu0 %v2715, 28
        %v2967 = vpop.permute.xlu0 %2966
        %2968 = vrot.lane.b32.xlu0 %v2725, 28
        %v2969 = vpop.permute.xlu0 %2968
        %2970 = vrot.lane.b32.xlu0 %v2739, 28
        %v2971 = vpop.permute.xlu0 %2970
        %2972 = vrot.lane.b32.xlu0 %v2749, 28
        %v2973 = vpop.permute.xlu0 %2972
        %2974 = vrot.lane.b32.xlu0 %v2763, 28
        %v2975 = vpop.permute.xlu0 %2974
        %2976 = vrot.lane.b32.xlu0 %v2773, 28
        %v2977 = vpop.permute.xlu0 %2976
        %2978 = vrot.lane.b32.xlu0 %v2787, 28
        %v2979 = vpop.permute.xlu0 %2978
        %2980 = vrot.lane.b32.xlu0 %v2797, 28
        %v2981 = vpop.permute.xlu0 %2980
        %2982 = vrot.lane.b32.xlu0 %v2811, 28
        %v2983 = vpop.permute.xlu0 %2982
        %2984 = vrot.lane.b32.xlu0 %v2821, 28
        %v2985 = vpop.permute.xlu0 %2984
        %2986 = vrot.lane.b32.xlu0 %v2835, 28
        %v2987 = vpop.permute.xlu0 %2986
        %2988 = vrot.lane.b32.xlu0 %v2845, 28
        %v2989 = vpop.permute.xlu0 %2988
        %2990 = vrot.lane.b32.xlu0 %v2859, 28
        %v2991 = vpop.permute.xlu0 %2990
        %2992 = vrot.lane.b32.xlu0 %v2869, 28
        %v2993 = vpop.permute.xlu0 %2992
        %2994 = vrot.lane.b32.xlu0 %v2883, 28
        %v2995 = vpop.permute.xlu0 %2994
        %2996 = vrot.lane.b32.xlu0 %v2893, 28
        %v2997 = vpop.permute.xlu0 %2996
        %2998 = vrot.lane.b32.xlu0 %v2907, 28
        %v2999 = vpop.permute.xlu0 %2998
        %3000 = vrot.lane.b32.xlu0 %v2917, 28
        %v3001 = vpop.permute.xlu0 %3000
        %3002 = vrot.lane.b32.xlu0 %v2931, 28
        %v3003 = vpop.permute.xlu0 %3002
        %3004 = vrot.lane.b32.xlu0 %v2941, 28
        %v3005 = vpop.permute.xlu0 %3004
        %vm3038 = vcmask 257248
        %3039 = vst.msk [vmem:[#allocation2] sm:$0xf] %vm3038, %v2943
        %3040 = vst.msk [vmem:[#allocation2 + $0x4] sm:$0xf] %vm3038, %v2945
        %3041 = vst.msk [vmem:[#allocation2 + $0x8] sm:$0xf] %vm3038, %v2947
        %3042 = vst.msk [vmem:[#allocation2 + $0xc] sm:$0xf] %vm3038, %v2949
        %3043 = vst.msk [vmem:[#allocation2 + $0x10] sm:$0xf] %vm3038, %v2951
        %3044 = vst.msk [vmem:[#allocation2 + $0x14] sm:$0xf] %vm3038, %v2953
        %3045 = vst.msk [vmem:[#allocation2 + $0x18] sm:$0xf] %vm3038, %v2955
        %3046 = vst.msk [vmem:[#allocation2 + $0x1c] sm:$0xf] %vm3038, %v2957
        %3047 = vst.msk [vmem:[#allocation2 + $0x20] sm:$0xf] %vm3038, %v2959
        %3048 = vst.msk [vmem:[#allocation2 + $0x24] sm:$0xf] %vm3038, %v2961
        %3049 = vst.msk [vmem:[#allocation2 + $0x28] sm:$0xf] %vm3038, %v2963
        %3050 = vst.msk [vmem:[#allocation2 + $0x2c] sm:$0xf] %vm3038, %v2965
        %3051 = vst.msk [vmem:[#allocation2 + $0x30] sm:$0xf] %vm3038, %v2967
        %3052 = vst.msk [vmem:[#allocation2 + $0x34] sm:$0xf] %vm3038, %v2969
        %3053 = vst.msk [vmem:[#allocation2 + $0x38] sm:$0xf] %vm3038, %v2971
        %3054 = vst.msk [vmem:[#allocation2 + $0x3c] sm:$0xf] %vm3038, %v2973
        %3055 = vst.msk [vmem:[#allocation2 + $0x40] sm:$0xf] %vm3038, %v2975
        %3056 = vst.msk [vmem:[#allocation2 + $0x44] sm:$0xf] %vm3038, %v2977
        %3057 = vst.msk [vmem:[#allocation2 + $0x48] sm:$0xf] %vm3038, %v2979
        %3058 = vst.msk [vmem:[#allocation2 + $0x4c] sm:$0xf] %vm3038, %v2981
        %3059 = vst.msk [vmem:[#allocation2 + $0x50] sm:$0xf] %vm3038, %v2983
        %3060 = vst.msk [vmem:[#allocation2 + $0x54] sm:$0xf] %vm3038, %v2985
        %3061 = vst.msk [vmem:[#allocation2 + $0x58] sm:$0xf] %vm3038, %v2987
        %3062 = vst.msk [vmem:[#allocation2 + $0x5c] sm:$0xf] %vm3038, %v2989
        %3063 = vst.msk [vmem:[#allocation2 + $0x60] sm:$0xf] %vm3038, %v2991
        %3064 = vst.msk [vmem:[#allocation2 + $0x64] sm:$0xf] %vm3038, %v2993
        %3065 = vst.msk [vmem:[#allocation2 + $0x68] sm:$0xf] %vm3038, %v2995
        %3066 = vst.msk [vmem:[#allocation2 + $0x6c] sm:$0xf] %vm3038, %v2997
        %3067 = vst.msk [vmem:[#allocation2 + $0x70] sm:$0xf] %vm3038, %v2999
        %3068 = vst.msk [vmem:[#allocation2 + $0x74] sm:$0xf] %vm3038, %v3001
        %3069 = vst.msk [vmem:[#allocation2 + $0x78] sm:$0xf] %vm3038, %v3003
        %3070 = vst.msk [vmem:[#allocation2 + $0x7c] sm:$0xf] %vm3038, %v3005
        %v3071 = vld [vmem:[%s2316] sm:$0xe]
        %v3072 = vld [vmem:[%s2316 + $0x4] sm:$0xf]
        %v3073 = vld [vmem:[%s2316 + $0x8] sm:$0x1]
        %v3074 = vld [vmem:[%s2316 + $0xc] sm:$0xe]
        %v3075 = vld [vmem:[%s2316 + $0x10] sm:$0xf]
        %v3076 = vld [vmem:[%s2316 + $0x14] sm:$0x1]
        %v3077 = vld [vmem:[%s2316 + $0x18] sm:$0xe]
        %v3078 = vld [vmem:[%s2316 + $0x1c] sm:$0xf]
        %v3079 = vld [vmem:[%s2316 + $0x20] sm:$0x1]
        %v3080 = vld [vmem:[%s2316 + $0x24] sm:$0xe]
        %v3081 = vld [vmem:[%s2316 + $0x28] sm:$0xf]
        %v3082 = vld [vmem:[%s2316 + $0x2c] sm:$0x1]
        %v3083 = vld [vmem:[%s2316 + $0x30] sm:$0xe]
        %v3084 = vld [vmem:[%s2316 + $0x34] sm:$0xf]
        %v3085 = vld [vmem:[%s2316 + $0x38] sm:$0x1]
        %v3086 = vld [vmem:[%s2316 + $0x3c] sm:$0xe]
        %v3087 = vld [vmem:[%s2316 + $0x40] sm:$0xf]
        %v3088 = vld [vmem:[%s2316 + $0x44] sm:$0x1]
        %v3089 = vld [vmem:[%s2316 + $0x48] sm:$0xe]
        %v3090 = vld [vmem:[%s2316 + $0x4c] sm:$0xf]
        %v3091 = vld [vmem:[%s2316 + $0x50] sm:$0x1]
        %v3092 = vld [vmem:[%s2316 + $0x54] sm:$0xe]
        %v3093 = vld [vmem:[%s2316 + $0x58] sm:$0xf]
        %v3094 = vld [vmem:[%s2316 + $0x5c] sm:$0x1]
        %v3095 = vld [vmem:[%s2316 + $0x60] sm:$0xe]
        %v3096 = vld [vmem:[%s2316 + $0x64] sm:$0xf]
        %v3097 = vld [vmem:[%s2316 + $0x68] sm:$0x1]
        %v3098 = vld [vmem:[%s2316 + $0x6c] sm:$0xe]
        %v3099 = vld [vmem:[%s2316 + $0x70] sm:$0xf]
        %v3100 = vld [vmem:[%s2316 + $0x74] sm:$0x1]
        %v3101 = vld [vmem:[%s2316 + $0x78] sm:$0xe]
        %v3102 = vld [vmem:[%s2316 + $0x7c] sm:$0xf]
        %v3103 = vld [vmem:[%s2316 + $0x80] sm:$0x1]
        %v3104 = vld [vmem:[%s2316 + $0x84] sm:$0xe]
        %v3105 = vld [vmem:[%s2316 + $0x88] sm:$0xf]
        %v3106 = vld [vmem:[%s2316 + $0x8c] sm:$0x1]
        %v3107 = vld [vmem:[%s2316 + $0x90] sm:$0xe]
        %v3108 = vld [vmem:[%s2316 + $0x94] sm:$0xf]
        %v3109 = vld [vmem:[%s2316 + $0x98] sm:$0x1]
        %v3110 = vld [vmem:[%s2316 + $0x9c] sm:$0xe]
        %v3111 = vld [vmem:[%s2316 + $0xa0] sm:$0xf]
        %v3112 = vld [vmem:[%s2316 + $0xa4] sm:$0x1]
        %v3113 = vld [vmem:[%s2316 + $0xa8] sm:$0xe]
        %v3114 = vld [vmem:[%s2316 + $0xac] sm:$0xf]
        %v3115 = vld [vmem:[%s2316 + $0xb0] sm:$0x1]
        %v3116 = vld [vmem:[%s2316 + $0xb4] sm:$0xe]
        %v3117 = vld [vmem:[%s2316 + $0xb8] sm:$0xf]
        %v3118 = vld [vmem:[%s2316 + $0xbc] sm:$0x1]
        %v3167 = vrot.slane %v3071, 5
        %v3168 = vrot.slane %v3167, 4
        %v3169 = vrot.slane %v3072, 5
        %v3170 = vsel %vm976, %v3168, %v3169
        %v3171 = vrot.slane %v3169, 4
        %v3172 = vrot.slane %v3073, 5
        %v3173 = vsel %vm976, %v3171, %v3172
        %v3174 = vrot.slane %v3074, 5
        %v3175 = vrot.slane %v3174, 4
        %v3176 = vrot.slane %v3075, 5
        %v3177 = vsel %vm976, %v3175, %v3176
        %v3178 = vrot.slane %v3176, 4
        %v3179 = vrot.slane %v3076, 5
        %v3180 = vsel %vm976, %v3178, %v3179
        %v3181 = vrot.slane %v3077, 5
        %v3182 = vrot.slane %v3181, 4
        %v3183 = vrot.slane %v3078, 5
        %v3184 = vsel %vm976, %v3182, %v3183
        %v3185 = vrot.slane %v3183, 4
        %v3186 = vrot.slane %v3079, 5
        %v3187 = vsel %vm976, %v3185, %v3186
        %v3188 = vrot.slane %v3080, 5
        %v3189 = vrot.slane %v3188, 4
        %v3190 = vrot.slane %v3081, 5
        %v3191 = vsel %vm976, %v3189, %v3190
        %v3192 = vrot.slane %v3190, 4
        %v3193 = vrot.slane %v3082, 5
        %v3194 = vsel %vm976, %v3192, %v3193
        %v3195 = vrot.slane %v3083, 5
        %v3196 = vrot.slane %v3195, 4
        %v3197 = vrot.slane %v3084, 5
        %v3198 = vsel %vm976, %v3196, %v3197
        %v3199 = vrot.slane %v3197, 4
        %v3200 = vrot.slane %v3085, 5
        %v3201 = vsel %vm976, %v3199, %v3200
        %v3202 = vrot.slane %v3086, 5
        %v3203 = vrot.slane %v3202, 4
        %v3204 = vrot.slane %v3087, 5
        %v3205 = vsel %vm976, %v3203, %v3204
        %v3206 = vrot.slane %v3204, 4
        %v3207 = vrot.slane %v3088, 5
        %v3208 = vsel %vm976, %v3206, %v3207
        %v3209 = vrot.slane %v3089, 5
        %v3210 = vrot.slane %v3209, 4
        %v3211 = vrot.slane %v3090, 5
        %v3212 = vsel %vm976, %v3210, %v3211
        %v3213 = vrot.slane %v3211, 4
        %v3214 = vrot.slane %v3091, 5
        %v3215 = vsel %vm976, %v3213, %v3214
        %v3216 = vrot.slane %v3092, 5
        %v3217 = vrot.slane %v3216, 4
        %v3218 = vrot.slane %v3093, 5
        %v3219 = vsel %vm976, %v3217, %v3218
        %v3220 = vrot.slane %v3218, 4
        %v3221 = vrot.slane %v3094, 5
        %v3222 = vsel %vm976, %v3220, %v3221
        %v3223 = vrot.slane %v3095, 5
        %v3224 = vrot.slane %v3223, 4
        %v3225 = vrot.slane %v3096, 5
        %v3226 = vsel %vm976, %v3224, %v3225
        %v3227 = vrot.slane %v3225, 4
        %v3228 = vrot.slane %v3097, 5
        %v3229 = vsel %vm976, %v3227, %v3228
        %v3230 = vrot.slane %v3098, 5
        %v3231 = vrot.slane %v3230, 4
        %v3232 = vrot.slane %v3099, 5
        %v3233 = vsel %vm976, %v3231, %v3232
        %v3234 = vrot.slane %v3232, 4
        %v3235 = vrot.slane %v3100, 5
        %v3236 = vsel %vm976, %v3234, %v3235
        %v3237 = vrot.slane %v3101, 5
        %v3238 = vrot.slane %v3237, 4
        %v3239 = vrot.slane %v3102, 5
        %v3240 = vsel %vm976, %v3238, %v3239
        %v3241 = vrot.slane %v3239, 4
        %v3242 = vrot.slane %v3103, 5
        %v3243 = vsel %vm976, %v3241, %v3242
        %v3244 = vrot.slane %v3104, 5
        %v3245 = vrot.slane %v3244, 4
        %v3246 = vrot.slane %v3105, 5
        %v3247 = vsel %vm976, %v3245, %v3246
        %v3248 = vrot.slane %v3246, 4
        %v3249 = vrot.slane %v3106, 5
        %v3250 = vsel %vm976, %v3248, %v3249
        %v3251 = vrot.slane %v3107, 5
        %v3252 = vrot.slane %v3251, 4
        %v3253 = vrot.slane %v3108, 5
        %v3254 = vsel %vm976, %v3252, %v3253
        %v3255 = vrot.slane %v3253, 4
        %v3256 = vrot.slane %v3109, 5
        %v3257 = vsel %vm976, %v3255, %v3256
        %v3258 = vrot.slane %v3110, 5
        %v3259 = vrot.slane %v3258, 4
        %v3260 = vrot.slane %v3111, 5
        %v3261 = vsel %vm976, %v3259, %v3260
        %v3262 = vrot.slane %v3260, 4
        %v3263 = vrot.slane %v3112, 5
        %v3264 = vsel %vm976, %v3262, %v3263
        %v3265 = vrot.slane %v3113, 5
        %v3266 = vrot.slane %v3265, 4
        %v3267 = vrot.slane %v3114, 5
        %v3268 = vsel %vm976, %v3266, %v3267
        %v3269 = vrot.slane %v3267, 4
        %v3270 = vrot.slane %v3115, 5
        %v3271 = vsel %vm976, %v3269, %v3270
        %v3272 = vrot.slane %v3116, 5
        %v3273 = vrot.slane %v3272, 4
        %v3274 = vrot.slane %v3117, 5
        %v3275 = vsel %vm976, %v3273, %v3274
        %v3276 = vrot.slane %v3274, 4
        %v3277 = vrot.slane %v3118, 5
        %v3278 = vsel %vm976, %v3276, %v3277
        %3279 = vrot.lane.b32.xlu0 %v3170, 32
        %v3280 = vpop.permute.xlu0 %3279
        %3281 = vrot.lane.b32.xlu0 %v3173, 32
        %v3282 = vpop.permute.xlu0 %3281
        %3283 = vrot.lane.b32.xlu0 %v3177, 32
        %v3284 = vpop.permute.xlu0 %3283
        %3285 = vrot.lane.b32.xlu0 %v3180, 32
        %v3286 = vpop.permute.xlu0 %3285
        %3287 = vrot.lane.b32.xlu0 %v3184, 32
        %v3288 = vpop.permute.xlu0 %3287
        %3289 = vrot.lane.b32.xlu0 %v3187, 32
        %v3290 = vpop.permute.xlu0 %3289
        %3291 = vrot.lane.b32.xlu0 %v3191, 32
        %v3292 = vpop.permute.xlu0 %3291
        %3293 = vrot.lane.b32.xlu0 %v3194, 32
        %v3294 = vpop.permute.xlu0 %3293
        %3295 = vrot.lane.b32.xlu0 %v3198, 32
        %v3296 = vpop.permute.xlu0 %3295
        %3297 = vrot.lane.b32.xlu0 %v3201, 32
        %v3298 = vpop.permute.xlu0 %3297
        %3299 = vrot.lane.b32.xlu0 %v3205, 32
        %v3300 = vpop.permute.xlu0 %3299
        %3301 = vrot.lane.b32.xlu0 %v3208, 32
        %v3302 = vpop.permute.xlu0 %3301
        %3303 = vrot.lane.b32.xlu0 %v3212, 32
        %v3304 = vpop.permute.xlu0 %3303
        %3305 = vrot.lane.b32.xlu0 %v3215, 32
        %v3306 = vpop.permute.xlu0 %3305
        %3307 = vrot.lane.b32.xlu0 %v3219, 32
        %v3308 = vpop.permute.xlu0 %3307
        %3309 = vrot.lane.b32.xlu0 %v3222, 32
        %v3310 = vpop.permute.xlu0 %3309
        %3311 = vrot.lane.b32.xlu0 %v3226, 32
        %v3312 = vpop.permute.xlu0 %3311
        %3313 = vrot.lane.b32.xlu0 %v3229, 32
        %v3314 = vpop.permute.xlu0 %3313
        %3315 = vrot.lane.b32.xlu0 %v3233, 32
        %v3316 = vpop.permute.xlu0 %3315
        %3317 = vrot.lane.b32.xlu0 %v3236, 32
        %v3318 = vpop.permute.xlu0 %3317
        %3319 = vrot.lane.b32.xlu0 %v3240, 32
        %v3320 = vpop.permute.xlu0 %3319
        %3321 = vrot.lane.b32.xlu0 %v3243, 32
        %v3322 = vpop.permute.xlu0 %3321
        %3323 = vrot.lane.b32.xlu0 %v3247, 32
        %v3324 = vpop.permute.xlu0 %3323
        %3325 = vrot.lane.b32.xlu0 %v3250, 32
        %v3326 = vpop.permute.xlu0 %3325
        %3327 = vrot.lane.b32.xlu0 %v3254, 32
        %v3328 = vpop.permute.xlu0 %3327
        %3329 = vrot.lane.b32.xlu0 %v3257, 32
        %v3330 = vpop.permute.xlu0 %3329
        %3331 = vrot.lane.b32.xlu0 %v3261, 32
        %v3332 = vpop.permute.xlu0 %3331
        %3333 = vrot.lane.b32.xlu0 %v3264, 32
        %v3334 = vpop.permute.xlu0 %3333
        %3335 = vrot.lane.b32.xlu0 %v3268, 32
        %v3336 = vpop.permute.xlu0 %3335
        %3337 = vrot.lane.b32.xlu0 %v3271, 32
        %v3338 = vpop.permute.xlu0 %3337
        %3339 = vrot.lane.b32.xlu0 %v3275, 32
        %v3340 = vpop.permute.xlu0 %3339
        %3341 = vrot.lane.b32.xlu0 %v3278, 32
        %v3342 = vpop.permute.xlu0 %3341
        %vm3375 = vcmask 290048
        %3376 = vst.msk [vmem:[#allocation2] sm:$0xf] %vm3375, %v3280
        %3377 = vst.msk [vmem:[#allocation2 + $0x4] sm:$0xf] %vm3375, %v3282
        %3378 = vst.msk [vmem:[#allocation2 + $0x8] sm:$0xf] %vm3375, %v3284
        %3379 = vst.msk [vmem:[#allocation2 + $0xc] sm:$0xf] %vm3375, %v3286
        %3380 = vst.msk [vmem:[#allocation2 + $0x10] sm:$0xf] %vm3375, %v3288
        %3381 = vst.msk [vmem:[#allocation2 + $0x14] sm:$0xf] %vm3375, %v3290
        %3382 = vst.msk [vmem:[#allocation2 + $0x18] sm:$0xf] %vm3375, %v3292
        %3383 = vst.msk [vmem:[#allocation2 + $0x1c] sm:$0xf] %vm3375, %v3294
        %3384 = vst.msk [vmem:[#allocation2 + $0x20] sm:$0xf] %vm3375, %v3296
        %3385 = vst.msk [vmem:[#allocation2 + $0x24] sm:$0xf] %vm3375, %v3298
        %3386 = vst.msk [vmem:[#allocation2 + $0x28] sm:$0xf] %vm3375, %v3300
        %3387 = vst.msk [vmem:[#allocation2 + $0x2c] sm:$0xf] %vm3375, %v3302
        %3388 = vst.msk [vmem:[#allocation2 + $0x30] sm:$0xf] %vm3375, %v3304
        %3389 = vst.msk [vmem:[#allocation2 + $0x34] sm:$0xf] %vm3375, %v3306
        %3390 = vst.msk [vmem:[#allocation2 + $0x38] sm:$0xf] %vm3375, %v3308
        %3391 = vst.msk [vmem:[#allocation2 + $0x3c] sm:$0xf] %vm3375, %v3310
        %3392 = vst.msk [vmem:[#allocation2 + $0x40] sm:$0xf] %vm3375, %v3312
        %3393 = vst.msk [vmem:[#allocation2 + $0x44] sm:$0xf] %vm3375, %v3314
        %3394 = vst.msk [vmem:[#allocation2 + $0x48] sm:$0xf] %vm3375, %v3316
        %3395 = vst.msk [vmem:[#allocation2 + $0x4c] sm:$0xf] %vm3375, %v3318
        %3396 = vst.msk [vmem:[#allocation2 + $0x50] sm:$0xf] %vm3375, %v3320
        %3397 = vst.msk [vmem:[#allocation2 + $0x54] sm:$0xf] %vm3375, %v3322
        %3398 = vst.msk [vmem:[#allocation2 + $0x58] sm:$0xf] %vm3375, %v3324
        %3399 = vst.msk [vmem:[#allocation2 + $0x5c] sm:$0xf] %vm3375, %v3326
        %3400 = vst.msk [vmem:[#allocation2 + $0x60] sm:$0xf] %vm3375, %v3328
        %3401 = vst.msk [vmem:[#allocation2 + $0x64] sm:$0xf] %vm3375, %v3330
        %3402 = vst.msk [vmem:[#allocation2 + $0x68] sm:$0xf] %vm3375, %v3332
        %3403 = vst.msk [vmem:[#allocation2 + $0x6c] sm:$0xf] %vm3375, %v3334
        %3404 = vst.msk [vmem:[#allocation2 + $0x70] sm:$0xf] %vm3375, %v3336
        %3405 = vst.msk [vmem:[#allocation2 + $0x74] sm:$0xf] %vm3375, %v3338
        %3406 = vst.msk [vmem:[#allocation2 + $0x78] sm:$0xf] %vm3375, %v3340
        %3407 = vst.msk [vmem:[#allocation2 + $0x7c] sm:$0xf] %vm3375, %v3342
      $region36: #{basic_conv2d.1} parent=31 // pred_fallthru
        _
      %v3408 = vld [vmem:[#allocation2] sm:$0xf]
      %v3409 = vld [vmem:[#allocation2 + $0x4] sm:$0xf]
      %v3410 = vld [vmem:[#allocation2 + $0x8] sm:$0xf]
      %v3411 = vld [vmem:[#allocation2 + $0xc] sm:$0xf]
      %v3412 = vld [vmem:[#allocation2 + $0x10] sm:$0xf]
      %v3413 = vld [vmem:[#allocation2 + $0x14] sm:$0xf]
      %v3414 = vld [vmem:[#allocation2 + $0x18] sm:$0xf]
      %v3415 = vld [vmem:[#allocation2 + $0x1c] sm:$0xf]
      %v3416 = vld [vmem:[#allocation2 + $0x20] sm:$0xf]
      %v3417 = vld [vmem:[#allocation2 + $0x24] sm:$0xf]
      %v3418 = vld [vmem:[#allocation2 + $0x28] sm:$0xf]
      %v3419 = vld [vmem:[#allocation2 + $0x2c] sm:$0xf]
      %v3420 = vld [vmem:[#allocation2 + $0x30] sm:$0xf]
      %v3421 = vld [vmem:[#allocation2 + $0x34] sm:$0xf]
      %v3422 = vld [vmem:[#allocation2 + $0x38] sm:$0xf]
      %v3423 = vld [vmem:[#allocation2 + $0x3c] sm:$0xf]
      %v3424 = vld [vmem:[#allocation2 + $0x40] sm:$0xf]
      %v3425 = vld [vmem:[#allocation2 + $0x44] sm:$0xf]
      %v3426 = vld [vmem:[#allocation2 + $0x48] sm:$0xf]
      %v3427 = vld [vmem:[#allocation2 + $0x4c] sm:$0xf]
      %v3428 = vld [vmem:[#allocation2 + $0x50] sm:$0xf]
      %v3429 = vld [vmem:[#allocation2 + $0x54] sm:$0xf]
      %v3430 = vld [vmem:[#allocation2 + $0x58] sm:$0xf]
      %v3431 = vld [vmem:[#allocation2 + $0x5c] sm:$0xf]
      %v3432 = vld [vmem:[#allocation2 + $0x60] sm:$0xf]
      %v3433 = vld [vmem:[#allocation2 + $0x64] sm:$0xf]
      %v3434 = vld [vmem:[#allocation2 + $0x68] sm:$0xf]
      %v3435 = vld [vmem:[#allocation2 + $0x6c] sm:$0xf]
      %v3436 = vld [vmem:[#allocation2 + $0x70] sm:$0xf]
      %v3437 = vld [vmem:[#allocation2 + $0x74] sm:$0xf]
      %v3438 = vld [vmem:[#allocation2 + $0x78] sm:$0xf]
      %v3439 = vld [vmem:[#allocation2 + $0x7c] sm:$0xf]
      %v3440 = vld [vmem:[%s223] sm:$0xf]
      %v3441 = vld [vmem:[%s223 + $0x4] sm:$0xf]
      %v3442 = vld [vmem:[%s223 + $0x8] sm:$0xf]
      %v3443 = vld [vmem:[%s223 + $0xc] sm:$0xf]
      %v3444 = vld [vmem:[%s223 + $0x10] sm:$0x3]
      %v3445 = vld [vmem:[%s226] sm:$0x1]
      %v3447 = vperm.slane %v3445, 0
      %v3481 = vunpack.c.l.b16 %v3408
      %v3482 = vunpack.c.l.b16 %v3409
      %v3483 = vunpack.c.l.b16 %v3410
      %v3484 = vunpack.c.l.b16 %v3411
      %v3485 = vunpack.c.l.b16 %v3412
      %v3486 = vunpack.c.l.b16 %v3413
      %v3487 = vunpack.c.l.b16 %v3414
      %v3488 = vunpack.c.l.b16 %v3415
      %v3489 = vunpack.c.l.b16 %v3416
      %v3490 = vunpack.c.l.b16 %v3417
      %v3491 = vunpack.c.l.b16 %v3418
      %v3492 = vunpack.c.l.b16 %v3419
      %v3493 = vunpack.c.l.b16 %v3420
      %v3494 = vunpack.c.l.b16 %v3421
      %v3495 = vunpack.c.l.b16 %v3422
      %v3496 = vunpack.c.l.b16 %v3423
      %v3497 = vunpack.c.l.b16 %v3424
      %v3498 = vunpack.c.l.b16 %v3425
      %v3499 = vunpack.c.l.b16 %v3426
      %v3500 = vunpack.c.l.b16 %v3427
      %v3501 = vunpack.c.l.b16 %v3428
      %v3502 = vunpack.c.l.b16 %v3429
      %v3503 = vunpack.c.l.b16 %v3430
      %v3504 = vunpack.c.l.b16 %v3431
      %v3505 = vunpack.c.l.b16 %v3432
      %v3506 = vunpack.c.l.b16 %v3433
      %v3507 = vunpack.c.l.b16 %v3434
      %v3508 = vunpack.c.l.b16 %v3435
      %v3509 = vunpack.c.l.b16 %v3436
      %v3510 = vunpack.c.l.b16 %v3437
      %v3511 = vunpack.c.l.b16 %v3438
      %v3512 = vunpack.c.l.b16 %v3439
      %v3513 = vpack.c.b16 %v3482, %v3481
      %v3514 = vpack.c.b16 %v3484, %v3483
      %v3515 = vpack.c.b16 %v3486, %v3485
      %v3516 = vpack.c.b16 %v3488, %v3487
      %v3517 = vpack.c.b16 %v3490, %v3489
      %v3518 = vpack.c.b16 %v3492, %v3491
      %v3519 = vpack.c.b16 %v3494, %v3493
      %v3520 = vpack.c.b16 %v3496, %v3495
      %v3521 = vpack.c.b16 %v3498, %v3497
      %v3522 = vpack.c.b16 %v3500, %v3499
      %v3523 = vpack.c.b16 %v3502, %v3501
      %v3524 = vpack.c.b16 %v3504, %v3503
      %v3525 = vpack.c.b16 %v3506, %v3505
      %v3526 = vpack.c.b16 %v3508, %v3507
      %v3527 = vpack.c.b16 %v3510, %v3509
      %v3528 = vpack.c.b16 %v3512, %v3511
      %v3534 = vunpack.c.l.b16 %v3440
      %v3535 = vunpack.c.l.b16 %v3441
      %v3536 = vunpack.c.l.b16 %v3442
      %v3537 = vunpack.c.l.b16 %v3443
      %v3538 = vunpack.c.l.b16 %v3444
      %v3539 = vpack.c.b16 %v3535, %v3534
      %v3540 = vpack.c.b16 %v3537, %v3536
      %v3541 = vpack.c.b16 %v3538, %v3538
      %vm3544 = vcmask 293888
      %v3546 = vsel %vm3544, %v3513, 0
      %v3549 = vsel %vm3544, %v3514, 0
      %v3552 = vsel %vm3544, %v3515, 0
      %v3555 = vsel %vm3544, %v3516, 0
      %v3558 = vsel %vm3544, %v3517, 0
      %v3561 = vsel %vm3544, %v3518, 0
      %v3564 = vsel %vm3544, %v3519, 0
      %v3567 = vsel %vm3544, %v3520, 0
      %v3570 = vsel %vm3544, %v3521, 0
      %v3573 = vsel %vm3544, %v3522, 0
      %v3576 = vsel %vm3544, %v3523, 0
      %v3579 = vsel %vm3544, %v3524, 0
      %v3582 = vsel %vm3544, %v3525, 0
      %v3585 = vsel %vm3544, %v3526, 0
      %v3588 = vsel %vm3544, %v3527, 0
      %v3591 = vsel %vm3544, %v3528, 0
      %vm3593 = vcmask 1041408
      %v3595 = vsel %vm3593, %v3541, 0
      %3597 = vmatpush.bf16.msra.mxu0 0
      %3598 = vmatpush.bf16.msra.mxu0 0
      %3599 = vmatpush.bf16.msra.mxu0 0
      %3600 = vmatpush.bf16.msra.mxu0 0
      %3601 = vmatpush.bf16.msra.mxu0 0
      %3602 = vmatpush.bf16.msra.mxu0 %v3595
      %3603 = vmatpush.bf16.msra.mxu0 %v3540
      %3604 = vmatpush.bf16.msra.mxu0 %v3539
      %3605 = vmatmul.bf16.gmra.mxu0 %v3546
      %v3606 = vpop.f32.mrf.mxu0
      %v3607 = vadd.f32 %v3447, %v3606
      %v3608 = vpop.f32.mrf.mxu0
      %v3609 = vadd.f32 %v3447, %v3608
      %3610 = vmatmul.bf16.gmra.mxu0 %v3549
      %v3611 = vpop.f32.mrf.mxu0
      %v3612 = vadd.f32 %v3447, %v3611
      %v3613 = vpop.f32.mrf.mxu0
      %v3614 = vadd.f32 %v3447, %v3613
      %3615 = vmatmul.bf16.gmra.mxu0 %v3552
      %v3616 = vpop.f32.mrf.mxu0
      %v3617 = vadd.f32 %v3447, %v3616
      %v3618 = vpop.f32.mrf.mxu0
      %v3619 = vadd.f32 %v3447, %v3618
      %3620 = vmatmul.bf16.gmra.mxu0 %v3555
      %v3621 = vpop.f32.mrf.mxu0
      %v3622 = vadd.f32 %v3447, %v3621
      %v3623 = vpop.f32.mrf.mxu0
      %v3624 = vadd.f32 %v3447, %v3623
      %3625 = vmatmul.bf16.gmra.mxu0 %v3558
      %v3626 = vpop.f32.mrf.mxu0
      %v3627 = vadd.f32 %v3447, %v3626
      %v3628 = vpop.f32.mrf.mxu0
      %v3629 = vadd.f32 %v3447, %v3628
      %3630 = vmatmul.bf16.gmra.mxu0 %v3561
      %v3631 = vpop.f32.mrf.mxu0
      %v3632 = vadd.f32 %v3447, %v3631
      %v3633 = vpop.f32.mrf.mxu0
      %v3634 = vadd.f32 %v3447, %v3633
      %3635 = vmatmul.bf16.gmra.mxu0 %v3564
      %v3636 = vpop.f32.mrf.mxu0
      %v3637 = vadd.f32 %v3447, %v3636
      %v3638 = vpop.f32.mrf.mxu0
      %v3639 = vadd.f32 %v3447, %v3638
      %3640 = vmatmul.bf16.gmra.mxu0 %v3567
      %v3641 = vpop.f32.mrf.mxu0
      %v3642 = vadd.f32 %v3447, %v3641
      %v3643 = vpop.f32.mrf.mxu0
      %v3644 = vadd.f32 %v3447, %v3643
      %3645 = vmatmul.bf16.gmra.mxu0 %v3570
      %v3646 = vpop.f32.mrf.mxu0
      %v3647 = vadd.f32 %v3447, %v3646
      %v3648 = vpop.f32.mrf.mxu0
      %v3649 = vadd.f32 %v3447, %v3648
      %3650 = vmatmul.bf16.gmra.mxu0 %v3573
      %v3651 = vpop.f32.mrf.mxu0
      %v3652 = vadd.f32 %v3447, %v3651
      %v3653 = vpop.f32.mrf.mxu0
      %v3654 = vadd.f32 %v3447, %v3653
      %3655 = vmatmul.bf16.gmra.mxu0 %v3576
      %v3656 = vpop.f32.mrf.mxu0
      %v3657 = vadd.f32 %v3447, %v3656
      %v3658 = vpop.f32.mrf.mxu0
      %v3659 = vadd.f32 %v3447, %v3658
      %3660 = vmatmul.bf16.gmra.mxu0 %v3579
      %v3661 = vpop.f32.mrf.mxu0
      %v3662 = vadd.f32 %v3447, %v3661
      %v3663 = vpop.f32.mrf.mxu0
      %v3664 = vadd.f32 %v3447, %v3663
      %3665 = vmatmul.bf16.gmra.mxu0 %v3582
      %v3666 = vpop.f32.mrf.mxu0
      %v3667 = vadd.f32 %v3447, %v3666
      %v3668 = vpop.f32.mrf.mxu0
      %v3669 = vadd.f32 %v3447, %v3668
      %3670 = vmatmul.bf16.gmra.mxu0 %v3585
      %v3671 = vpop.f32.mrf.mxu0
      %v3672 = vadd.f32 %v3447, %v3671
      %v3673 = vpop.f32.mrf.mxu0
      %v3674 = vadd.f32 %v3447, %v3673
      %3675 = vmatmul.bf16.gmra.mxu0 %v3588
      %v3676 = vpop.f32.mrf.mxu0
      %v3677 = vadd.f32 %v3447, %v3676
      %v3678 = vpop.f32.mrf.mxu0
      %v3679 = vadd.f32 %v3447, %v3678
      %3680 = vmatmul.bf16.gmra.mxu0 %v3591
      %v3681 = vpop.f32.mrf.mxu0
      %v3682 = vadd.f32 %v3447, %v3681
      %v3683 = vpop.f32.mrf.mxu0
      %v3684 = vadd.f32 %v3447, %v3683
      %3685 = vdwg.mxu0
      %v3686 = vmax.f32 %v3607, 0.0
      %v3687 = vmax.f32 %v3609, 0.0
      %v3688 = vmax.f32 %v3612, 0.0
      %v3689 = vmax.f32 %v3614, 0.0
      %v3690 = vmax.f32 %v3617, 0.0
      %v3691 = vmax.f32 %v3619, 0.0
      %v3692 = vmax.f32 %v3622, 0.0
      %v3693 = vmax.f32 %v3624, 0.0
      %v3694 = vmax.f32 %v3627, 0.0
      %v3695 = vmax.f32 %v3629, 0.0
      %v3696 = vmax.f32 %v3632, 0.0
      %v3697 = vmax.f32 %v3634, 0.0
      %v3698 = vmax.f32 %v3637, 0.0
      %v3699 = vmax.f32 %v3639, 0.0
      %v3700 = vmax.f32 %v3642, 0.0
      %v3701 = vmax.f32 %v3644, 0.0
      %v3702 = vmax.f32 %v3647, 0.0
      %v3703 = vmax.f32 %v3649, 0.0
      %v3704 = vmax.f32 %v3652, 0.0
      %v3705 = vmax.f32 %v3654, 0.0
      %v3706 = vmax.f32 %v3657, 0.0
      %v3707 = vmax.f32 %v3659, 0.0
      %v3708 = vmax.f32 %v3662, 0.0
      %v3709 = vmax.f32 %v3664, 0.0
      %v3710 = vmax.f32 %v3667, 0.0
      %v3711 = vmax.f32 %v3669, 0.0
      %v3712 = vmax.f32 %v3672, 0.0
      %v3713 = vmax.f32 %v3674, 0.0
      %v3714 = vmax.f32 %v3677, 0.0
      %v3715 = vmax.f32 %v3679, 0.0
      %v3716 = vmax.f32 %v3682, 0.0
      %v3717 = vmax.f32 %v3684, 0.0
      %v3718 = vpack.c.bf16 %v3686, %v3686
      %v3719 = vpack.c.bf16 %v3687, %v3687
      %v3720 = vpack.c.bf16 %v3688, %v3688
      %v3721 = vpack.c.bf16 %v3689, %v3689
      %v3722 = vpack.c.bf16 %v3690, %v3690
      %v3723 = vpack.c.bf16 %v3691, %v3691
      %v3724 = vpack.c.bf16 %v3692, %v3692
      %v3725 = vpack.c.bf16 %v3693, %v3693
      %v3726 = vpack.c.bf16 %v3694, %v3694
      %v3727 = vpack.c.bf16 %v3695, %v3695
      %v3728 = vpack.c.bf16 %v3696, %v3696
      %v3729 = vpack.c.bf16 %v3697, %v3697
      %v3730 = vpack.c.bf16 %v3698, %v3698
      %v3731 = vpack.c.bf16 %v3699, %v3699
      %v3732 = vpack.c.bf16 %v3700, %v3700
      %v3733 = vpack.c.bf16 %v3701, %v3701
      %v3734 = vpack.c.bf16 %v3702, %v3702
      %v3735 = vpack.c.bf16 %v3703, %v3703
      %v3736 = vpack.c.bf16 %v3704, %v3704
      %v3737 = vpack.c.bf16 %v3705, %v3705
      %v3738 = vpack.c.bf16 %v3706, %v3706
      %v3739 = vpack.c.bf16 %v3707, %v3707
      %v3740 = vpack.c.bf16 %v3708, %v3708
      %v3741 = vpack.c.bf16 %v3709, %v3709
      %v3742 = vpack.c.bf16 %v3710, %v3710
      %v3743 = vpack.c.bf16 %v3711, %v3711
      %v3744 = vpack.c.bf16 %v3712, %v3712
      %v3745 = vpack.c.bf16 %v3713, %v3713
      %v3746 = vpack.c.bf16 %v3714, %v3714
      %v3747 = vpack.c.bf16 %v3715, %v3715
      %v3748 = vpack.c.bf16 %v3716, %v3716
      %v3749 = vpack.c.bf16 %v3717, %v3717
      %3750 = vst [vmem:[%s238] sm:$0xf] %v3718
      %3751 = vst [vmem:[%s238 + $0x4] sm:$0xf] %v3719
      %3752 = vst [vmem:[%s238 + $0x8] sm:$0xf] %v3720
      %3753 = vst [vmem:[%s238 + $0xc] sm:$0xf] %v3721
      %3754 = vst [vmem:[%s238 + $0x10] sm:$0xf] %v3722
      %3755 = vst [vmem:[%s238 + $0x14] sm:$0xf] %v3723
      %3756 = vst [vmem:[%s238 + $0x18] sm:$0xf] %v3724
      %3757 = vst [vmem:[%s238 + $0x1c] sm:$0xf] %v3725
      %3758 = vst [vmem:[%s238 + $0x20] sm:$0xf] %v3726
      %3759 = vst [vmem:[%s238 + $0x24] sm:$0xf] %v3727
      %3760 = vst [vmem:[%s238 + $0x28] sm:$0xf] %v3728
      %3761 = vst [vmem:[%s238 + $0x2c] sm:$0xf] %v3729
      %3762 = vst [vmem:[%s238 + $0x30] sm:$0xf] %v3730
      %3763 = vst [vmem:[%s238 + $0x34] sm:$0xf] %v3731
      %3764 = vst [vmem:[%s238 + $0x38] sm:$0xf] %v3732
      %3765 = vst [vmem:[%s238 + $0x3c] sm:$0xf] %v3733
      %3766 = vst [vmem:[%s238 + $0x40] sm:$0xf] %v3734
      %3767 = vst [vmem:[%s238 + $0x44] sm:$0xf] %v3735
      %3768 = vst [vmem:[%s238 + $0x48] sm:$0xf] %v3736
      %3769 = vst [vmem:[%s238 + $0x4c] sm:$0xf] %v3737
      %3770 = vst [vmem:[%s238 + $0x50] sm:$0xf] %v3738
      %3771 = vst [vmem:[%s238 + $0x54] sm:$0xf] %v3739
      %3772 = vst [vmem:[%s238 + $0x58] sm:$0xf] %v3740
      %3773 = vst [vmem:[%s238 + $0x5c] sm:$0xf] %v3741
      %3774 = vst [vmem:[%s238 + $0x60] sm:$0xf] %v3742
      %3775 = vst [vmem:[%s238 + $0x64] sm:$0xf] %v3743
      %3776 = vst [vmem:[%s238 + $0x68] sm:$0xf] %v3744
      %3777 = vst [vmem:[%s238 + $0x6c] sm:$0xf] %v3745
      %3778 = vst [vmem:[%s238 + $0x70] sm:$0xf] %v3746
      %3779 = vst [vmem:[%s238 + $0x74] sm:$0xf] %v3747
      %3780 = vst [vmem:[%s238 + $0x78] sm:$0xf] %v3748
      %3781 = vst [vmem:[%s238 + $0x7c] sm:$0xf] %v3749
      %s3782 = smul.u32 32, %s20
      %p3783 = scmp.lt.s32.totalorder %s19, 1
      %s3784 = scalar_select %p3783, %s19, 1
      %p3785 = scmp.lt.s32.totalorder %s3782, 31
      %s3786 = scalar_select %p3785, %s3782, 31
      %p3787 = scmp.lt.s32.totalorder %s21, 0
      %s3788 = scalar_select %p3787, %s21, 0
      %s3789 = sadd.s32 %s3788, %s3786
      %s3790 = smul.addr %s3784, 32
      %s3791 = sadd.s32 %s3789, %s3790
      %s3792 = smul.addr %s3791, 4
      %s3793 = scalar_lea.vmem %s3, %s3792
      // Predicated region
      $region37: #{basic_conv2d.1} parent=31 // pred_check
        %p3794 = pneg %p133
      $region38: #{basic_conv2d.1} parent=31 // pred_check_branch
        %3796 = sbr.rel (%p3794) target = $region40
      $region39: #{basic_conv2d.1} parent=31 // pred_region
        %s3797 = smul.u32 32, %s20
      $region40: #{basic_conv2d.1} parent=31 // pred_fallthru
        _
    $region32: #{basic_conv2d.1} parent=5 // pred_fallthru
      _
    %p3798 = scmp.le.s32.totalorder 2, %s9
    // Predicated region
    $region41: #{basic_conv2d.1} parent=5 // pred_check
      %p3799 = pneg %p3798
    $region42: #{basic_conv2d.1} parent=5 // pred_check_branch
      %3801 = sbr.rel (%p3799) target = $region44
    $region43: #{basic_conv2d.1} parent=5 // pred_region
      %s3802 = ssub.s32 %s9, 2
      // Predicated region
      $region45: #{basic_conv2d.1} parent=43 // pred_check
        %p3803 = pneg %p139
      $region46: #{basic_conv2d.1} parent=43 // pred_check_branch
        %3805 = sbr.rel (%p3803) target = $region48
      $region47: #{basic_conv2d.1} parent=43 // pred_region
        %s3806 = smul.u32 32, %s23
        %p3807 = scmp.lt.s32.totalorder %s22, 1
        %s3808 = scalar_select %p3807, %s22, 1
        %p3809 = scmp.lt.s32.totalorder %s3806, 31
        %s3810 = scalar_select %p3809, %s3806, 31
        %p3811 = scmp.lt.s32.totalorder %s24, 0
        %s3812 = scalar_select %p3811, %s24, 0
        %s3813 = sadd.s32 %s3812, %s3810
        %s3814 = smul.addr %s3808, 32
        %s3815 = sadd.s32 %s3813, %s3814
        %s3816 = smul.addr %s3815, 4
        %s3817 = scalar_lea.vmem %s3, %s3816
      $region48: #{basic_conv2d.1} parent=43 // pred_fallthru
        _
    $region44: #{basic_conv2d.1} parent=5 // pred_fallthru
      _
  $region6: #{basic_conv2d.1} parent=0 // loop_footer
    %s13 = sadd.s32 1, %s9
  $region7: #{basic_conv2d.1} parent=0 // loop_footer_branch
    %8 = sbr.rel target = $region3
  $region8: #{basic_conv2d.1} parent=0 // loop_exit
    _

</llo_original>
